<compile_context>
chip_gen: v7x
topology: tpu7x:2x2x1
jax: 0.10.0
libtpu: 0.0.40
codegen_flags: <defaults>
</compile_context>

<pallas_src>
import functools

import jax
import jax.numpy as jnp
import numpy as np
from jax.experimental import pallas as pl
from jax.experimental.pallas import tpu as pltpu


# Conv matmul operand / patch-scratch dtype (accumulation is always f32).
# bf16 = native MXU on all generations, half the patch VMEM + staging traffic.
MATMUL_DTYPE = jnp.bfloat16

# Per-generation note: safe on v7x (64 MiB physical); raise toward ~96 MiB on
# v5e/v6e when running larger spatial tiles.
VMEM_LIMIT_BYTES = 48 * 1024 * 1024


# ------------------------------ fused kernel --------------------------------

def decoder_block_kernel(x_ref, g1_ref, bt1_ref, w1_ref, b1_ref,
                         g2_ref, bt2_ref, w2_ref, b2_ref,
                         gmat_ref, mask_ref, o_ref, patch_ref, *, dhw, eps):
    D, H, W = dhw
    x = x_ref[0, :, :].astype(jnp.float32)           # (C, S), S = D*H*W (lanes)
    C, S = x.shape
    gmat = gmat_ref[...]                              # (C, C), rows pre-scaled 1/(cpg*S)

    def gn_relu(v, gamma, beta):
        # Shifted-mean two-pass GroupNorm, all f32.
        # Lane (S) reductions on the XLU -> (C,1); group reduce + broadcast is a
        # single tiny (C,C)@(C,1) dot; the (C,1) results lane-broadcast on the VPU.
        sum_c = jnp.sum(v, axis=1, keepdims=True)                            # (C,1)
        mean_c = jnp.dot(gmat, sum_c, preferred_element_type=jnp.float32)    # (C,1)
        d = v - mean_c
        ssq_c = jnp.sum(d * d, axis=1, keepdims=True)                        # (C,1)
        var_c = jnp.dot(gmat, ssq_c, preferred_element_type=jnp.float32)     # (C,1)
        rstd_c = jax.lax.rsqrt(var_c + eps)                                  # (C,1)
        return jnp.maximum(d * rstd_c * gamma + beta, 0.0)

    def conv3x3x3(v, w_ref_, b_ref_):
        # Stage the 27 shifted taps into the im2col scratch:
        #   patch[tap*C + c, s] = v[c, neighbor(s, tap)]  (0 outside the volume)
        # Shifts ride the XLU (pltpu.roll); the boundary masks are precomputed
        # (mask_ref, hoisted out of the kernel).  Mask-mul in f32 (v5e-friendly),
        # downcast to MATMUL_DTYPE only at the store.
        for kd in range(3):
            for kh in range(3):
                for kw in range(3):
                    od, oh, ow = kd - 1, kh - 1, kw - 1
                    off = (od * H + oh) * W + ow
                    shifted = v if off == 0 else pltpu.roll(v, (-off) % S, axis=1)
                    tap = (kd * 3 + kh) * 3 + kw
                    m = mask_ref[tap:tap + 1, :]                             # (1, S)
                    patch_ref[tap * C:(tap + 1) * C, :] = (
                        shifted * m).astype(patch_ref.dtype)
        # One MXU contraction per conv: (Cout, 27*Cin) @ (27*Cin, S) -> (Cout, S)
        return (jnp.dot(w_ref_[...], patch_ref[...],
                        preferred_element_type=jnp.float32) + b_ref_[...])

    y = gn_relu(x, g1_ref[...], bt1_ref[...])
    y = conv3x3x3(y, w1_ref, b1_ref)
    y = gn_relu(y, g2_ref[...], bt2_ref[...])
    y = conv3x3x3(y, w2_ref, b2_ref)
    o_ref[0, :, :] = (y + x).astype(o_ref.dtype)      # fused residual add


# -------------------------------- wrapper ------------------------------------

@functools.partial(jax.jit, static_argnames=("num_groups", "eps"))
def decoder_block_forward(x_ncdhw, params, num_groups=8, eps=1e-5):
    N, C, D, H, W = x_ncdhw.shape
    S = D * H * W
    assert C % num_groups == 0, "channels must be divisible by num_groups"
    assert S % 128 == 0, "flattened spatial dim must be lane-aligned (x128)"
    sub = 16 if jnp.dtype(MATMUL_DTYPE).itemsize == 2 else 8
    assert C % sub == 0, (
        f"C must be a multiple of {sub} so im2col tap rows stay sublane-aligned")

    x3 = x_ncdhw.reshape(N, C, S)          # free reshape (spatial already minor)

    # conv weights (3,3,3,Cin,Cout) -> im2col layout (Cout, 27*Cin),
    # tap-major / channel-minor to match the patch-scratch row ordering.
    def im2col_w(w):
        return jnp.transpose(w, (4, 0, 1, 2, 3)).reshape(C, 27 * C).astype(MATMUL_DTYPE)

    w1 = im2col_w(params["c1_w"])
    w2 = im2col_w(params["c2_w"])
    b1 = params["c1_b"].reshape(C, 1).astype(jnp.float32)
    b2 = params["c2_b"].reshape(C, 1).astype(jnp.float32)
    g1 = params["gn1_gamma"].reshape(C, 1).astype(jnp.float32)
    bt1 = params["gn1_beta"].reshape(C, 1).astype(jnp.float32)
    g2 = params["gn2_gamma"].reshape(C, 1).astype(jnp.float32)
    bt2 = params["gn2_beta"].reshape(C, 1).astype(jnp.float32)

    # Group-averaging matrix with the 1/(cpg*S) count folded in:
    #   gmat @ per_channel_sums == per-channel group mean.
    cpg = C // num_groups
    grp = np.arange(C) // cpg
    gmat = jnp.asarray((grp[:, None] == grp[None, :]).astype(np.float32)
                       / float(cpg * S))                                  # (C, C)

    # 27 halo/boundary masks, hoisted out of the kernel (constants).
    pos = np.arange(S)
    wi = pos % W
    hi = (pos // W) % H
    di = pos // (H * W)
    rows = []
    for kd in range(3):
        for kh in range(3):
            for kw in range(3):
                od, oh, ow = kd - 1, kh - 1, kw - 1
                rows.append((di + od >= 0) & (di + od < D) &
                            (hi + oh >= 0) & (hi + oh < H) &
                            (wi + ow >= 0) & (wi + ow < W))
    mask = jnp.asarray(np.stack(rows).astype(np.float32))                 # (27, S)

    # Rough per-grid-step VMEM budget guard (patch scratch dominates).
    isz = jnp.dtype(MATMUL_DTYPE).itemsize
    vmem_est = (27 * C * S * isz                     # im2col patch scratch
                + 2 * 2 * C * S * 4                  # double-buffered in + out block
                + 2 * 2 * C * 27 * C * isz           # conv weights (double-buffered)
                + 2 * 27 * S * 4                     # boundary masks
                + 2 * (C * C + 6 * C) * 4)           # gmat + small vectors
    assert vmem_est < VMEM_LIMIT_BYTES, (
        f"per-sample block needs ~{vmem_est} B VMEM; add the D-tile grid axis")

    # NOTE: invariant operands (weights, gamma/beta, gmat, mask) are never
    # re-fetched (constant index_map); their extra pipeline buffer is negligible
    # at this size, so we skip pipeline_mode overrides for portability.
    vec_spec = pl.BlockSpec((C, 1), lambda n: (0, 0))
    w_spec = pl.BlockSpec((C, 27 * C), lambda n: (0, 0))

    out = pl.pallas_call(
        functools.partial(decoder_block_kernel, dhw=(D, H, W), eps=eps),
        grid=(N,),
        in_specs=[
            pl.BlockSpec((1, C, S), lambda n: (n, 0, 0)),     # x
            vec_spec, vec_spec, w_spec, vec_spec,             # gn1 g/b, conv1 w/b
            vec_spec, vec_spec, w_spec, vec_spec,             # gn2 g/b, conv2 w/b
            pl.BlockSpec((C, C), lambda n: (0, 0)),           # gmat
            pl.BlockSpec((27, S), lambda n: (0, 0)),          # halo masks
        ],
        out_specs=pl.BlockSpec((1, C, S), lambda n: (n, 0, 0)),
        out_shape=jax.ShapeDtypeStruct((N, C, S), jnp.float32),
        scratch_shapes=[pltpu.VMEM((27 * C, S), MATMUL_DTYPE)],   # im2col patches
        compiler_params=pltpu.CompilerParams(
            dimension_semantics=("parallel",),     # N>=2 keeps both v7x TCs busy
            vmem_limit_bytes=VMEM_LIMIT_BYTES),
    )(x3, g1, bt1, w1, b1, g2, bt2, w2, b2, gmat, mask)
    return out.reshape(N, C, D, H, W)


# --------------------------- parameter initialization ------------------------

def init_params(key, chans):
    ks = jax.random.split(key, 8)
    fan = chans * 27
    s = 1.0 / np.sqrt(fan)

    def u(k, shape):
        return jax.random.uniform(k, shape, jnp.float32, -s, s)

    return {
        # conv weights stored DHWIO: (3, 3, 3, Cin, Cout)
        "c1_w": u(ks[0], (3, 3, 3, chans, chans)),
        "c1_b": u(ks[1], (chans,)),
        "c2_w": u(ks[2], (3, 3, 3, chans, chans)),
        "c2_b": u(ks[3], (chans,)),
        "gn1_gamma": 1.0 + 0.1 * jax.random.normal(ks[4], (chans,), jnp.float32),
        "gn1_beta": 0.1 * jax.random.normal(ks[5], (chans,), jnp.float32),
        "gn2_gamma": 1.0 + 0.1 * jax.random.normal(ks[6], (chans,), jnp.float32),
        "gn2_beta": 0.1 * jax.random.normal(ks[7], (chans,), jnp.float32),
    }


# ----------------------------- pure-JAX reference ----------------------------

def reference_forward(x, params, num_groups=8, eps=1e-5):
    hp = jax.lax.Precision.HIGHEST
    C = x.shape[1]

    def gn(a, gamma, beta):
        n, c, d, h, w = a.shape
        g = num_groups
        ar = a.reshape(n, g, c // g, d, h, w).astype(jnp.float32)
        mean = ar.mean(axis=(2, 3, 4, 5), keepdims=True)
        var = ((ar - mean) ** 2).mean(axis=(2, 3, 4, 5), keepdims=True)
        out = ((ar - mean) / jnp.sqrt(var + eps)).reshape(n, c, d, h, w)
        return out * gamma.reshape(1, c, 1, 1, 1) + beta.reshape(1, c, 1, 1, 1)

    def conv3(a, w, b):
        out = jax.lax.conv_general_dilated(
            a, w, window_strides=(1, 1, 1),
            padding=((1, 1), (1, 1), (1, 1)),
            dimension_numbers=("NCDHW", "DHWIO", "NCDHW"), precision=hp)
        return out + b.reshape(1, C, 1, 1, 1)

    residual = x
    y = jnp.maximum(gn(x, params["gn1_gamma"], params["gn1_beta"]), 0.0)
    y = conv3(y, params["c1_w"], params["c1_b"])
    y = jnp.maximum(gn(y, params["gn2_gamma"], params["gn2_beta"]), 0.0)
    y = conv3(y, params["c2_w"], params["c2_b"])
    return y + residual


# ----------------------------------- main ------------------------------------

if __name__ == "__main__":
    # DecoderBlock requires inChans == outChans (residual add); channels
    # divisible by num_groups=8 (and by 16 for the bf16 patch layout).
    # D*H*W = 512 keeps the lane dim 128-aligned.
    N, C = 2, 16
    D = H = W = 8
    key = jax.random.PRNGKey(0)
    kx, kp = jax.random.split(key)
    x = jax.random.normal(kx, (N, C, D, H, W), jnp.float32)   # NCDHW like PyTorch
    params = init_params(kp, C)

    out = jax.block_until_ready(decoder_block_forward(x, params))
    assert out.shape == (N, C, D, H, W), out.shape

    ref = reference_forward(x, params)
    max_diff = float(jnp.max(jnp.abs(out - ref)))
    # bf16 conv operands (K = 27*C accumulation) widen the error vs the
    # f32/HIGHEST reference; GN stats and accumulation stay f32.
    tol = 2e-2 if MATMUL_DTYPE == jnp.float32 else 5e-2
    assert max_diff < tol, f"max diff vs reference: {max_diff}"
    print("KERNEL_OK")
</pallas_src>

<mosaic_0001>
module attributes {stable_mosaic.version = 11 : i64} {
  func.func @decoder_block_kernel(%arg0: i32, %arg1: memref<1x16x512xf32, #tpu.memory_space<vmem>>, %arg2: memref<16x1xf32, #tpu.memory_space<vmem>>, %arg3: memref<16x1xf32, #tpu.memory_space<vmem>>, %arg4: memref<16x432xbf16, #tpu.memory_space<vmem>>, %arg5: memref<16x1xf32, #tpu.memory_space<vmem>>, %arg6: memref<16x1xf32, #tpu.memory_space<vmem>>, %arg7: memref<16x1xf32, #tpu.memory_space<vmem>>, %arg8: memref<16x432xbf16, #tpu.memory_space<vmem>>, %arg9: memref<16x1xf32, #tpu.memory_space<vmem>>, %arg10: memref<16x16xf32, #tpu.memory_space<vmem>>, %arg11: memref<27x512xf32, #tpu.memory_space<vmem>>, %arg12: memref<1x16x512xf32, #tpu.memory_space<vmem>>, %arg13: memref<432x512xbf16, #tpu.memory_space<vmem>>) attributes {dimension_semantics = [#tpu.dimension_semantics<parallel>], iteration_bounds = array<i64: 2>, scalar_prefetch = 0 : i64, scratch_operands = 1 : i64, tpu.core_type = #tpu.core_type<tc>, window_params = [{transform_indices = @transform_0, window_bounds = array<i64: 1, 16, 512>}, {pipeline_mode = #tpu.pipeline_mode<synchronous>, transform_indices = @transform_1, window_bounds = array<i64: 16, 1>}, {pipeline_mode = #tpu.pipeline_mode<synchronous>, transform_indices = @transform_2, window_bounds = array<i64: 16, 1>}, {pipeline_mode = #tpu.pipeline_mode<synchronous>, transform_indices = @transform_3, window_bounds = array<i64: 16, 432>}, {pipeline_mode = #tpu.pipeline_mode<synchronous>, transform_indices = @transform_4, window_bounds = array<i64: 16, 1>}, {pipeline_mode = #tpu.pipeline_mode<synchronous>, transform_indices = @transform_5, window_bounds = array<i64: 16, 1>}, {pipeline_mode = #tpu.pipeline_mode<synchronous>, transform_indices = @transform_6, window_bounds = array<i64: 16, 1>}, {pipeline_mode = #tpu.pipeline_mode<synchronous>, transform_indices = @transform_7, window_bounds = array<i64: 16, 432>}, {pipeline_mode = #tpu.pipeline_mode<synchronous>, transform_indices = @transform_8, window_bounds = array<i64: 16, 1>}, {pipeline_mode = #tpu.pipeline_mode<synchronous>, transform_indices = @transform_9, window_bounds = array<i64: 16, 16>}, {pipeline_mode = #tpu.pipeline_mode<synchronous>, transform_indices = @transform_10, window_bounds = array<i64: 27, 512>}, {transform_indices = @transform_11, window_bounds = array<i64: 1, 16, 512>}]} {
    %c0 = arith.constant 0 : index
    %c0_0 = arith.constant 0 : index
    %c0_1 = arith.constant 0 : index
    %0 = vector.load %arg1[%c0, %c0_0, %c0_1] : memref<1x16x512xf32, #tpu.memory_space<vmem>>, vector<1x16x512xf32>
    %1 = vector.shape_cast %0 : vector<1x16x512xf32> to vector<16x512xf32>
    %c0_2 = arith.constant 0 : index
    %c0_3 = arith.constant 0 : index
    %2 = vector.load %arg10[%c0_2, %c0_3] : memref<16x16xf32, #tpu.memory_space<vmem>>, vector<16x16xf32>
    %c0_4 = arith.constant 0 : index
    %c0_5 = arith.constant 0 : index
    %3 = vector.load %arg2[%c0_4, %c0_5] : memref<16x1xf32, #tpu.memory_space<vmem>>, vector<16x1xf32>
    %c0_6 = arith.constant 0 : index
    %c0_7 = arith.constant 0 : index
    %4 = vector.load %arg3[%c0_6, %c0_7] : memref<16x1xf32, #tpu.memory_space<vmem>>, vector<16x1xf32>
    %cst = arith.constant dense<0.000000e+00> : vector<16xf32>
    %5 = vector.multi_reduction <add>, %1, %cst [1] : vector<16x512xf32> to vector<16xf32>
    %6 = vector.shape_cast %5 : vector<16xf32> to vector<16x1xf32>
    %cst_8 = arith.constant dense<0.000000e+00> : vector<16x1xf32>
    %7 = tpu.matmul %2, %6, %cst_8 {dimension_numbers = #tpu.dot_dimension_numbers<[1], [0], [0], [1], [0, 0, 1, 1], [], []>} : vector<16x16xf32>, vector<16x1xf32>, vector<16x1xf32> -> vector<16x1xf32>
    %8 = vector.broadcast %7 : vector<16x1xf32> to vector<16x512xf32>
    %9 = arith.subf %1, %8 : vector<16x512xf32>
    %10 = arith.mulf %9, %9 : vector<16x512xf32>
    %cst_9 = arith.constant dense<0.000000e+00> : vector<16xf32>
    %11 = vector.multi_reduction <add>, %10, %cst_9 [1] : vector<16x512xf32> to vector<16xf32>
    %12 = vector.shape_cast %11 : vector<16xf32> to vector<16x1xf32>
    %cst_10 = arith.constant dense<0.000000e+00> : vector<16x1xf32>
    %13 = tpu.matmul %2, %12, %cst_10 {dimension_numbers = #tpu.dot_dimension_numbers<[1], [0], [0], [1], [0, 0, 1, 1], [], []>} : vector<16x16xf32>, vector<16x1xf32>, vector<16x1xf32> -> vector<16x1xf32>
    %cst_11 = arith.constant 9.99999974E-6 : f32
    %14 = vector.broadcast %cst_11 : f32 to vector<16x1xf32>
    %15 = arith.addf %13, %14 : vector<16x1xf32>
    %16 = math.rsqrt %15 : vector<16x1xf32>
    %17 = vector.broadcast %16 : vector<16x1xf32> to vector<16x512xf32>
    %18 = arith.mulf %9, %17 : vector<16x512xf32>
    %19 = vector.broadcast %3 : vector<16x1xf32> to vector<16x512xf32>
    %20 = arith.mulf %18, %19 : vector<16x512xf32>
    %21 = vector.broadcast %4 : vector<16x1xf32> to vector<16x512xf32>
    %22 = arith.addf %20, %21 : vector<16x512xf32>
    %cst_12 = arith.constant 0.000000e+00 : f32
    %23 = vector.broadcast %cst_12 : f32 to vector<16x512xf32>
    %24 = arith.maximumf %22, %23 : vector<16x512xf32>
    %c73_i32 = arith.constant 73 : i32
    %25 = tpu.dynamic_rotate %24 by %c73_i32 dim 1 : vector<16x512xf32>, i32 -> vector<16x512xf32>
    %c0_13 = arith.constant 0 : index
    %c0_14 = arith.constant 0 : index
    %26 = vector.load %arg11[%c0_13, %c0_14] : memref<27x512xf32, #tpu.memory_space<vmem>>, vector<1x512xf32>
    %27 = vector.broadcast %26 : vector<1x512xf32> to vector<16x512xf32>
    %28 = arith.mulf %25, %27 : vector<16x512xf32>
    %29 = arith.truncf %28 : vector<16x512xf32> to vector<16x512xbf16>
    %c0_15 = arith.constant 0 : index
    %c0_16 = arith.constant 0 : index
    %30 = vector.load %arg13[%c0_15, %c0_16] : memref<432x512xbf16, #tpu.memory_space<vmem>>, vector<16x512xbf16>
    tpu.vector_store %arg13[%c0_15, %c0_16], %29 {strides = array<i32>} : memref<432x512xbf16, #tpu.memory_space<vmem>>, vector<16x512xbf16>,
    %c72_i32 = arith.constant 72 : i32
    %31 = tpu.dynamic_rotate %24 by %c72_i32 dim 1 : vector<16x512xf32>, i32 -> vector<16x512xf32>
    %c1 = arith.constant 1 : index
    %c0_17 = arith.constant 0 : index
    %32 = vector.load %arg11[%c1, %c0_17] : memref<27x512xf32, #tpu.memory_space<vmem>>, vector<1x512xf32>
    %33 = vector.broadcast %32 : vector<1x512xf32> to vector<16x512xf32>
    %34 = arith.mulf %31, %33 : vector<16x512xf32>
    %35 = arith.truncf %34 : vector<16x512xf32> to vector<16x512xbf16>
    %c16 = arith.constant 16 : index
    %c0_18 = arith.constant 0 : index
    %36 = vector.load %arg13[%c16, %c0_18] : memref<432x512xbf16, #tpu.memory_space<vmem>>, vector<16x512xbf16>
    tpu.vector_store %arg13[%c16, %c0_18], %35 {strides = array<i32>} : memref<432x512xbf16, #tpu.memory_space<vmem>>, vector<16x512xbf16>,
    %c71_i32 = arith.constant 71 : i32
    %37 = tpu.dynamic_rotate %24 by %c71_i32 dim 1 : vector<16x512xf32>, i32 -> vector<16x512xf32>
    %c2 = arith.constant 2 : index
    %c0_19 = arith.constant 0 : index
    %38 = vector.load %arg11[%c2, %c0_19] : memref<27x512xf32, #tpu.memory_space<vmem>>, vector<1x512xf32>
    %39 = vector.broadcast %38 : vector<1x512xf32> to vector<16x512xf32>
    %40 = arith.mulf %37, %39 : vector<16x512xf32>
    %41 = arith.truncf %40 : vector<16x512xf32> to vector<16x512xbf16>
    %c32 = arith.constant 32 : index
    %c0_20 = arith.constant 0 : index
    %42 = vector.load %arg13[%c32, %c0_20] : memref<432x512xbf16, #tpu.memory_space<vmem>>, vector<16x512xbf16>
    tpu.vector_store %arg13[%c32, %c0_20], %41 {strides = array<i32>} : memref<432x512xbf16, #tpu.memory_space<vmem>>, vector<16x512xbf16>,
    %c65_i32 = arith.constant 65 : i32
    %43 = tpu.dynamic_rotate %24 by %c65_i32 dim 1 : vector<16x512xf32>, i32 -> vector<16x512xf32>
    %c3 = arith.constant 3 : index
    %c0_21 = arith.constant 0 : index
    %44 = vector.load %arg11[%c3, %c0_21] : memref<27x512xf32, #tpu.memory_space<vmem>>, vector<1x512xf32>
    %45 = vector.broadcast %44 : vector<1x512xf32> to vector<16x512xf32>
    %46 = arith.mulf %43, %45 : vector<16x512xf32>
    %47 = arith.truncf %46 : vector<16x512xf32> to vector<16x512xbf16>
    %c48 = arith.constant 48 : index
    %c0_22 = arith.constant 0 : index
    %48 = vector.load %arg13[%c48, %c0_22] : memref<432x512xbf16, #tpu.memory_space<vmem>>, vector<16x512xbf16>
    tpu.vector_store %arg13[%c48, %c0_22], %47 {strides = array<i32>} : memref<432x512xbf16, #tpu.memory_space<vmem>>, vector<16x512xbf16>,
    %c64_i32 = arith.constant 64 : i32
    %49 = tpu.dynamic_rotate %24 by %c64_i32 dim 1 : vector<16x512xf32>, i32 -> vector<16x512xf32>
    %c4 = arith.constant 4 : index
    %c0_23 = arith.constant 0 : index
    %50 = vector.load %arg11[%c4, %c0_23] : memref<27x512xf32, #tpu.memory_space<vmem>>, vector<1x512xf32>
    %51 = vector.broadcast %50 : vector<1x512xf32> to vector<16x512xf32>
    %52 = arith.mulf %49, %51 : vector<16x512xf32>
    %53 = arith.truncf %52 : vector<16x512xf32> to vector<16x512xbf16>
    %c64 = arith.constant 64 : index
    %c0_24 = arith.constant 0 : index
    %54 = vector.load %arg13[%c64, %c0_24] : memref<432x512xbf16, #tpu.memory_space<vmem>>, vector<16x512xbf16>
    tpu.vector_store %arg13[%c64, %c0_24], %53 {strides = array<i32>} : memref<432x512xbf16, #tpu.memory_space<vmem>>, vector<16x512xbf16>,
    %c63_i32 = arith.constant 63 : i32
    %55 = tpu.dynamic_rotate %24 by %c63_i32 dim 1 : vector<16x512xf32>, i32 -> vector<16x512xf32>
    %c5 = arith.constant 5 : index
    %c0_25 = arith.constant 0 : index
    %56 = vector.load %arg11[%c5, %c0_25] : memref<27x512xf32, #tpu.memory_space<vmem>>, vector<1x512xf32>
    %57 = vector.broadcast %56 : vector<1x512xf32> to vector<16x512xf32>
    %58 = arith.mulf %55, %57 : vector<16x512xf32>
    %59 = arith.truncf %58 : vector<16x512xf32> to vector<16x512xbf16>
    %c80 = arith.constant 80 : index
    %c0_26 = arith.constant 0 : index
    %60 = vector.load %arg13[%c80, %c0_26] : memref<432x512xbf16, #tpu.memory_space<vmem>>, vector<16x512xbf16>
    tpu.vector_store %arg13[%c80, %c0_26], %59 {strides = array<i32>} : memref<432x512xbf16, #tpu.memory_space<vmem>>, vector<16x512xbf16>,
    %c57_i32 = arith.constant 57 : i32
    %61 = tpu.dynamic_rotate %24 by %c57_i32 dim 1 : vector<16x512xf32>, i32 -> vector<16x512xf32>
    %c6 = arith.constant 6 : index
    %c0_27 = arith.constant 0 : index
    %62 = vector.load %arg11[%c6, %c0_27] : memref<27x512xf32, #tpu.memory_space<vmem>>, vector<1x512xf32>
    %63 = vector.broadcast %62 : vector<1x512xf32> to vector<16x512xf32>
    %64 = arith.mulf %61, %63 : vector<16x512xf32>
    %65 = arith.truncf %64 : vector<16x512xf32> to vector<16x512xbf16>
    %c96 = arith.constant 96 : index
    %c0_28 = arith.constant 0 : index
    %66 = vector.load %arg13[%c96, %c0_28] : memref<432x512xbf16, #tpu.memory_space<vmem>>, vector<16x512xbf16>
    tpu.vector_store %arg13[%c96, %c0_28], %65 {strides = array<i32>} : memref<432x512xbf16, #tpu.memory_space<vmem>>, vector<16x512xbf16>,
    %c56_i32 = arith.constant 56 : i32
    %67 = tpu.dynamic_rotate %24 by %c56_i32 dim 1 : vector<16x512xf32>, i32 -> vector<16x512xf32>
    %c7 = arith.constant 7 : index
    %c0_29 = arith.constant 0 : index
    %68 = vector.load %arg11[%c7, %c0_29] : memref<27x512xf32, #tpu.memory_space<vmem>>, vector<1x512xf32>
    %69 = vector.broadcast %68 : vector<1x512xf32> to vector<16x512xf32>
    %70 = arith.mulf %67, %69 : vector<16x512xf32>
    %71 = arith.truncf %70 : vector<16x512xf32> to vector<16x512xbf16>
    %c112 = arith.constant 112 : index
    %c0_30 = arith.constant 0 : index
    %72 = vector.load %arg13[%c112, %c0_30] : memref<432x512xbf16, #tpu.memory_space<vmem>>, vector<16x512xbf16>
    tpu.vector_store %arg13[%c112, %c0_30], %71 {strides = array<i32>} : memref<432x512xbf16, #tpu.memory_space<vmem>>, vector<16x512xbf16>,
    %c55_i32 = arith.constant 55 : i32
    %73 = tpu.dynamic_rotate %24 by %c55_i32 dim 1 : vector<16x512xf32>, i32 -> vector<16x512xf32>
    %c8 = arith.constant 8 : index
    %c0_31 = arith.constant 0 : index
    %74 = vector.load %arg11[%c8, %c0_31] : memref<27x512xf32, #tpu.memory_space<vmem>>, vector<1x512xf32>
    %75 = vector.broadcast %74 : vector<1x512xf32> to vector<16x512xf32>
    %76 = arith.mulf %73, %75 : vector<16x512xf32>
    %77 = arith.truncf %76 : vector<16x512xf32> to vector<16x512xbf16>
    %c128 = arith.constant 128 : index
    %c0_32 = arith.constant 0 : index
    %78 = vector.load %arg13[%c128, %c0_32] : memref<432x512xbf16, #tpu.memory_space<vmem>>, vector<16x512xbf16>
    tpu.vector_store %arg13[%c128, %c0_32], %77 {strides = array<i32>} : memref<432x512xbf16, #tpu.memory_space<vmem>>, vector<16x512xbf16>,
    %c9_i32 = arith.constant 9 : i32
    %79 = tpu.dynamic_rotate %24 by %c9_i32 dim 1 : vector<16x512xf32>, i32 -> vector<16x512xf32>
    %c9 = arith.constant 9 : index
    %c0_33 = arith.constant 0 : index
    %80 = vector.load %arg11[%c9, %c0_33] : memref<27x512xf32, #tpu.memory_space<vmem>>, vector<1x512xf32>
    %81 = vector.broadcast %80 : vector<1x512xf32> to vector<16x512xf32>
    %82 = arith.mulf %79, %81 : vector<16x512xf32>
    %83 = arith.truncf %82 : vector<16x512xf32> to vector<16x512xbf16>
    %c144 = arith.constant 144 : index
    %c0_34 = arith.constant 0 : index
    %84 = vector.load %arg13[%c144, %c0_34] : memref<432x512xbf16, #tpu.memory_space<vmem>>, vector<16x512xbf16>
    tpu.vector_store %arg13[%c144, %c0_34], %83 {strides = array<i32>} : memref<432x512xbf16, #tpu.memory_space<vmem>>, vector<16x512xbf16>,
    %c8_i32 = arith.constant 8 : i32
    %85 = tpu.dynamic_rotate %24 by %c8_i32 dim 1 : vector<16x512xf32>, i32 -> vector<16x512xf32>
    %c10 = arith.constant 10 : index
    %c0_35 = arith.constant 0 : index
    %86 = vector.load %arg11[%c10, %c0_35] : memref<27x512xf32, #tpu.memory_space<vmem>>, vector<1x512xf32>
    %87 = vector.broadcast %86 : vector<1x512xf32> to vector<16x512xf32>
    %88 = arith.mulf %85, %87 : vector<16x512xf32>
    %89 = arith.truncf %88 : vector<16x512xf32> to vector<16x512xbf16>
    %c160 = arith.constant 160 : index
    %c0_36 = arith.constant 0 : index
    %90 = vector.load %arg13[%c160, %c0_36] : memref<432x512xbf16, #tpu.memory_space<vmem>>, vector<16x512xbf16>
    tpu.vector_store %arg13[%c160, %c0_36], %89 {strides = array<i32>} : memref<432x512xbf16, #tpu.memory_space<vmem>>, vector<16x512xbf16>,
    %c7_i32 = arith.constant 7 : i32
    %91 = tpu.dynamic_rotate %24 by %c7_i32 dim 1 : vector<16x512xf32>, i32 -> vector<16x512xf32>
    %c11 = arith.constant 11 : index
    %c0_37 = arith.constant 0 : index
    %92 = vector.load %arg11[%c11, %c0_37] : memref<27x512xf32, #tpu.memory_space<vmem>>, vector<1x512xf32>
    %93 = vector.broadcast %92 : vector<1x512xf32> to vector<16x512xf32>
    %94 = arith.mulf %91, %93 : vector<16x512xf32>
    %95 = arith.truncf %94 : vector<16x512xf32> to vector<16x512xbf16>
    %c176 = arith.constant 176 : index
    %c0_38 = arith.constant 0 : index
    %96 = vector.load %arg13[%c176, %c0_38] : memref<432x512xbf16, #tpu.memory_space<vmem>>, vector<16x512xbf16>
    tpu.vector_store %arg13[%c176, %c0_38], %95 {strides = array<i32>} : memref<432x512xbf16, #tpu.memory_space<vmem>>, vector<16x512xbf16>,
    %c1_i32 = arith.constant 1 : i32
    %97 = tpu.dynamic_rotate %24 by %c1_i32 dim 1 : vector<16x512xf32>, i32 -> vector<16x512xf32>
    %c12 = arith.constant 12 : index
    %c0_39 = arith.constant 0 : index
    %98 = vector.load %arg11[%c12, %c0_39] : memref<27x512xf32, #tpu.memory_space<vmem>>, vector<1x512xf32>
    %99 = vector.broadcast %98 : vector<1x512xf32> to vector<16x512xf32>
    %100 = arith.mulf %97, %99 : vector<16x512xf32>
    %101 = arith.truncf %100 : vector<16x512xf32> to vector<16x512xbf16>
    %c192 = arith.constant 192 : index
    %c0_40 = arith.constant 0 : index
    %102 = vector.load %arg13[%c192, %c0_40] : memref<432x512xbf16, #tpu.memory_space<vmem>>, vector<16x512xbf16>
    tpu.vector_store %arg13[%c192, %c0_40], %101 {strides = array<i32>} : memref<432x512xbf16, #tpu.memory_space<vmem>>, vector<16x512xbf16>,
    %c13 = arith.constant 13 : index
    %c0_41 = arith.constant 0 : index
    %103 = vector.load %arg11[%c13, %c0_41] : memref<27x512xf32, #tpu.memory_space<vmem>>, vector<1x512xf32>
    %104 = vector.broadcast %103 : vector<1x512xf32> to vector<16x512xf32>
    %105 = arith.mulf %24, %104 : vector<16x512xf32>
    %106 = arith.truncf %105 : vector<16x512xf32> to vector<16x512xbf16>
    %c208 = arith.constant 208 : index
    %c0_42 = arith.constant 0 : index
    %107 = vector.load %arg13[%c208, %c0_42] : memref<432x512xbf16, #tpu.memory_space<vmem>>, vector<16x512xbf16>
    tpu.vector_store %arg13[%c208, %c0_42], %106 {strides = array<i32>} : memref<432x512xbf16, #tpu.memory_space<vmem>>, vector<16x512xbf16>,
    %c511_i32 = arith.constant 511 : i32
    %108 = tpu.dynamic_rotate %24 by %c511_i32 dim 1 : vector<16x512xf32>, i32 -> vector<16x512xf32>
    %c14 = arith.constant 14 : index
    %c0_43 = arith.constant 0 : index
    %109 = vector.load %arg11[%c14, %c0_43] : memref<27x512xf32, #tpu.memory_space<vmem>>, vector<1x512xf32>
    %110 = vector.broadcast %109 : vector<1x512xf32> to vector<16x512xf32>
    %111 = arith.mulf %108, %110 : vector<16x512xf32>
    %112 = arith.truncf %111 : vector<16x512xf32> to vector<16x512xbf16>
    %c224 = arith.constant 224 : index
    %c0_44 = arith.constant 0 : index
    %113 = vector.load %arg13[%c224, %c0_44] : memref<432x512xbf16, #tpu.memory_space<vmem>>, vector<16x512xbf16>
    tpu.vector_store %arg13[%c224, %c0_44], %112 {strides = array<i32>} : memref<432x512xbf16, #tpu.memory_space<vmem>>, vector<16x512xbf16>,
    %c505_i32 = arith.constant 505 : i32
    %114 = tpu.dynamic_rotate %24 by %c505_i32 dim 1 : vector<16x512xf32>, i32 -> vector<16x512xf32>
    %c15 = arith.constant 15 : index
    %c0_45 = arith.constant 0 : index
    %115 = vector.load %arg11[%c15, %c0_45] : memref<27x512xf32, #tpu.memory_space<vmem>>, vector<1x512xf32>
    %116 = vector.broadcast %115 : vector<1x512xf32> to vector<16x512xf32>
    %117 = arith.mulf %114, %116 : vector<16x512xf32>
    %118 = arith.truncf %117 : vector<16x512xf32> to vector<16x512xbf16>
    %c240 = arith.constant 240 : index
    %c0_46 = arith.constant 0 : index
    %119 = vector.load %arg13[%c240, %c0_46] : memref<432x512xbf16, #tpu.memory_space<vmem>>, vector<16x512xbf16>
    tpu.vector_store %arg13[%c240, %c0_46], %118 {strides = array<i32>} : memref<432x512xbf16, #tpu.memory_space<vmem>>, vector<16x512xbf16>,
    %c504_i32 = arith.constant 504 : i32
    %120 = tpu.dynamic_rotate %24 by %c504_i32 dim 1 : vector<16x512xf32>, i32 -> vector<16x512xf32>
    %c16_47 = arith.constant 16 : index
    %c0_48 = arith.constant 0 : index
    %121 = vector.load %arg11[%c16_47, %c0_48] : memref<27x512xf32, #tpu.memory_space<vmem>>, vector<1x512xf32>
    %122 = vector.broadcast %121 : vector<1x512xf32> to vector<16x512xf32>
    %123 = arith.mulf %120, %122 : vector<16x512xf32>
    %124 = arith.truncf %123 : vector<16x512xf32> to vector<16x512xbf16>
    %c256 = arith.constant 256 : index
    %c0_49 = arith.constant 0 : index
    %125 = vector.load %arg13[%c256, %c0_49] : memref<432x512xbf16, #tpu.memory_space<vmem>>, vector<16x512xbf16>
    tpu.vector_store %arg13[%c256, %c0_49], %124 {strides = array<i32>} : memref<432x512xbf16, #tpu.memory_space<vmem>>, vector<16x512xbf16>,
    %c503_i32 = arith.constant 503 : i32
    %126 = tpu.dynamic_rotate %24 by %c503_i32 dim 1 : vector<16x512xf32>, i32 -> vector<16x512xf32>
    %c17 = arith.constant 17 : index
    %c0_50 = arith.constant 0 : index
    %127 = vector.load %arg11[%c17, %c0_50] : memref<27x512xf32, #tpu.memory_space<vmem>>, vector<1x512xf32>
    %128 = vector.broadcast %127 : vector<1x512xf32> to vector<16x512xf32>
    %129 = arith.mulf %126, %128 : vector<16x512xf32>
    %130 = arith.truncf %129 : vector<16x512xf32> to vector<16x512xbf16>
    %c272 = arith.constant 272 : index
    %c0_51 = arith.constant 0 : index
    %131 = vector.load %arg13[%c272, %c0_51] : memref<432x512xbf16, #tpu.memory_space<vmem>>, vector<16x512xbf16>
    tpu.vector_store %arg13[%c272, %c0_51], %130 {strides = array<i32>} : memref<432x512xbf16, #tpu.memory_space<vmem>>, vector<16x512xbf16>,
    %c457_i32 = arith.constant 457 : i32
    %132 = tpu.dynamic_rotate %24 by %c457_i32 dim 1 : vector<16x512xf32>, i32 -> vector<16x512xf32>
    %c18 = arith.constant 18 : index
    %c0_52 = arith.constant 0 : index
    %133 = vector.load %arg11[%c18, %c0_52] : memref<27x512xf32, #tpu.memory_space<vmem>>, vector<1x512xf32>
    %134 = vector.broadcast %133 : vector<1x512xf32> to vector<16x512xf32>
    %135 = arith.mulf %132, %134 : vector<16x512xf32>
    %136 = arith.truncf %135 : vector<16x512xf32> to vector<16x512xbf16>
    %c288 = arith.constant 288 : index
    %c0_53 = arith.constant 0 : index
    %137 = vector.load %arg13[%c288, %c0_53] : memref<432x512xbf16, #tpu.memory_space<vmem>>, vector<16x512xbf16>
    tpu.vector_store %arg13[%c288, %c0_53], %136 {strides = array<i32>} : memref<432x512xbf16, #tpu.memory_space<vmem>>, vector<16x512xbf16>,
    %c456_i32 = arith.constant 456 : i32
    %138 = tpu.dynamic_rotate %24 by %c456_i32 dim 1 : vector<16x512xf32>, i32 -> vector<16x512xf32>
    %c19 = arith.constant 19 : index
    %c0_54 = arith.constant 0 : index
    %139 = vector.load %arg11[%c19, %c0_54] : memref<27x512xf32, #tpu.memory_space<vmem>>, vector<1x512xf32>
    %140 = vector.broadcast %139 : vector<1x512xf32> to vector<16x512xf32>
    %141 = arith.mulf %138, %140 : vector<16x512xf32>
    %142 = arith.truncf %141 : vector<16x512xf32> to vector<16x512xbf16>
    %c304 = arith.constant 304 : index
    %c0_55 = arith.constant 0 : index
    %143 = vector.load %arg13[%c304, %c0_55] : memref<432x512xbf16, #tpu.memory_space<vmem>>, vector<16x512xbf16>
    tpu.vector_store %arg13[%c304, %c0_55], %142 {strides = array<i32>} : memref<432x512xbf16, #tpu.memory_space<vmem>>, vector<16x512xbf16>,
    %c455_i32 = arith.constant 455 : i32
    %144 = tpu.dynamic_rotate %24 by %c455_i32 dim 1 : vector<16x512xf32>, i32 -> vector<16x512xf32>
    %c20 = arith.constant 20 : index
    %c0_56 = arith.constant 0 : index
    %145 = vector.load %arg11[%c20, %c0_56] : memref<27x512xf32, #tpu.memory_space<vmem>>, vector<1x512xf32>
    %146 = vector.broadcast %145 : vector<1x512xf32> to vector<16x512xf32>
    %147 = arith.mulf %144, %146 : vector<16x512xf32>
    %148 = arith.truncf %147 : vector<16x512xf32> to vector<16x512xbf16>
    %c320 = arith.constant 320 : index
    %c0_57 = arith.constant 0 : index
    %149 = vector.load %arg13[%c320, %c0_57] : memref<432x512xbf16, #tpu.memory_space<vmem>>, vector<16x512xbf16>
    tpu.vector_store %arg13[%c320, %c0_57], %148 {strides = array<i32>} : memref<432x512xbf16, #tpu.memory_space<vmem>>, vector<16x512xbf16>,
    %c449_i32 = arith.constant 449 : i32
    %150 = tpu.dynamic_rotate %24 by %c449_i32 dim 1 : vector<16x512xf32>, i32 -> vector<16x512xf32>
    %c21 = arith.constant 21 : index
    %c0_58 = arith.constant 0 : index
    %151 = vector.load %arg11[%c21, %c0_58] : memref<27x512xf32, #tpu.memory_space<vmem>>, vector<1x512xf32>
    %152 = vector.broadcast %151 : vector<1x512xf32> to vector<16x512xf32>
    %153 = arith.mulf %150, %152 : vector<16x512xf32>
    %154 = arith.truncf %153 : vector<16x512xf32> to vector<16x512xbf16>
    %c336 = arith.constant 336 : index
    %c0_59 = arith.constant 0 : index
    %155 = vector.load %arg13[%c336, %c0_59] : memref<432x512xbf16, #tpu.memory_space<vmem>>, vector<16x512xbf16>
    tpu.vector_store %arg13[%c336, %c0_59], %154 {strides = array<i32>} : memref<432x512xbf16, #tpu.memory_space<vmem>>, vector<16x512xbf16>,
    %c448_i32 = arith.constant 448 : i32
    %156 = tpu.dynamic_rotate %24 by %c448_i32 dim 1 : vector<16x512xf32>, i32 -> vector<16x512xf32>
    %c22 = arith.constant 22 : index
    %c0_60 = arith.constant 0 : index
    %157 = vector.load %arg11[%c22, %c0_60] : memref<27x512xf32, #tpu.memory_space<vmem>>, vector<1x512xf32>
    %158 = vector.broadcast %157 : vector<1x512xf32> to vector<16x512xf32>
    %159 = arith.mulf %156, %158 : vector<16x512xf32>
    %160 = arith.truncf %159 : vector<16x512xf32> to vector<16x512xbf16>
    %c352 = arith.constant 352 : index
    %c0_61 = arith.constant 0 : index
    %161 = vector.load %arg13[%c352, %c0_61] : memref<432x512xbf16, #tpu.memory_space<vmem>>, vector<16x512xbf16>
    tpu.vector_store %arg13[%c352, %c0_61], %160 {strides = array<i32>} : memref<432x512xbf16, #tpu.memory_space<vmem>>, vector<16x512xbf16>,
    %c447_i32 = arith.constant 447 : i32
    %162 = tpu.dynamic_rotate %24 by %c447_i32 dim 1 : vector<16x512xf32>, i32 -> vector<16x512xf32>
    %c23 = arith.constant 23 : index
    %c0_62 = arith.constant 0 : index
    %163 = vector.load %arg11[%c23, %c0_62] : memref<27x512xf32, #tpu.memory_space<vmem>>, vector<1x512xf32>
    %164 = vector.broadcast %163 : vector<1x512xf32> to vector<16x512xf32>
    %165 = arith.mulf %162, %164 : vector<16x512xf32>
    %166 = arith.truncf %165 : vector<16x512xf32> to vector<16x512xbf16>
    %c368 = arith.constant 368 : index
    %c0_63 = arith.constant 0 : index
    %167 = vector.load %arg13[%c368, %c0_63] : memref<432x512xbf16, #tpu.memory_space<vmem>>, vector<16x512xbf16>
    tpu.vector_store %arg13[%c368, %c0_63], %166 {strides = array<i32>} : memref<432x512xbf16, #tpu.memory_space<vmem>>, vector<16x512xbf16>,
    %c441_i32 = arith.constant 441 : i32
    %168 = tpu.dynamic_rotate %24 by %c441_i32 dim 1 : vector<16x512xf32>, i32 -> vector<16x512xf32>
    %c24 = arith.constant 24 : index
    %c0_64 = arith.constant 0 : index
    %169 = vector.load %arg11[%c24, %c0_64] : memref<27x512xf32, #tpu.memory_space<vmem>>, vector<1x512xf32>
    %170 = vector.broadcast %169 : vector<1x512xf32> to vector<16x512xf32>
    %171 = arith.mulf %168, %170 : vector<16x512xf32>
    %172 = arith.truncf %171 : vector<16x512xf32> to vector<16x512xbf16>
    %c384 = arith.constant 384 : index
    %c0_65 = arith.constant 0 : index
    %173 = vector.load %arg13[%c384, %c0_65] : memref<432x512xbf16, #tpu.memory_space<vmem>>, vector<16x512xbf16>
    tpu.vector_store %arg13[%c384, %c0_65], %172 {strides = array<i32>} : memref<432x512xbf16, #tpu.memory_space<vmem>>, vector<16x512xbf16>,
    %c440_i32 = arith.constant 440 : i32
    %174 = tpu.dynamic_rotate %24 by %c440_i32 dim 1 : vector<16x512xf32>, i32 -> vector<16x512xf32>
    %c25 = arith.constant 25 : index
    %c0_66 = arith.constant 0 : index
    %175 = vector.load %arg11[%c25, %c0_66] : memref<27x512xf32, #tpu.memory_space<vmem>>, vector<1x512xf32>
    %176 = vector.broadcast %175 : vector<1x512xf32> to vector<16x512xf32>
    %177 = arith.mulf %174, %176 : vector<16x512xf32>
    %178 = arith.truncf %177 : vector<16x512xf32> to vector<16x512xbf16>
    %c400 = arith.constant 400 : index
    %c0_67 = arith.constant 0 : index
    %179 = vector.load %arg13[%c400, %c0_67] : memref<432x512xbf16, #tpu.memory_space<vmem>>, vector<16x512xbf16>
    tpu.vector_store %arg13[%c400, %c0_67], %178 {strides = array<i32>} : memref<432x512xbf16, #tpu.memory_space<vmem>>, vector<16x512xbf16>,
    %c439_i32 = arith.constant 439 : i32
    %180 = tpu.dynamic_rotate %24 by %c439_i32 dim 1 : vector<16x512xf32>, i32 -> vector<16x512xf32>
    %c26 = arith.constant 26 : index
    %c0_68 = arith.constant 0 : index
    %181 = vector.load %arg11[%c26, %c0_68] : memref<27x512xf32, #tpu.memory_space<vmem>>, vector<1x512xf32>
    %182 = vector.broadcast %181 : vector<1x512xf32> to vector<16x512xf32>
    %183 = arith.mulf %180, %182 : vector<16x512xf32>
    %184 = arith.truncf %183 : vector<16x512xf32> to vector<16x512xbf16>
    %c416 = arith.constant 416 : index
    %c0_69 = arith.constant 0 : index
    %185 = vector.load %arg13[%c416, %c0_69] : memref<432x512xbf16, #tpu.memory_space<vmem>>, vector<16x512xbf16>
    tpu.vector_store %arg13[%c416, %c0_69], %184 {strides = array<i32>} : memref<432x512xbf16, #tpu.memory_space<vmem>>, vector<16x512xbf16>,
    %c0_70 = arith.constant 0 : index
    %c0_71 = arith.constant 0 : index
    %186 = vector.load %arg4[%c0_70, %c0_71] : memref<16x432xbf16, #tpu.memory_space<vmem>>, vector<16x432xbf16>
    %c0_72 = arith.constant 0 : index
    %c0_73 = arith.constant 0 : index
    %187 = vector.load %arg13[%c0_72, %c0_73] : memref<432x512xbf16, #tpu.memory_space<vmem>>, vector<432x512xbf16>
    %cst_74 = arith.constant dense<0.000000e+00> : vector<16x512xf32>
    %188 = tpu.matmul %186, %187, %cst_74 {dimension_numbers = #tpu.dot_dimension_numbers<[1], [0], [0], [1], [0, 0, 1, 1], [], []>} : vector<16x432xbf16>, vector<432x512xbf16>, vector<16x512xf32> -> vector<16x512xf32>
    %c0_75 = arith.constant 0 : index
    %c0_76 = arith.constant 0 : index
    %189 = vector.load %arg5[%c0_75, %c0_76] : memref<16x1xf32, #tpu.memory_space<vmem>>, vector<16x1xf32>
    %190 = vector.broadcast %189 : vector<16x1xf32> to vector<16x512xf32>
    %191 = arith.addf %188, %190 : vector<16x512xf32>
    %c0_77 = arith.constant 0 : index
    %c0_78 = arith.constant 0 : index
    %192 = vector.load %arg6[%c0_77, %c0_78] : memref<16x1xf32, #tpu.memory_space<vmem>>, vector<16x1xf32>
    %c0_79 = arith.constant 0 : index
    %c0_80 = arith.constant 0 : index
    %193 = vector.load %arg7[%c0_79, %c0_80] : memref<16x1xf32, #tpu.memory_space<vmem>>, vector<16x1xf32>
    %cst_81 = arith.constant dense<0.000000e+00> : vector<16xf32>
    %194 = vector.multi_reduction <add>, %191, %cst_81 [1] : vector<16x512xf32> to vector<16xf32>
    %195 = vector.shape_cast %194 : vector<16xf32> to vector<16x1xf32>
    %cst_82 = arith.constant dense<0.000000e+00> : vector<16x1xf32>
    %196 = tpu.matmul %2, %195, %cst_82 {dimension_numbers = #tpu.dot_dimension_numbers<[1], [0], [0], [1], [0, 0, 1, 1], [], []>} : vector<16x16xf32>, vector<16x1xf32>, vector<16x1xf32> -> vector<16x1xf32>
    %197 = vector.broadcast %196 : vector<16x1xf32> to vector<16x512xf32>
    %198 = arith.subf %191, %197 : vector<16x512xf32>
    %199 = arith.mulf %198, %198 : vector<16x512xf32>
    %cst_83 = arith.constant dense<0.000000e+00> : vector<16xf32>
    %200 = vector.multi_reduction <add>, %199, %cst_83 [1] : vector<16x512xf32> to vector<16xf32>
    %201 = vector.shape_cast %200 : vector<16xf32> to vector<16x1xf32>
    %cst_84 = arith.constant dense<0.000000e+00> : vector<16x1xf32>
    %202 = tpu.matmul %2, %201, %cst_84 {dimension_numbers = #tpu.dot_dimension_numbers<[1], [0], [0], [1], [0, 0, 1, 1], [], []>} : vector<16x16xf32>, vector<16x1xf32>, vector<16x1xf32> -> vector<16x1xf32>
    %cst_85 = arith.constant 9.99999974E-6 : f32
    %203 = vector.broadcast %cst_85 : f32 to vector<16x1xf32>
    %204 = arith.addf %202, %203 : vector<16x1xf32>
    %205 = math.rsqrt %204 : vector<16x1xf32>
    %206 = vector.broadcast %205 : vector<16x1xf32> to vector<16x512xf32>
    %207 = arith.mulf %198, %206 : vector<16x512xf32>
    %208 = vector.broadcast %192 : vector<16x1xf32> to vector<16x512xf32>
    %209 = arith.mulf %207, %208 : vector<16x512xf32>
    %210 = vector.broadcast %193 : vector<16x1xf32> to vector<16x512xf32>
    %211 = arith.addf %209, %210 : vector<16x512xf32>
    %cst_86 = arith.constant 0.000000e+00 : f32
    %212 = vector.broadcast %cst_86 : f32 to vector<16x512xf32>
    %213 = arith.maximumf %211, %212 : vector<16x512xf32>
    %c73_i32_87 = arith.constant 73 : i32
    %214 = tpu.dynamic_rotate %213 by %c73_i32_87 dim 1 : vector<16x512xf32>, i32 -> vector<16x512xf32>
    %c0_88 = arith.constant 0 : index
    %c0_89 = arith.constant 0 : index
    %215 = vector.load %arg11[%c0_88, %c0_89] : memref<27x512xf32, #tpu.memory_space<vmem>>, vector<1x512xf32>
    %216 = vector.broadcast %215 : vector<1x512xf32> to vector<16x512xf32>
    %217 = arith.mulf %214, %216 : vector<16x512xf32>
    %218 = arith.truncf %217 : vector<16x512xf32> to vector<16x512xbf16>
    %c0_90 = arith.constant 0 : index
    %c0_91 = arith.constant 0 : index
    %219 = vector.load %arg13[%c0_90, %c0_91] : memref<432x512xbf16, #tpu.memory_space<vmem>>, vector<16x512xbf16>
    tpu.vector_store %arg13[%c0_90, %c0_91], %218 {strides = array<i32>} : memref<432x512xbf16, #tpu.memory_space<vmem>>, vector<16x512xbf16>,
    %c72_i32_92 = arith.constant 72 : i32
    %220 = tpu.dynamic_rotate %213 by %c72_i32_92 dim 1 : vector<16x512xf32>, i32 -> vector<16x512xf32>
    %c1_93 = arith.constant 1 : index
    %c0_94 = arith.constant 0 : index
    %221 = vector.load %arg11[%c1_93, %c0_94] : memref<27x512xf32, #tpu.memory_space<vmem>>, vector<1x512xf32>
    %222 = vector.broadcast %221 : vector<1x512xf32> to vector<16x512xf32>
    %223 = arith.mulf %220, %222 : vector<16x512xf32>
    %224 = arith.truncf %223 : vector<16x512xf32> to vector<16x512xbf16>
    %c16_95 = arith.constant 16 : index
    %c0_96 = arith.constant 0 : index
    %225 = vector.load %arg13[%c16_95, %c0_96] : memref<432x512xbf16, #tpu.memory_space<vmem>>, vector<16x512xbf16>
    tpu.vector_store %arg13[%c16_95, %c0_96], %224 {strides = array<i32>} : memref<432x512xbf16, #tpu.memory_space<vmem>>, vector<16x512xbf16>,
    %c71_i32_97 = arith.constant 71 : i32
    %226 = tpu.dynamic_rotate %213 by %c71_i32_97 dim 1 : vector<16x512xf32>, i32 -> vector<16x512xf32>
    %c2_98 = arith.constant 2 : index
    %c0_99 = arith.constant 0 : index
    %227 = vector.load %arg11[%c2_98, %c0_99] : memref<27x512xf32, #tpu.memory_space<vmem>>, vector<1x512xf32>
    %228 = vector.broadcast %227 : vector<1x512xf32> to vector<16x512xf32>
    %229 = arith.mulf %226, %228 : vector<16x512xf32>
    %230 = arith.truncf %229 : vector<16x512xf32> to vector<16x512xbf16>
    %c32_100 = arith.constant 32 : index
    %c0_101 = arith.constant 0 : index
    %231 = vector.load %arg13[%c32_100, %c0_101] : memref<432x512xbf16, #tpu.memory_space<vmem>>, vector<16x512xbf16>
    tpu.vector_store %arg13[%c32_100, %c0_101], %230 {strides = array<i32>} : memref<432x512xbf16, #tpu.memory_space<vmem>>, vector<16x512xbf16>,
    %c65_i32_102 = arith.constant 65 : i32
    %232 = tpu.dynamic_rotate %213 by %c65_i32_102 dim 1 : vector<16x512xf32>, i32 -> vector<16x512xf32>
    %c3_103 = arith.constant 3 : index
    %c0_104 = arith.constant 0 : index
    %233 = vector.load %arg11[%c3_103, %c0_104] : memref<27x512xf32, #tpu.memory_space<vmem>>, vector<1x512xf32>
    %234 = vector.broadcast %233 : vector<1x512xf32> to vector<16x512xf32>
    %235 = arith.mulf %232, %234 : vector<16x512xf32>
    %236 = arith.truncf %235 : vector<16x512xf32> to vector<16x512xbf16>
    %c48_105 = arith.constant 48 : index
    %c0_106 = arith.constant 0 : index
    %237 = vector.load %arg13[%c48_105, %c0_106] : memref<432x512xbf16, #tpu.memory_space<vmem>>, vector<16x512xbf16>
    tpu.vector_store %arg13[%c48_105, %c0_106], %236 {strides = array<i32>} : memref<432x512xbf16, #tpu.memory_space<vmem>>, vector<16x512xbf16>,
    %c64_i32_107 = arith.constant 64 : i32
    %238 = tpu.dynamic_rotate %213 by %c64_i32_107 dim 1 : vector<16x512xf32>, i32 -> vector<16x512xf32>
    %c4_108 = arith.constant 4 : index
    %c0_109 = arith.constant 0 : index
    %239 = vector.load %arg11[%c4_108, %c0_109] : memref<27x512xf32, #tpu.memory_space<vmem>>, vector<1x512xf32>
    %240 = vector.broadcast %239 : vector<1x512xf32> to vector<16x512xf32>
    %241 = arith.mulf %238, %240 : vector<16x512xf32>
    %242 = arith.truncf %241 : vector<16x512xf32> to vector<16x512xbf16>
    %c64_110 = arith.constant 64 : index
    %c0_111 = arith.constant 0 : index
    %243 = vector.load %arg13[%c64_110, %c0_111] : memref<432x512xbf16, #tpu.memory_space<vmem>>, vector<16x512xbf16>
    tpu.vector_store %arg13[%c64_110, %c0_111], %242 {strides = array<i32>} : memref<432x512xbf16, #tpu.memory_space<vmem>>, vector<16x512xbf16>,
    %c63_i32_112 = arith.constant 63 : i32
    %244 = tpu.dynamic_rotate %213 by %c63_i32_112 dim 1 : vector<16x512xf32>, i32 -> vector<16x512xf32>
    %c5_113 = arith.constant 5 : index
    %c0_114 = arith.constant 0 : index
    %245 = vector.load %arg11[%c5_113, %c0_114] : memref<27x512xf32, #tpu.memory_space<vmem>>, vector<1x512xf32>
    %246 = vector.broadcast %245 : vector<1x512xf32> to vector<16x512xf32>
    %247 = arith.mulf %244, %246 : vector<16x512xf32>
    %248 = arith.truncf %247 : vector<16x512xf32> to vector<16x512xbf16>
    %c80_115 = arith.constant 80 : index
    %c0_116 = arith.constant 0 : index
    %249 = vector.load %arg13[%c80_115, %c0_116] : memref<432x512xbf16, #tpu.memory_space<vmem>>, vector<16x512xbf16>
    tpu.vector_store %arg13[%c80_115, %c0_116], %248 {strides = array<i32>} : memref<432x512xbf16, #tpu.memory_space<vmem>>, vector<16x512xbf16>,
    %c57_i32_117 = arith.constant 57 : i32
    %250 = tpu.dynamic_rotate %213 by %c57_i32_117 dim 1 : vector<16x512xf32>, i32 -> vector<16x512xf32>
    %c6_118 = arith.constant 6 : index
    %c0_119 = arith.constant 0 : index
    %251 = vector.load %arg11[%c6_118, %c0_119] : memref<27x512xf32, #tpu.memory_space<vmem>>, vector<1x512xf32>
    %252 = vector.broadcast %251 : vector<1x512xf32> to vector<16x512xf32>
    %253 = arith.mulf %250, %252 : vector<16x512xf32>
    %254 = arith.truncf %253 : vector<16x512xf32> to vector<16x512xbf16>
    %c96_120 = arith.constant 96 : index
    %c0_121 = arith.constant 0 : index
    %255 = vector.load %arg13[%c96_120, %c0_121] : memref<432x512xbf16, #tpu.memory_space<vmem>>, vector<16x512xbf16>
    tpu.vector_store %arg13[%c96_120, %c0_121], %254 {strides = array<i32>} : memref<432x512xbf16, #tpu.memory_space<vmem>>, vector<16x512xbf16>,
    %c56_i32_122 = arith.constant 56 : i32
    %256 = tpu.dynamic_rotate %213 by %c56_i32_122 dim 1 : vector<16x512xf32>, i32 -> vector<16x512xf32>
    %c7_123 = arith.constant 7 : index
    %c0_124 = arith.constant 0 : index
    %257 = vector.load %arg11[%c7_123, %c0_124] : memref<27x512xf32, #tpu.memory_space<vmem>>, vector<1x512xf32>
    %258 = vector.broadcast %257 : vector<1x512xf32> to vector<16x512xf32>
    %259 = arith.mulf %256, %258 : vector<16x512xf32>
    %260 = arith.truncf %259 : vector<16x512xf32> to vector<16x512xbf16>
    %c112_125 = arith.constant 112 : index
    %c0_126 = arith.constant 0 : index
    %261 = vector.load %arg13[%c112_125, %c0_126] : memref<432x512xbf16, #tpu.memory_space<vmem>>, vector<16x512xbf16>
    tpu.vector_store %arg13[%c112_125, %c0_126], %260 {strides = array<i32>} : memref<432x512xbf16, #tpu.memory_space<vmem>>, vector<16x512xbf16>,
    %c55_i32_127 = arith.constant 55 : i32
    %262 = tpu.dynamic_rotate %213 by %c55_i32_127 dim 1 : vector<16x512xf32>, i32 -> vector<16x512xf32>
    %c8_128 = arith.constant 8 : index
    %c0_129 = arith.constant 0 : index
    %263 = vector.load %arg11[%c8_128, %c0_129] : memref<27x512xf32, #tpu.memory_space<vmem>>, vector<1x512xf32>
    %264 = vector.broadcast %263 : vector<1x512xf32> to vector<16x512xf32>
    %265 = arith.mulf %262, %264 : vector<16x512xf32>
    %266 = arith.truncf %265 : vector<16x512xf32> to vector<16x512xbf16>
    %c128_130 = arith.constant 128 : index
    %c0_131 = arith.constant 0 : index
    %267 = vector.load %arg13[%c128_130, %c0_131] : memref<432x512xbf16, #tpu.memory_space<vmem>>, vector<16x512xbf16>
    tpu.vector_store %arg13[%c128_130, %c0_131], %266 {strides = array<i32>} : memref<432x512xbf16, #tpu.memory_space<vmem>>, vector<16x512xbf16>,
    %c9_i32_132 = arith.constant 9 : i32
    %268 = tpu.dynamic_rotate %213 by %c9_i32_132 dim 1 : vector<16x512xf32>, i32 -> vector<16x512xf32>
    %c9_133 = arith.constant 9 : index
    %c0_134 = arith.constant 0 : index
    %269 = vector.load %arg11[%c9_133, %c0_134] : memref<27x512xf32, #tpu.memory_space<vmem>>, vector<1x512xf32>
    %270 = vector.broadcast %269 : vector<1x512xf32> to vector<16x512xf32>
    %271 = arith.mulf %268, %270 : vector<16x512xf32>
    %272 = arith.truncf %271 : vector<16x512xf32> to vector<16x512xbf16>
    %c144_135 = arith.constant 144 : index
    %c0_136 = arith.constant 0 : index
    %273 = vector.load %arg13[%c144_135, %c0_136] : memref<432x512xbf16, #tpu.memory_space<vmem>>, vector<16x512xbf16>
    tpu.vector_store %arg13[%c144_135, %c0_136], %272 {strides = array<i32>} : memref<432x512xbf16, #tpu.memory_space<vmem>>, vector<16x512xbf16>,
    %c8_i32_137 = arith.constant 8 : i32
    %274 = tpu.dynamic_rotate %213 by %c8_i32_137 dim 1 : vector<16x512xf32>, i32 -> vector<16x512xf32>
    %c10_138 = arith.constant 10 : index
    %c0_139 = arith.constant 0 : index
    %275 = vector.load %arg11[%c10_138, %c0_139] : memref<27x512xf32, #tpu.memory_space<vmem>>, vector<1x512xf32>
    %276 = vector.broadcast %275 : vector<1x512xf32> to vector<16x512xf32>
    %277 = arith.mulf %274, %276 : vector<16x512xf32>
    %278 = arith.truncf %277 : vector<16x512xf32> to vector<16x512xbf16>
    %c160_140 = arith.constant 160 : index
    %c0_141 = arith.constant 0 : index
    %279 = vector.load %arg13[%c160_140, %c0_141] : memref<432x512xbf16, #tpu.memory_space<vmem>>, vector<16x512xbf16>
    tpu.vector_store %arg13[%c160_140, %c0_141], %278 {strides = array<i32>} : memref<432x512xbf16, #tpu.memory_space<vmem>>, vector<16x512xbf16>,
    %c7_i32_142 = arith.constant 7 : i32
    %280 = tpu.dynamic_rotate %213 by %c7_i32_142 dim 1 : vector<16x512xf32>, i32 -> vector<16x512xf32>
    %c11_143 = arith.constant 11 : index
    %c0_144 = arith.constant 0 : index
    %281 = vector.load %arg11[%c11_143, %c0_144] : memref<27x512xf32, #tpu.memory_space<vmem>>, vector<1x512xf32>
    %282 = vector.broadcast %281 : vector<1x512xf32> to vector<16x512xf32>
    %283 = arith.mulf %280, %282 : vector<16x512xf32>
    %284 = arith.truncf %283 : vector<16x512xf32> to vector<16x512xbf16>
    %c176_145 = arith.constant 176 : index
    %c0_146 = arith.constant 0 : index
    %285 = vector.load %arg13[%c176_145, %c0_146] : memref<432x512xbf16, #tpu.memory_space<vmem>>, vector<16x512xbf16>
    tpu.vector_store %arg13[%c176_145, %c0_146], %284 {strides = array<i32>} : memref<432x512xbf16, #tpu.memory_space<vmem>>, vector<16x512xbf16>,
    %c1_i32_147 = arith.constant 1 : i32
    %286 = tpu.dynamic_rotate %213 by %c1_i32_147 dim 1 : vector<16x512xf32>, i32 -> vector<16x512xf32>
    %c12_148 = arith.constant 12 : index
    %c0_149 = arith.constant 0 : index
    %287 = vector.load %arg11[%c12_148, %c0_149] : memref<27x512xf32, #tpu.memory_space<vmem>>, vector<1x512xf32>
    %288 = vector.broadcast %287 : vector<1x512xf32> to vector<16x512xf32>
    %289 = arith.mulf %286, %288 : vector<16x512xf32>
    %290 = arith.truncf %289 : vector<16x512xf32> to vector<16x512xbf16>
    %c192_150 = arith.constant 192 : index
    %c0_151 = arith.constant 0 : index
    %291 = vector.load %arg13[%c192_150, %c0_151] : memref<432x512xbf16, #tpu.memory_space<vmem>>, vector<16x512xbf16>
    tpu.vector_store %arg13[%c192_150, %c0_151], %290 {strides = array<i32>} : memref<432x512xbf16, #tpu.memory_space<vmem>>, vector<16x512xbf16>,
    %c13_152 = arith.constant 13 : index
    %c0_153 = arith.constant 0 : index
    %292 = vector.load %arg11[%c13_152, %c0_153] : memref<27x512xf32, #tpu.memory_space<vmem>>, vector<1x512xf32>
    %293 = vector.broadcast %292 : vector<1x512xf32> to vector<16x512xf32>
    %294 = arith.mulf %213, %293 : vector<16x512xf32>
    %295 = arith.truncf %294 : vector<16x512xf32> to vector<16x512xbf16>
    %c208_154 = arith.constant 208 : index
    %c0_155 = arith.constant 0 : index
    %296 = vector.load %arg13[%c208_154, %c0_155] : memref<432x512xbf16, #tpu.memory_space<vmem>>, vector<16x512xbf16>
    tpu.vector_store %arg13[%c208_154, %c0_155], %295 {strides = array<i32>} : memref<432x512xbf16, #tpu.memory_space<vmem>>, vector<16x512xbf16>,
    %c511_i32_156 = arith.constant 511 : i32
    %297 = tpu.dynamic_rotate %213 by %c511_i32_156 dim 1 : vector<16x512xf32>, i32 -> vector<16x512xf32>
    %c14_157 = arith.constant 14 : index
    %c0_158 = arith.constant 0 : index
    %298 = vector.load %arg11[%c14_157, %c0_158] : memref<27x512xf32, #tpu.memory_space<vmem>>, vector<1x512xf32>
    %299 = vector.broadcast %298 : vector<1x512xf32> to vector<16x512xf32>
    %300 = arith.mulf %297, %299 : vector<16x512xf32>
    %301 = arith.truncf %300 : vector<16x512xf32> to vector<16x512xbf16>
    %c224_159 = arith.constant 224 : index
    %c0_160 = arith.constant 0 : index
    %302 = vector.load %arg13[%c224_159, %c0_160] : memref<432x512xbf16, #tpu.memory_space<vmem>>, vector<16x512xbf16>
    tpu.vector_store %arg13[%c224_159, %c0_160], %301 {strides = array<i32>} : memref<432x512xbf16, #tpu.memory_space<vmem>>, vector<16x512xbf16>,
    %c505_i32_161 = arith.constant 505 : i32
    %303 = tpu.dynamic_rotate %213 by %c505_i32_161 dim 1 : vector<16x512xf32>, i32 -> vector<16x512xf32>
    %c15_162 = arith.constant 15 : index
    %c0_163 = arith.constant 0 : index
    %304 = vector.load %arg11[%c15_162, %c0_163] : memref<27x512xf32, #tpu.memory_space<vmem>>, vector<1x512xf32>
    %305 = vector.broadcast %304 : vector<1x512xf32> to vector<16x512xf32>
    %306 = arith.mulf %303, %305 : vector<16x512xf32>
    %307 = arith.truncf %306 : vector<16x512xf32> to vector<16x512xbf16>
    %c240_164 = arith.constant 240 : index
    %c0_165 = arith.constant 0 : index
    %308 = vector.load %arg13[%c240_164, %c0_165] : memref<432x512xbf16, #tpu.memory_space<vmem>>, vector<16x512xbf16>
    tpu.vector_store %arg13[%c240_164, %c0_165], %307 {strides = array<i32>} : memref<432x512xbf16, #tpu.memory_space<vmem>>, vector<16x512xbf16>,
    %c504_i32_166 = arith.constant 504 : i32
    %309 = tpu.dynamic_rotate %213 by %c504_i32_166 dim 1 : vector<16x512xf32>, i32 -> vector<16x512xf32>
    %c16_167 = arith.constant 16 : index
    %c0_168 = arith.constant 0 : index
    %310 = vector.load %arg11[%c16_167, %c0_168] : memref<27x512xf32, #tpu.memory_space<vmem>>, vector<1x512xf32>
    %311 = vector.broadcast %310 : vector<1x512xf32> to vector<16x512xf32>
    %312 = arith.mulf %309, %311 : vector<16x512xf32>
    %313 = arith.truncf %312 : vector<16x512xf32> to vector<16x512xbf16>
    %c256_169 = arith.constant 256 : index
    %c0_170 = arith.constant 0 : index
    %314 = vector.load %arg13[%c256_169, %c0_170] : memref<432x512xbf16, #tpu.memory_space<vmem>>, vector<16x512xbf16>
    tpu.vector_store %arg13[%c256_169, %c0_170], %313 {strides = array<i32>} : memref<432x512xbf16, #tpu.memory_space<vmem>>, vector<16x512xbf16>,
    %c503_i32_171 = arith.constant 503 : i32
    %315 = tpu.dynamic_rotate %213 by %c503_i32_171 dim 1 : vector<16x512xf32>, i32 -> vector<16x512xf32>
    %c17_172 = arith.constant 17 : index
    %c0_173 = arith.constant 0 : index
    %316 = vector.load %arg11[%c17_172, %c0_173] : memref<27x512xf32, #tpu.memory_space<vmem>>, vector<1x512xf32>
    %317 = vector.broadcast %316 : vector<1x512xf32> to vector<16x512xf32>
    %318 = arith.mulf %315, %317 : vector<16x512xf32>
    %319 = arith.truncf %318 : vector<16x512xf32> to vector<16x512xbf16>
    %c272_174 = arith.constant 272 : index
    %c0_175 = arith.constant 0 : index
    %320 = vector.load %arg13[%c272_174, %c0_175] : memref<432x512xbf16, #tpu.memory_space<vmem>>, vector<16x512xbf16>
    tpu.vector_store %arg13[%c272_174, %c0_175], %319 {strides = array<i32>} : memref<432x512xbf16, #tpu.memory_space<vmem>>, vector<16x512xbf16>,
    %c457_i32_176 = arith.constant 457 : i32
    %321 = tpu.dynamic_rotate %213 by %c457_i32_176 dim 1 : vector<16x512xf32>, i32 -> vector<16x512xf32>
    %c18_177 = arith.constant 18 : index
    %c0_178 = arith.constant 0 : index
    %322 = vector.load %arg11[%c18_177, %c0_178] : memref<27x512xf32, #tpu.memory_space<vmem>>, vector<1x512xf32>
    %323 = vector.broadcast %322 : vector<1x512xf32> to vector<16x512xf32>
    %324 = arith.mulf %321, %323 : vector<16x512xf32>
    %325 = arith.truncf %324 : vector<16x512xf32> to vector<16x512xbf16>
    %c288_179 = arith.constant 288 : index
    %c0_180 = arith.constant 0 : index
    %326 = vector.load %arg13[%c288_179, %c0_180] : memref<432x512xbf16, #tpu.memory_space<vmem>>, vector<16x512xbf16>
    tpu.vector_store %arg13[%c288_179, %c0_180], %325 {strides = array<i32>} : memref<432x512xbf16, #tpu.memory_space<vmem>>, vector<16x512xbf16>,
    %c456_i32_181 = arith.constant 456 : i32
    %327 = tpu.dynamic_rotate %213 by %c456_i32_181 dim 1 : vector<16x512xf32>, i32 -> vector<16x512xf32>
    %c19_182 = arith.constant 19 : index
    %c0_183 = arith.constant 0 : index
    %328 = vector.load %arg11[%c19_182, %c0_183] : memref<27x512xf32, #tpu.memory_space<vmem>>, vector<1x512xf32>
    %329 = vector.broadcast %328 : vector<1x512xf32> to vector<16x512xf32>
    %330 = arith.mulf %327, %329 : vector<16x512xf32>
    %331 = arith.truncf %330 : vector<16x512xf32> to vector<16x512xbf16>
    %c304_184 = arith.constant 304 : index
    %c0_185 = arith.constant 0 : index
    %332 = vector.load %arg13[%c304_184, %c0_185] : memref<432x512xbf16, #tpu.memory_space<vmem>>, vector<16x512xbf16>
    tpu.vector_store %arg13[%c304_184, %c0_185], %331 {strides = array<i32>} : memref<432x512xbf16, #tpu.memory_space<vmem>>, vector<16x512xbf16>,
    %c455_i32_186 = arith.constant 455 : i32
    %333 = tpu.dynamic_rotate %213 by %c455_i32_186 dim 1 : vector<16x512xf32>, i32 -> vector<16x512xf32>
    %c20_187 = arith.constant 20 : index
    %c0_188 = arith.constant 0 : index
    %334 = vector.load %arg11[%c20_187, %c0_188] : memref<27x512xf32, #tpu.memory_space<vmem>>, vector<1x512xf32>
    %335 = vector.broadcast %334 : vector<1x512xf32> to vector<16x512xf32>
    %336 = arith.mulf %333, %335 : vector<16x512xf32>
    %337 = arith.truncf %336 : vector<16x512xf32> to vector<16x512xbf16>
    %c320_189 = arith.constant 320 : index
    %c0_190 = arith.constant 0 : index
    %338 = vector.load %arg13[%c320_189, %c0_190] : memref<432x512xbf16, #tpu.memory_space<vmem>>, vector<16x512xbf16>
    tpu.vector_store %arg13[%c320_189, %c0_190], %337 {strides = array<i32>} : memref<432x512xbf16, #tpu.memory_space<vmem>>, vector<16x512xbf16>,
    %c449_i32_191 = arith.constant 449 : i32
    %339 = tpu.dynamic_rotate %213 by %c449_i32_191 dim 1 : vector<16x512xf32>, i32 -> vector<16x512xf32>
    %c21_192 = arith.constant 21 : index
    %c0_193 = arith.constant 0 : index
    %340 = vector.load %arg11[%c21_192, %c0_193] : memref<27x512xf32, #tpu.memory_space<vmem>>, vector<1x512xf32>
    %341 = vector.broadcast %340 : vector<1x512xf32> to vector<16x512xf32>
    %342 = arith.mulf %339, %341 : vector<16x512xf32>
    %343 = arith.truncf %342 : vector<16x512xf32> to vector<16x512xbf16>
    %c336_194 = arith.constant 336 : index
    %c0_195 = arith.constant 0 : index
    %344 = vector.load %arg13[%c336_194, %c0_195] : memref<432x512xbf16, #tpu.memory_space<vmem>>, vector<16x512xbf16>
    tpu.vector_store %arg13[%c336_194, %c0_195], %343 {strides = array<i32>} : memref<432x512xbf16, #tpu.memory_space<vmem>>, vector<16x512xbf16>,
    %c448_i32_196 = arith.constant 448 : i32
    %345 = tpu.dynamic_rotate %213 by %c448_i32_196 dim 1 : vector<16x512xf32>, i32 -> vector<16x512xf32>
    %c22_197 = arith.constant 22 : index
    %c0_198 = arith.constant 0 : index
    %346 = vector.load %arg11[%c22_197, %c0_198] : memref<27x512xf32, #tpu.memory_space<vmem>>, vector<1x512xf32>
    %347 = vector.broadcast %346 : vector<1x512xf32> to vector<16x512xf32>
    %348 = arith.mulf %345, %347 : vector<16x512xf32>
    %349 = arith.truncf %348 : vector<16x512xf32> to vector<16x512xbf16>
    %c352_199 = arith.constant 352 : index
    %c0_200 = arith.constant 0 : index
    %350 = vector.load %arg13[%c352_199, %c0_200] : memref<432x512xbf16, #tpu.memory_space<vmem>>, vector<16x512xbf16>
    tpu.vector_store %arg13[%c352_199, %c0_200], %349 {strides = array<i32>} : memref<432x512xbf16, #tpu.memory_space<vmem>>, vector<16x512xbf16>,
    %c447_i32_201 = arith.constant 447 : i32
    %351 = tpu.dynamic_rotate %213 by %c447_i32_201 dim 1 : vector<16x512xf32>, i32 -> vector<16x512xf32>
    %c23_202 = arith.constant 23 : index
    %c0_203 = arith.constant 0 : index
    %352 = vector.load %arg11[%c23_202, %c0_203] : memref<27x512xf32, #tpu.memory_space<vmem>>, vector<1x512xf32>
    %353 = vector.broadcast %352 : vector<1x512xf32> to vector<16x512xf32>
    %354 = arith.mulf %351, %353 : vector<16x512xf32>
    %355 = arith.truncf %354 : vector<16x512xf32> to vector<16x512xbf16>
    %c368_204 = arith.constant 368 : index
    %c0_205 = arith.constant 0 : index
    %356 = vector.load %arg13[%c368_204, %c0_205] : memref<432x512xbf16, #tpu.memory_space<vmem>>, vector<16x512xbf16>
    tpu.vector_store %arg13[%c368_204, %c0_205], %355 {strides = array<i32>} : memref<432x512xbf16, #tpu.memory_space<vmem>>, vector<16x512xbf16>,
    %c441_i32_206 = arith.constant 441 : i32
    %357 = tpu.dynamic_rotate %213 by %c441_i32_206 dim 1 : vector<16x512xf32>, i32 -> vector<16x512xf32>
    %c24_207 = arith.constant 24 : index
    %c0_208 = arith.constant 0 : index
    %358 = vector.load %arg11[%c24_207, %c0_208] : memref<27x512xf32, #tpu.memory_space<vmem>>, vector<1x512xf32>
    %359 = vector.broadcast %358 : vector<1x512xf32> to vector<16x512xf32>
    %360 = arith.mulf %357, %359 : vector<16x512xf32>
    %361 = arith.truncf %360 : vector<16x512xf32> to vector<16x512xbf16>
    %c384_209 = arith.constant 384 : index
    %c0_210 = arith.constant 0 : index
    %362 = vector.load %arg13[%c384_209, %c0_210] : memref<432x512xbf16, #tpu.memory_space<vmem>>, vector<16x512xbf16>
    tpu.vector_store %arg13[%c384_209, %c0_210], %361 {strides = array<i32>} : memref<432x512xbf16, #tpu.memory_space<vmem>>, vector<16x512xbf16>,
    %c440_i32_211 = arith.constant 440 : i32
    %363 = tpu.dynamic_rotate %213 by %c440_i32_211 dim 1 : vector<16x512xf32>, i32 -> vector<16x512xf32>
    %c25_212 = arith.constant 25 : index
    %c0_213 = arith.constant 0 : index
    %364 = vector.load %arg11[%c25_212, %c0_213] : memref<27x512xf32, #tpu.memory_space<vmem>>, vector<1x512xf32>
    %365 = vector.broadcast %364 : vector<1x512xf32> to vector<16x512xf32>
    %366 = arith.mulf %363, %365 : vector<16x512xf32>
    %367 = arith.truncf %366 : vector<16x512xf32> to vector<16x512xbf16>
    %c400_214 = arith.constant 400 : index
    %c0_215 = arith.constant 0 : index
    %368 = vector.load %arg13[%c400_214, %c0_215] : memref<432x512xbf16, #tpu.memory_space<vmem>>, vector<16x512xbf16>
    tpu.vector_store %arg13[%c400_214, %c0_215], %367 {strides = array<i32>} : memref<432x512xbf16, #tpu.memory_space<vmem>>, vector<16x512xbf16>,
    %c439_i32_216 = arith.constant 439 : i32
    %369 = tpu.dynamic_rotate %213 by %c439_i32_216 dim 1 : vector<16x512xf32>, i32 -> vector<16x512xf32>
    %c26_217 = arith.constant 26 : index
    %c0_218 = arith.constant 0 : index
    %370 = vector.load %arg11[%c26_217, %c0_218] : memref<27x512xf32, #tpu.memory_space<vmem>>, vector<1x512xf32>
    %371 = vector.broadcast %370 : vector<1x512xf32> to vector<16x512xf32>
    %372 = arith.mulf %369, %371 : vector<16x512xf32>
    %373 = arith.truncf %372 : vector<16x512xf32> to vector<16x512xbf16>
    %c416_219 = arith.constant 416 : index
    %c0_220 = arith.constant 0 : index
    %374 = vector.load %arg13[%c416_219, %c0_220] : memref<432x512xbf16, #tpu.memory_space<vmem>>, vector<16x512xbf16>
    tpu.vector_store %arg13[%c416_219, %c0_220], %373 {strides = array<i32>} : memref<432x512xbf16, #tpu.memory_space<vmem>>, vector<16x512xbf16>,
    %c0_221 = arith.constant 0 : index
    %c0_222 = arith.constant 0 : index
    %375 = vector.load %arg8[%c0_221, %c0_222] : memref<16x432xbf16, #tpu.memory_space<vmem>>, vector<16x432xbf16>
    %c0_223 = arith.constant 0 : index
    %c0_224 = arith.constant 0 : index
    %376 = vector.load %arg13[%c0_223, %c0_224] : memref<432x512xbf16, #tpu.memory_space<vmem>>, vector<432x512xbf16>
    %cst_225 = arith.constant dense<0.000000e+00> : vector<16x512xf32>
    %377 = tpu.matmul %375, %376, %cst_225 {dimension_numbers = #tpu.dot_dimension_numbers<[1], [0], [0], [1], [0, 0, 1, 1], [], []>} : vector<16x432xbf16>, vector<432x512xbf16>, vector<16x512xf32> -> vector<16x512xf32>
    %c0_226 = arith.constant 0 : index
    %c0_227 = arith.constant 0 : index
    %378 = vector.load %arg9[%c0_226, %c0_227] : memref<16x1xf32, #tpu.memory_space<vmem>>, vector<16x1xf32>
    %379 = vector.broadcast %378 : vector<16x1xf32> to vector<16x512xf32>
    %380 = arith.addf %377, %379 : vector<16x512xf32>
    %381 = arith.addf %380, %1 : vector<16x512xf32>
    %c0_228 = arith.constant 0 : index
    %c0_229 = arith.constant 0 : index
    %c0_230 = arith.constant 0 : index
    %382 = vector.load %arg12[%c0_228, %c0_229, %c0_230] : memref<1x16x512xf32, #tpu.memory_space<vmem>>, vector<1x16x512xf32>
    %383 = vector.shape_cast %382 : vector<1x16x512xf32> to vector<16x512xf32>
    %384 = vector.shape_cast %381 : vector<16x512xf32> to vector<1x16x512xf32>
    tpu.vector_store %arg12[%c0_228, %c0_229, %c0_230], %384 {strides = array<i32>} : memref<1x16x512xf32, #tpu.memory_space<vmem>>, vector<1x16x512xf32>,
    return
  }
  func.func @transform_0(%arg0: i32) -> (i32, i32, i32) {
    %c0_i32 = arith.constant 0 : i32
    %c0_i32_0 = arith.constant 0 : i32
    %c0_i32_1 = arith.constant 0 : i32
    return %arg0, %c0_i32, %c0_i32_0 : i32, i32, i32
  }
  func.func @transform_1(%arg0: i32) -> (i32, i32) {
    %c0_i32 = arith.constant 0 : i32
    %c0_i32_0 = arith.constant 0 : i32
    %c0_i32_1 = arith.constant 0 : i32
    return %c0_i32, %c0_i32_0 : i32, i32
  }
  func.func @transform_2(%arg0: i32) -> (i32, i32) {
    %c0_i32 = arith.constant 0 : i32
    %c0_i32_0 = arith.constant 0 : i32
    %c0_i32_1 = arith.constant 0 : i32
    return %c0_i32, %c0_i32_0 : i32, i32
  }
  func.func @transform_3(%arg0: i32) -> (i32, i32) {
    %c0_i32 = arith.constant 0 : i32
    %c0_i32_0 = arith.constant 0 : i32
    %c0_i32_1 = arith.constant 0 : i32
    return %c0_i32, %c0_i32_0 : i32, i32
  }
  func.func @transform_4(%arg0: i32) -> (i32, i32) {
    %c0_i32 = arith.constant 0 : i32
    %c0_i32_0 = arith.constant 0 : i32
    %c0_i32_1 = arith.constant 0 : i32
    return %c0_i32, %c0_i32_0 : i32, i32
  }
  func.func @transform_5(%arg0: i32) -> (i32, i32) {
    %c0_i32 = arith.constant 0 : i32
    %c0_i32_0 = arith.constant 0 : i32
    %c0_i32_1 = arith.constant 0 : i32
    return %c0_i32, %c0_i32_0 : i32, i32
  }
  func.func @transform_6(%arg0: i32) -> (i32, i32) {
    %c0_i32 = arith.constant 0 : i32
    %c0_i32_0 = arith.constant 0 : i32
    %c0_i32_1 = arith.constant 0 : i32
    return %c0_i32, %c0_i32_0 : i32, i32
  }
  func.func @transform_7(%arg0: i32) -> (i32, i32) {
    %c0_i32 = arith.constant 0 : i32
    %c0_i32_0 = arith.constant 0 : i32
    %c0_i32_1 = arith.constant 0 : i32
    return %c0_i32, %c0_i32_0 : i32, i32
  }
  func.func @transform_8(%arg0: i32) -> (i32, i32) {
    %c0_i32 = arith.constant 0 : i32
    %c0_i32_0 = arith.constant 0 : i32
    %c0_i32_1 = arith.constant 0 : i32
    return %c0_i32, %c0_i32_0 : i32, i32
  }
  func.func @transform_9(%arg0: i32) -> (i32, i32) {
    %c0_i32 = arith.constant 0 : i32
    %c0_i32_0 = arith.constant 0 : i32
    %c0_i32_1 = arith.constant 0 : i32
    return %c0_i32, %c0_i32_0 : i32, i32
  }
  func.func @transform_10(%arg0: i32) -> (i32, i32) {
    %c0_i32 = arith.constant 0 : i32
    %c0_i32_0 = arith.constant 0 : i32
    %c0_i32_1 = arith.constant 0 : i32
    return %c0_i32, %c0_i32_0 : i32, i32
  }
  func.func @transform_11(%arg0: i32) -> (i32, i32, i32) {
    %c0_i32 = arith.constant 0 : i32
    %c0_i32_0 = arith.constant 0 : i32
    %c0_i32_1 = arith.constant 0 : i32
    return %arg0, %c0_i32, %c0_i32_0 : i32, i32, i32
  }
}

</mosaic_0001>

<llo_original>
// kernel: decoder_block_forward.1
$region0: #{decoder_block_forward.1}
  #allocation0 [shape = 'u32[]', space=smem, size = 0x4, offset = 0x4, fixed_abs, tag = 'smem constant byte address 0x4 - core index']
  #allocation1 [shape = 'u32[144,128]{1,0:T(1,128)}', space=vmem, size = 0x12000, scoped, tag = 'internal scratch']
  #allocation2 [shape = 'bf16[432,512]{1,0:T(16,128)(2,1)}', space=vmem, size = 0x6c000, scoped, tag = 'scratch operand']
  %s0 = inlined_call_operand.vmem [shape: f32[2,16,512], index: 0, kind: input, shape index: {}]
  %s1 = inlined_call_operand.vmem [shape: f32[16,1], index: 1, kind: input, shape index: {}]
  %s2 = inlined_call_operand.vmem [shape: f32[16,1], index: 2, kind: input, shape index: {}]
  %s3 = inlined_call_operand.vmem [shape: bf16[16,432], index: 3, kind: input, shape index: {}]
  %s4 = inlined_call_operand.vmem [shape: f32[16,1], index: 4, kind: input, shape index: {}]
  %s5 = inlined_call_operand.vmem [shape: f32[16,1], index: 5, kind: input, shape index: {}]
  %s6 = inlined_call_operand.vmem [shape: f32[16,1], index: 6, kind: input, shape index: {}]
  %s7 = inlined_call_operand.vmem [shape: bf16[16,432], index: 7, kind: input, shape index: {}]
  %s8 = inlined_call_operand.vmem [shape: f32[16,1], index: 8, kind: input, shape index: {}]
  %s9 = inlined_call_operand.vmem [shape: f32[16,16], index: 9, kind: input, shape index: {}]
  %s10 = inlined_call_operand.vmem [shape: f32[27,512], index: 10, kind: input, shape index: {}]
  %s11 = inlined_call_operand.vmem [shape: f32[2,16,512], index: 11, kind: output, shape index: {}]
  %s12 = sld [smem:[#allocation0]]
  $region77: #{decoder_block_forward.1} parent=0
    _
  %s14 = ssub.s32 1, %s12
  %s15 = scalar_select 0, %s14, %s12
  loop: start=0, step=1, limit=4
  $region2: #{decoder_block_forward.1} parent=0 // loop_pre_header
    _
  $region3: #{decoder_block_forward.1} parent=0 // loop_header
    %s17 = sphi 0, %s21
    %p18 = scmp.ge.s32.totalorder %s17, 4
    %s27 = sphi 0, %s29
    %s30 = sphi 0, %s27
    %s31 = sphi 0, %s30
    %s47 = sphi 0, %s31
    %s51 = sphi 0, %s51
    %s53 = sphi 0, %s51
    %s54 = sphi 0, %s53
    %s68 = sphi 0, %s54
    %s72 = sphi 0, %s72
    %s74 = sphi 0, %s72
    %s75 = sphi 0, %s74
    %s89 = sphi 0, %s75
    %s93 = sphi 0, %s93
    %s95 = sphi 0, %s93
    %s96 = sphi 0, %s95
    %s110 = sphi 0, %s96
    %s114 = sphi 0, %s114
    %s116 = sphi 0, %s114
    %s117 = sphi 0, %s116
    %s131 = sphi 0, %s117
    %s135 = sphi 0, %s135
    %s137 = sphi 0, %s135
    %s138 = sphi 0, %s137
    %s152 = sphi 0, %s138
    %s156 = sphi 0, %s156
    %s158 = sphi 0, %s156
    %s159 = sphi 0, %s158
    %s173 = sphi 0, %s159
    %s177 = sphi 0, %s177
    %s179 = sphi 0, %s177
    %s180 = sphi 0, %s179
    %s194 = sphi 0, %s180
    %s198 = sphi 0, %s198
    %s200 = sphi 0, %s198
    %s201 = sphi 0, %s200
    %s215 = sphi 0, %s201
    %s219 = sphi 0, %s219
    %s221 = sphi 0, %s219
    %s222 = sphi 0, %s221
    %s236 = sphi 0, %s222
    %s240 = sphi 0, %s240
    %s242 = sphi 0, %s240
    %s243 = sphi 0, %s242
    %s257 = sphi 0, %s243
    %s263 = sphi 0, %s265
    %s266 = sphi 0, %s263
    %s267 = sphi 0, %s266
    %s283 = sphi 0, %s267
  $region4: #{decoder_block_forward.1} parent=0 // loop_header_branch
    %20 = sbr.rel (%p18) target = $region8
  $region5: #{decoder_block_forward.1} parent=0 // loop_body
    %s22 = ssub.s32 %s17, 1
    %s23 = ssub.s32 %s17, 2
    %s24 = sadd.s32 %s17, 1
    %s25 = ssub.s32 %s17, %s24
    %p26 = scmp.eq.s32.totalorder %s25, 0
    %s28 = sadd.s32 %s27, 1
    %s29 = scalar_select %p26, %s27, %s28
    %p32 = pneg %p26
    %p33 = scmp.eq.s32.totalorder %s17, 1
    %p34 = por %p32, %p33
    %p35 = scmp.ne.s32.totalorder %s27, %s30
    %p36 = scmp.eq.s32.totalorder %s17, 0
    %p37 = por %p35, %p36
    %p38 = scmp.ne.s32.totalorder %s27, %s30
    %p39 = scmp.eq.s32.totalorder %s22, 1
    %p40 = por %p38, %p39
    %p41 = scmp.ne.s32.totalorder %s30, %s31
    %p42 = scmp.eq.s32.totalorder %s22, 0
    %p43 = por %p41, %p42
    %p44 = scmp.ne.s32.totalorder %s30, %s31
    %p45 = scmp.eq.s32.totalorder %s23, 1
    %p46 = por %p44, %p45
    %p48 = scmp.ne.s32.totalorder %s31, %s47
    %p49 = scmp.eq.s32.totalorder %s23, 0
    %p50 = por %p48, %p49
    %s52 = sadd.s32 %s51, 1
    %p55 = scmp.eq.s32.totalorder %s17, 1
    %p56 = scmp.ne.s32.totalorder %s51, %s53
    %p57 = scmp.eq.s32.totalorder %s17, 0
    %p58 = por %p56, %p57
    %p59 = scmp.ne.s32.totalorder %s51, %s53
    %p60 = scmp.eq.s32.totalorder %s22, 1
    %p61 = por %p59, %p60
    %p62 = scmp.ne.s32.totalorder %s53, %s54
    %p63 = scmp.eq.s32.totalorder %s22, 0
    %p64 = por %p62, %p63
    %p65 = scmp.ne.s32.totalorder %s53, %s54
    %p66 = scmp.eq.s32.totalorder %s23, 1
    %p67 = por %p65, %p66
    %p69 = scmp.ne.s32.totalorder %s54, %s68
    %p70 = scmp.eq.s32.totalorder %s23, 0
    %p71 = por %p69, %p70
    %s73 = sadd.s32 %s72, 1
    %p76 = scmp.eq.s32.totalorder %s17, 1
    %p77 = scmp.ne.s32.totalorder %s72, %s74
    %p78 = scmp.eq.s32.totalorder %s17, 0
    %p79 = por %p77, %p78
    %p80 = scmp.ne.s32.totalorder %s72, %s74
    %p81 = scmp.eq.s32.totalorder %s22, 1
    %p82 = por %p80, %p81
    %p83 = scmp.ne.s32.totalorder %s74, %s75
    %p84 = scmp.eq.s32.totalorder %s22, 0
    %p85 = por %p83, %p84
    %p86 = scmp.ne.s32.totalorder %s74, %s75
    %p87 = scmp.eq.s32.totalorder %s23, 1
    %p88 = por %p86, %p87
    %p90 = scmp.ne.s32.totalorder %s75, %s89
    %p91 = scmp.eq.s32.totalorder %s23, 0
    %p92 = por %p90, %p91
    %s94 = sadd.s32 %s93, 1
    %p97 = scmp.eq.s32.totalorder %s17, 1
    %p98 = scmp.ne.s32.totalorder %s93, %s95
    %p99 = scmp.eq.s32.totalorder %s17, 0
    %p100 = por %p98, %p99
    %p101 = scmp.ne.s32.totalorder %s93, %s95
    %p102 = scmp.eq.s32.totalorder %s22, 1
    %p103 = por %p101, %p102
    %p104 = scmp.ne.s32.totalorder %s95, %s96
    %p105 = scmp.eq.s32.totalorder %s22, 0
    %p106 = por %p104, %p105
    %p107 = scmp.ne.s32.totalorder %s95, %s96
    %p108 = scmp.eq.s32.totalorder %s23, 1
    %p109 = por %p107, %p108
    %p111 = scmp.ne.s32.totalorder %s96, %s110
    %p112 = scmp.eq.s32.totalorder %s23, 0
    %p113 = por %p111, %p112
    %s115 = sadd.s32 %s114, 1
    %p118 = scmp.eq.s32.totalorder %s17, 1
    %p119 = scmp.ne.s32.totalorder %s114, %s116
    %p120 = scmp.eq.s32.totalorder %s17, 0
    %p121 = por %p119, %p120
    %p122 = scmp.ne.s32.totalorder %s114, %s116
    %p123 = scmp.eq.s32.totalorder %s22, 1
    %p124 = por %p122, %p123
    %p125 = scmp.ne.s32.totalorder %s116, %s117
    %p126 = scmp.eq.s32.totalorder %s22, 0
    %p127 = por %p125, %p126
    %p128 = scmp.ne.s32.totalorder %s116, %s117
    %p129 = scmp.eq.s32.totalorder %s23, 1
    %p130 = por %p128, %p129
    %p132 = scmp.ne.s32.totalorder %s117, %s131
    %p133 = scmp.eq.s32.totalorder %s23, 0
    %p134 = por %p132, %p133
    %s136 = sadd.s32 %s135, 1
    %p139 = scmp.eq.s32.totalorder %s17, 1
    %p140 = scmp.ne.s32.totalorder %s135, %s137
    %p141 = scmp.eq.s32.totalorder %s17, 0
    %p142 = por %p140, %p141
    %p143 = scmp.ne.s32.totalorder %s135, %s137
    %p144 = scmp.eq.s32.totalorder %s22, 1
    %p145 = por %p143, %p144
    %p146 = scmp.ne.s32.totalorder %s137, %s138
    %p147 = scmp.eq.s32.totalorder %s22, 0
    %p148 = por %p146, %p147
    %p149 = scmp.ne.s32.totalorder %s137, %s138
    %p150 = scmp.eq.s32.totalorder %s23, 1
    %p151 = por %p149, %p150
    %p153 = scmp.ne.s32.totalorder %s138, %s152
    %p154 = scmp.eq.s32.totalorder %s23, 0
    %p155 = por %p153, %p154
    %s157 = sadd.s32 %s156, 1
    %p160 = scmp.eq.s32.totalorder %s17, 1
    %p161 = scmp.ne.s32.totalorder %s156, %s158
    %p162 = scmp.eq.s32.totalorder %s17, 0
    %p163 = por %p161, %p162
    %p164 = scmp.ne.s32.totalorder %s156, %s158
    %p165 = scmp.eq.s32.totalorder %s22, 1
    %p166 = por %p164, %p165
    %p167 = scmp.ne.s32.totalorder %s158, %s159
    %p168 = scmp.eq.s32.totalorder %s22, 0
    %p169 = por %p167, %p168
    %p170 = scmp.ne.s32.totalorder %s158, %s159
    %p171 = scmp.eq.s32.totalorder %s23, 1
    %p172 = por %p170, %p171
    %p174 = scmp.ne.s32.totalorder %s159, %s173
    %p175 = scmp.eq.s32.totalorder %s23, 0
    %p176 = por %p174, %p175
    %s178 = sadd.s32 %s177, 1
    %p181 = scmp.eq.s32.totalorder %s17, 1
    %p182 = scmp.ne.s32.totalorder %s177, %s179
    %p183 = scmp.eq.s32.totalorder %s17, 0
    %p184 = por %p182, %p183
    %p185 = scmp.ne.s32.totalorder %s177, %s179
    %p186 = scmp.eq.s32.totalorder %s22, 1
    %p187 = por %p185, %p186
    %p188 = scmp.ne.s32.totalorder %s179, %s180
    %p189 = scmp.eq.s32.totalorder %s22, 0
    %p190 = por %p188, %p189
    %p191 = scmp.ne.s32.totalorder %s179, %s180
    %p192 = scmp.eq.s32.totalorder %s23, 1
    %p193 = por %p191, %p192
    %p195 = scmp.ne.s32.totalorder %s180, %s194
    %p196 = scmp.eq.s32.totalorder %s23, 0
    %p197 = por %p195, %p196
    %s199 = sadd.s32 %s198, 1
    %p202 = scmp.eq.s32.totalorder %s17, 1
    %p203 = scmp.ne.s32.totalorder %s198, %s200
    %p204 = scmp.eq.s32.totalorder %s17, 0
    %p205 = por %p203, %p204
    %p206 = scmp.ne.s32.totalorder %s198, %s200
    %p207 = scmp.eq.s32.totalorder %s22, 1
    %p208 = por %p206, %p207
    %p209 = scmp.ne.s32.totalorder %s200, %s201
    %p210 = scmp.eq.s32.totalorder %s22, 0
    %p211 = por %p209, %p210
    %p212 = scmp.ne.s32.totalorder %s200, %s201
    %p213 = scmp.eq.s32.totalorder %s23, 1
    %p214 = por %p212, %p213
    %p216 = scmp.ne.s32.totalorder %s201, %s215
    %p217 = scmp.eq.s32.totalorder %s23, 0
    %p218 = por %p216, %p217
    %s220 = sadd.s32 %s219, 1
    %p223 = scmp.eq.s32.totalorder %s17, 1
    %p224 = scmp.ne.s32.totalorder %s219, %s221
    %p225 = scmp.eq.s32.totalorder %s17, 0
    %p226 = por %p224, %p225
    %p227 = scmp.ne.s32.totalorder %s219, %s221
    %p228 = scmp.eq.s32.totalorder %s22, 1
    %p229 = por %p227, %p228
    %p230 = scmp.ne.s32.totalorder %s221, %s222
    %p231 = scmp.eq.s32.totalorder %s22, 0
    %p232 = por %p230, %p231
    %p233 = scmp.ne.s32.totalorder %s221, %s222
    %p234 = scmp.eq.s32.totalorder %s23, 1
    %p235 = por %p233, %p234
    %p237 = scmp.ne.s32.totalorder %s222, %s236
    %p238 = scmp.eq.s32.totalorder %s23, 0
    %p239 = por %p237, %p238
    %s241 = sadd.s32 %s240, 1
    %p244 = scmp.eq.s32.totalorder %s17, 1
    %p245 = scmp.ne.s32.totalorder %s240, %s242
    %p246 = scmp.eq.s32.totalorder %s17, 0
    %p247 = por %p245, %p246
    %p248 = scmp.ne.s32.totalorder %s240, %s242
    %p249 = scmp.eq.s32.totalorder %s22, 1
    %p250 = por %p248, %p249
    %p251 = scmp.ne.s32.totalorder %s242, %s243
    %p252 = scmp.eq.s32.totalorder %s22, 0
    %p253 = por %p251, %p252
    %p254 = scmp.ne.s32.totalorder %s242, %s243
    %p255 = scmp.eq.s32.totalorder %s23, 1
    %p256 = por %p254, %p255
    %p258 = scmp.ne.s32.totalorder %s243, %s257
    %p259 = scmp.eq.s32.totalorder %s23, 0
    %p260 = por %p258, %p259
    %s261 = ssub.s32 %s17, %s24
    %p262 = scmp.eq.s32.totalorder %s261, 0
    %s264 = sadd.s32 %s263, 1
    %s265 = scalar_select %p262, %s263, %s264
    %p268 = pneg %p262
    %p269 = scmp.eq.s32.totalorder %s17, 1
    %p270 = por %p268, %p269
    %p271 = scmp.ne.s32.totalorder %s263, %s266
    %p272 = scmp.eq.s32.totalorder %s17, 0
    %p273 = por %p271, %p272
    %p274 = scmp.ne.s32.totalorder %s263, %s266
    %p275 = scmp.eq.s32.totalorder %s22, 1
    %p276 = por %p274, %p275
    %p277 = scmp.ne.s32.totalorder %s266, %s267
    %p278 = scmp.eq.s32.totalorder %s22, 0
    %p279 = por %p277, %p278
    %p280 = scmp.ne.s32.totalorder %s266, %s267
    %p281 = scmp.eq.s32.totalorder %s23, 1
    %p282 = por %p280, %p281
    %p284 = scmp.ne.s32.totalorder %s267, %s283
    %p285 = scmp.eq.s32.totalorder %s23, 0
    %p286 = por %p284, %p285
    %p287 = scmp.le.s32.totalorder 1, %s17
    %p288 = scmp.lt.s32.totalorder %s17, 3
    %p289 = pnand %p287, %p288
    %p290 = pneg %p289
    // Predicated region
    $region9: #{decoder_block_forward.1} parent=5 // pred_check
      _
    $region10: #{decoder_block_forward.1} parent=5 // pred_check_branch
      %292 = sbr.rel (%p289) target = $region12
    $region11: #{decoder_block_forward.1} parent=5 // pred_region
      %s293 = ssub.s32 %s17, 1
      // Predicated region
      $region13: #{decoder_block_forward.1} parent=11 // pred_check
        %p294 = pneg %p64
      $region14: #{decoder_block_forward.1} parent=11 // pred_check_branch
        %296 = sbr.rel (%p294) target = $region16
      $region15: #{decoder_block_forward.1} parent=11 // pred_region
        _
      $region16: #{decoder_block_forward.1} parent=11 // pred_fallthru
        _
      // Predicated region
      $region17: #{decoder_block_forward.1} parent=11 // pred_check
        %p297 = pneg %p85
      $region18: #{decoder_block_forward.1} parent=11 // pred_check_branch
        %299 = sbr.rel (%p297) target = $region20
      $region19: #{decoder_block_forward.1} parent=11 // pred_region
        _
      $region20: #{decoder_block_forward.1} parent=11 // pred_fallthru
        _
      // Predicated region
      $region21: #{decoder_block_forward.1} parent=11 // pred_check
        %p300 = pneg %p106
      $region22: #{decoder_block_forward.1} parent=11 // pred_check_branch
        %302 = sbr.rel (%p300) target = $region24
      $region23: #{decoder_block_forward.1} parent=11 // pred_region
        _
      $region24: #{decoder_block_forward.1} parent=11 // pred_fallthru
        _
      // Predicated region
      $region25: #{decoder_block_forward.1} parent=11 // pred_check
        %p303 = pneg %p127
      $region26: #{decoder_block_forward.1} parent=11 // pred_check_branch
        %305 = sbr.rel (%p303) target = $region28
      $region27: #{decoder_block_forward.1} parent=11 // pred_region
        _
      $region28: #{decoder_block_forward.1} parent=11 // pred_fallthru
        _
      // Predicated region
      $region29: #{decoder_block_forward.1} parent=11 // pred_check
        %p306 = pneg %p148
      $region30: #{decoder_block_forward.1} parent=11 // pred_check_branch
        %308 = sbr.rel (%p306) target = $region32
      $region31: #{decoder_block_forward.1} parent=11 // pred_region
        _
      $region32: #{decoder_block_forward.1} parent=11 // pred_fallthru
        _
      // Predicated region
      $region33: #{decoder_block_forward.1} parent=11 // pred_check
        %p309 = pneg %p169
      $region34: #{decoder_block_forward.1} parent=11 // pred_check_branch
        %311 = sbr.rel (%p309) target = $region36
      $region35: #{decoder_block_forward.1} parent=11 // pred_region
        _
      $region36: #{decoder_block_forward.1} parent=11 // pred_fallthru
        _
      // Predicated region
      $region37: #{decoder_block_forward.1} parent=11 // pred_check
        %p312 = pneg %p190
      $region38: #{decoder_block_forward.1} parent=11 // pred_check_branch
        %314 = sbr.rel (%p312) target = $region40
      $region39: #{decoder_block_forward.1} parent=11 // pred_region
        _
      $region40: #{decoder_block_forward.1} parent=11 // pred_fallthru
        _
      // Predicated region
      $region41: #{decoder_block_forward.1} parent=11 // pred_check
        %p315 = pneg %p211
      $region42: #{decoder_block_forward.1} parent=11 // pred_check_branch
        %317 = sbr.rel (%p315) target = $region44
      $region43: #{decoder_block_forward.1} parent=11 // pred_region
        _
      $region44: #{decoder_block_forward.1} parent=11 // pred_fallthru
        _
      // Predicated region
      $region45: #{decoder_block_forward.1} parent=11 // pred_check
        %p318 = pneg %p232
      $region46: #{decoder_block_forward.1} parent=11 // pred_check_branch
        %320 = sbr.rel (%p318) target = $region48
      $region47: #{decoder_block_forward.1} parent=11 // pred_region
        _
      $region48: #{decoder_block_forward.1} parent=11 // pred_fallthru
        _
      // Predicated region
      $region49: #{decoder_block_forward.1} parent=11 // pred_check
        %p321 = pneg %p253
      $region50: #{decoder_block_forward.1} parent=11 // pred_check_branch
        %323 = sbr.rel (%p321) target = $region52
      $region51: #{decoder_block_forward.1} parent=11 // pred_region
        _
      $region52: #{decoder_block_forward.1} parent=11 // pred_fallthru
        _
    $region12: #{decoder_block_forward.1} parent=5 // pred_fallthru
      _
    %p324 = scmp.lt.s32.totalorder %s17, 2
    // Predicated region
    $region53: #{decoder_block_forward.1} parent=5 // pred_check
      %p325 = pneg %p324
    $region54: #{decoder_block_forward.1} parent=5 // pred_check_branch
      %327 = sbr.rel (%p325) target = $region56
    $region55: #{decoder_block_forward.1} parent=5 // pred_region
      // Predicated region
      $region57: #{decoder_block_forward.1} parent=55 // pred_check
        %p328 = pneg %p37
      $region58: #{decoder_block_forward.1} parent=55 // pred_check_branch
        %330 = sbr.rel (%p328) target = $region60
      $region59: #{decoder_block_forward.1} parent=55 // pred_region
        %p331 = scmp.lt.s32.totalorder %s17, 1
        %s332 = scalar_select %p331, %s17, 1
        %s333 = smul.addr %s332, 8
        %s334 = smul.addr %s333, 8
        %s335 = scalar_lea.vmem %s0, %s334
      $region60: #{decoder_block_forward.1} parent=55 // pred_fallthru
        _
    $region56: #{decoder_block_forward.1} parent=5 // pred_fallthru
      _
    %p336 = scmp.le.s32.totalorder 1, %s17
    %p337 = scmp.lt.s32.totalorder %s17, 3
    %p338 = pnand %p336, %p337
    %p339 = pneg %p338
    // Predicated region
    $region61: #{decoder_block_forward.1} parent=5 // pred_check
      _
    $region62: #{decoder_block_forward.1} parent=5 // pred_check_branch
      %341 = sbr.rel (%p338) target = $region64
    $region63: #{decoder_block_forward.1} parent=5 // pred_region
      %s342 = ssub.s32 %s17, 1
      %p343 = scmp.lt.s32.totalorder %s22, 1
      %s344 = scalar_select %p343, %s22, 1
      %s345 = smul.addr %s344, 8
      %s346 = smul.addr %s345, 8
      %s347 = scalar_lea.vmem %s0, %s346
      %p348 = pneg %p43
      %p349 = pneg %p40
      %p350 = pneg %p64
      %p351 = pneg %p61
      %p352 = pneg %p85
      %p353 = pneg %p82
      %p354 = pneg %p106
      %p355 = pneg %p103
      %p356 = pneg %p127
      %p357 = pneg %p124
      %p358 = pneg %p148
      %p359 = pneg %p145
      %p360 = pneg %p169
      %p361 = pneg %p166
      %p362 = pneg %p190
      %p363 = pneg %p187
      %p364 = pneg %p211
      %p365 = pneg %p208
      %p366 = pneg %p232
      %p367 = pneg %p229
      %p368 = pneg %p253
      %p369 = pneg %p250
      %p370 = pneg %p279
      %p371 = pneg %p276
      %p372 = scmp.lt.s32.totalorder %s22, 1
      %s373 = scalar_select %p372, %s22, 1
      %s374 = smul.addr %s373, 8
      %s375 = smul.addr %s374, 8
      %s376 = scalar_lea.vmem %s11, %s375
      %p377 = scmp.lt.s32.totalorder %s22, 1
      %s378 = scalar_select %p377, %s22, 1
      %s379 = smul.addr %s378, 8
      %s380 = smul.addr %s379, 8
      %s381 = scalar_lea.vmem %s0, %s380
      %p382 = scmp.lt.s32.totalorder %s22, 1
      %s383 = scalar_select %p382, %s22, 1
      %s384 = smul.addr %s383, 8
      %s385 = smul.addr %s384, 8
      %s386 = scalar_lea.vmem %s11, %s385
      %v388 = vld [vmem:[%s381] sm:$0xff]
      %v389 = vld [vmem:[%s381 + $0x8] sm:$0xff]
      %v390 = vld [vmem:[%s381 + $0x10] sm:$0xff]
      %v391 = vld [vmem:[%s381 + $0x18] sm:$0xff]
      %v392 = vld [vmem:[%s381 + $0x20] sm:$0xff]
      %v393 = vld [vmem:[%s381 + $0x28] sm:$0xff]
      %v394 = vld [vmem:[%s381 + $0x30] sm:$0xff]
      %v395 = vld [vmem:[%s381 + $0x38] sm:$0xff]
      %v396 = vld [vmem:[%s9] sm:$0xff]
      %v397 = vld [vmem:[%s9 + $0x8] sm:$0xff]
      %v398 = vld [vmem:[%s1] sm:$0xff]
      %v399 = vld [vmem:[%s1 + $0x8] sm:$0xff]
      %v400 = vld [vmem:[%s2] sm:$0xff]
      %v401 = vld [vmem:[%s2 + $0x8] sm:$0xff]
      %v402 = vadd.f32 %v388, %v389
      %v403 = vadd.f32 %v402, %v390
      %v404 = vadd.f32 %v403, %v391
      %405 = vadd.xlane.f32.xlu0 %v404
      %v406 = vpop.xlane.xlu0 %405
      %v407 = vadd.f32 %v392, %v393
      %v408 = vadd.f32 %v407, %v394
      %v409 = vadd.f32 %v408, %v395
      %410 = vadd.xlane.f32.xlu0 %v409
      %v411 = vpop.xlane.xlu0 %410
      %vm412 = vcmask 130048
      %v414 = vsel %vm412, %v396, 0
      %v417 = vsel %vm412, %v397, 0
      %419 = vmatprep.subr.mxu0 0.0
      %420 = vmatpush1.msra.mxu0 %v406
      %421 = vmatprep.subr.mxu0 0.0
      %422 = vmatpush1.msra.mxu0 %v411
      %423 = vmatprep.subr.mxu0 0.0
      %424 = vmatpush1.msra.mxu0 0.0
      %425 = vmatprep.subr.mxu0 0.0
      %426 = vmatpush1.msra.mxu0 0.0
      %427 = vmatprep.subr.mxu0 0.0
      %428 = vmatpush1.msra.mxu0 0.0
      %429 = vmatprep.subr.mxu0 0.0
      %430 = vmatpush1.msra.mxu0 0.0
      %431 = vmatprep.subr.mxu0 0.0
      %432 = vmatpush1.msra.mxu0 0.0
      %433 = vmatprep.subr.mxu0 0.0
      %434 = vmatpush1.msra.mxu0 0.0
      %435 = vmatprep.subr.mxu0 0.0
      %436 = vmatpush1.msra.mxu0 0.0
      %437 = vmatprep.subr.mxu0 0.0
      %438 = vmatpush1.msra.mxu0 0.0
      %439 = vmatprep.subr.mxu0 0.0
      %440 = vmatpush1.msra.mxu0 0.0
      %441 = vmatprep.subr.mxu0 0.0
      %442 = vmatpush1.msra.mxu0 0.0
      %443 = vmatprep.subr.mxu0 0.0
      %444 = vmatpush1.msra.mxu0 0.0
      %445 = vmatprep.subr.mxu0 0.0
      %446 = vmatpush1.msra.mxu0 0.0
      %447 = vmatprep.subr.mxu0 0.0
      %448 = vmatpush1.msra.mxu0 0.0
      %449 = vmatprep.subr.mxu0 0.0
      %450 = vmatpush1.msra.mxu0 0.0
      %451 = vmatprep.subr.mxu0 0.0
      %452 = vmatpush1.msra.mxu0 0.0
      %453 = vmatprep.subr.mxu0 0.0
      %454 = vmatpush1.msra.mxu0 0.0
      %455 = vmatprep.subr.mxu0 0.0
      %456 = vmatpush1.msra.mxu0 0.0
      %457 = vmatprep.subr.mxu0 0.0
      %458 = vmatpush1.msra.mxu0 0.0
      %459 = vmatprep.subr.mxu0 0.0
      %460 = vmatpush1.msra.mxu0 0.0
      %461 = vmatprep.subr.mxu0 0.0
      %462 = vmatpush1.msra.mxu0 0.0
      %463 = vmatprep.subr.mxu0 0.0
      %464 = vmatpush1.msra.mxu0 0.0
      %465 = vmatprep.subr.mxu0 0.0
      %466 = vmatpush1.msra.mxu0 0.0
      %467 = vmatprep.subr.mxu0 0.0
      %468 = vmatpush1.msra.mxu0 0.0
      %469 = vmatprep.subr.mxu0 0.0
      %470 = vmatpush1.msra.mxu0 0.0
      %471 = vmatprep.subr.mxu0 0.0
      %472 = vmatpush1.msra.mxu0 0.0
      %473 = vmatprep.subr.mxu0 0.0
      %474 = vmatpush1.msra.mxu0 0.0
      %475 = vmatprep.subr.mxu0 0.0
      %476 = vmatpush1.msra.mxu0 0.0
      %477 = vmatprep.subr.mxu0 0.0
      %478 = vmatpush1.msra.mxu0 0.0
      %479 = vmatprep.subr.mxu0 0.0
      %480 = vmatpush1.msra.mxu0 0.0
      %481 = vmatprep.subr.mxu0 0.0
      %482 = vmatpush1.msra.mxu0 0.0
      %483 = vmatprep.mubr.f32.mxu0 0.0
      %484 = vmatmul.mubr.f32.gmra.mrb[0].mxu0 %v414
      %v485 = vpop.f32.mrb[0].mxu0
      %v486 = vadd.f32 0.0, %v485
      %v487 = vpop.f32.mrb[0].mxu0
      %488 = vmatprep.mubr.f32.mxu0 0.0
      %489 = vmatmul.mubr.f32.gmra.mrb[0].mxu0 %v417
      %v490 = vpop.f32.mrb[0].mxu0
      %v491 = vadd.f32 0.0, %v490
      %v492 = vpop.f32.mrb[0].mxu0
      %493 = vdwg.mxu0
      %495 = vset.pattern.permute.xlu0 0
      %496 = vperm.xlu0 %495, %v486
      %v497 = vpop.permute.xlu0 %496
      %500 = vset.pattern.permute.xlu0 0
      %501 = vperm.xlu0 %500, %v491
      %v502 = vpop.permute.xlu0 %501
      %v504 = vsub.f32 %v388, %v497
      %v505 = vsub.f32 %v389, %v497
      %v506 = vsub.f32 %v390, %v497
      %v507 = vsub.f32 %v391, %v497
      %v508 = vsub.f32 %v392, %v502
      %v509 = vsub.f32 %v393, %v502
      %v510 = vsub.f32 %v394, %v502
      %v511 = vsub.f32 %v395, %v502
      %v512 = vmul.f32 %v504, %v504
      %v513 = vmul.f32 %v505, %v505
      %v514 = vmul.f32 %v506, %v506
      %v515 = vmul.f32 %v507, %v507
      %v516 = vmul.f32 %v508, %v508
      %v517 = vmul.f32 %v509, %v509
      %v518 = vmul.f32 %v510, %v510
      %v519 = vmul.f32 %v511, %v511
      %v520 = vadd.f32 %v512, %v513
      %v521 = vadd.f32 %v520, %v514
      %v522 = vadd.f32 %v521, %v515
      %523 = vadd.xlane.f32.xlu0 %v522
      %v524 = vpop.xlane.xlu0 %523
      %v525 = vadd.f32 %v516, %v517
      %v526 = vadd.f32 %v525, %v518
      %v527 = vadd.f32 %v526, %v519
      %528 = vadd.xlane.f32.xlu0 %v527
      %v529 = vpop.xlane.xlu0 %528
      %530 = vmatprep.subr.mxu0 0.0
      %531 = vmatpush1.msra.mxu0 %v524
      %532 = vmatprep.subr.mxu0 0.0
      %533 = vmatpush1.msra.mxu0 %v529
      %534 = vmatprep.subr.mxu0 0.0
      %535 = vmatpush1.msra.mxu0 0.0
      %536 = vmatprep.subr.mxu0 0.0
      %537 = vmatpush1.msra.mxu0 0.0
      %538 = vmatprep.subr.mxu0 0.0
      %539 = vmatpush1.msra.mxu0 0.0
      %540 = vmatprep.subr.mxu0 0.0
      %541 = vmatpush1.msra.mxu0 0.0
      %542 = vmatprep.subr.mxu0 0.0
      %543 = vmatpush1.msra.mxu0 0.0
      %544 = vmatprep.subr.mxu0 0.0
      %545 = vmatpush1.msra.mxu0 0.0
      %546 = vmatprep.subr.mxu0 0.0
      %547 = vmatpush1.msra.mxu0 0.0
      %548 = vmatprep.subr.mxu0 0.0
      %549 = vmatpush1.msra.mxu0 0.0
      %550 = vmatprep.subr.mxu0 0.0
      %551 = vmatpush1.msra.mxu0 0.0
      %552 = vmatprep.subr.mxu0 0.0
      %553 = vmatpush1.msra.mxu0 0.0
      %554 = vmatprep.subr.mxu0 0.0
      %555 = vmatpush1.msra.mxu0 0.0
      %556 = vmatprep.subr.mxu0 0.0
      %557 = vmatpush1.msra.mxu0 0.0
      %558 = vmatprep.subr.mxu0 0.0
      %559 = vmatpush1.msra.mxu0 0.0
      %560 = vmatprep.subr.mxu0 0.0
      %561 = vmatpush1.msra.mxu0 0.0
      %562 = vmatprep.subr.mxu0 0.0
      %563 = vmatpush1.msra.mxu0 0.0
      %564 = vmatprep.subr.mxu0 0.0
      %565 = vmatpush1.msra.mxu0 0.0
      %566 = vmatprep.subr.mxu0 0.0
      %567 = vmatpush1.msra.mxu0 0.0
      %568 = vmatprep.subr.mxu0 0.0
      %569 = vmatpush1.msra.mxu0 0.0
      %570 = vmatprep.subr.mxu0 0.0
      %571 = vmatpush1.msra.mxu0 0.0
      %572 = vmatprep.subr.mxu0 0.0
      %573 = vmatpush1.msra.mxu0 0.0
      %574 = vmatprep.subr.mxu0 0.0
      %575 = vmatpush1.msra.mxu0 0.0
      %576 = vmatprep.subr.mxu0 0.0
      %577 = vmatpush1.msra.mxu0 0.0
      %578 = vmatprep.subr.mxu0 0.0
      %579 = vmatpush1.msra.mxu0 0.0
      %580 = vmatprep.subr.mxu0 0.0
      %581 = vmatpush1.msra.mxu0 0.0
      %582 = vmatprep.subr.mxu0 0.0
      %583 = vmatpush1.msra.mxu0 0.0
      %584 = vmatprep.subr.mxu0 0.0
      %585 = vmatpush1.msra.mxu0 0.0
      %586 = vmatprep.subr.mxu0 0.0
      %587 = vmatpush1.msra.mxu0 0.0
      %588 = vmatprep.subr.mxu0 0.0
      %589 = vmatpush1.msra.mxu0 0.0
      %590 = vmatprep.subr.mxu0 0.0
      %591 = vmatpush1.msra.mxu0 0.0
      %592 = vmatprep.subr.mxu0 0.0
      %593 = vmatpush1.msra.mxu0 0.0
      %594 = vmatprep.mubr.f32.mxu0 0.0
      %595 = vmatmul.mubr.f32.gmra.mrb[0].mxu0 %v414
      %v596 = vpop.f32.mrb[0].mxu0
      %v597 = vadd.f32 1e-05, %v596
      %v598 = vpop.f32.mrb[0].mxu0
      %599 = vmatprep.mubr.f32.mxu0 0.0
      %600 = vmatmul.mubr.f32.gmra.mrb[0].mxu0 %v417
      %v601 = vpop.f32.mrb[0].mxu0
      %v602 = vadd.f32 1e-05, %v601
      %v603 = vpop.f32.mrb[0].mxu0
      %604 = vdwg.mxu0
      %v605 = vrsqrt.pop %v597
      %v606 = vrsqrt.pop %v602
      %608 = vset.pattern.permute.xlu0 0
      %609 = vperm.xlu0 %608, %v605
      %v610 = vpop.permute.xlu0 %609
      %613 = vset.pattern.permute.xlu0 0
      %614 = vperm.xlu0 %613, %v606
      %v615 = vpop.permute.xlu0 %614
      %v617 = vmul.f32 %v504, %v610
      %v618 = vmul.f32 %v505, %v610
      %v619 = vmul.f32 %v506, %v610
      %v620 = vmul.f32 %v507, %v610
      %v621 = vmul.f32 %v508, %v615
      %v622 = vmul.f32 %v509, %v615
      %v623 = vmul.f32 %v510, %v615
      %v624 = vmul.f32 %v511, %v615
      %626 = vset.pattern.permute.xlu0 0
      %627 = vperm.xlu0 %626, %v398
      %v628 = vpop.permute.xlu0 %627
      %631 = vset.pattern.permute.xlu0 0
      %632 = vperm.xlu0 %631, %v399
      %v633 = vpop.permute.xlu0 %632
      %v635 = vmul.f32 %v617, %v628
      %v636 = vmul.f32 %v618, %v628
      %v637 = vmul.f32 %v619, %v628
      %v638 = vmul.f32 %v620, %v628
      %v639 = vmul.f32 %v621, %v633
      %v640 = vmul.f32 %v622, %v633
      %v641 = vmul.f32 %v623, %v633
      %v642 = vmul.f32 %v624, %v633
      %644 = vset.pattern.permute.xlu0 0
      %645 = vperm.xlu0 %644, %v400
      %v646 = vpop.permute.xlu0 %645
      %649 = vset.pattern.permute.xlu0 0
      %650 = vperm.xlu0 %649, %v401
      %v651 = vpop.permute.xlu0 %650
      %v653 = vadd.f32 %v635, %v646
      %v654 = vadd.f32 %v636, %v646
      %v655 = vadd.f32 %v637, %v646
      %v656 = vadd.f32 %v638, %v646
      %v657 = vadd.f32 %v639, %v651
      %v658 = vadd.f32 %v640, %v651
      %v659 = vadd.f32 %v641, %v651
      %v660 = vadd.f32 %v642, %v651
      %v661 = vmax.f32 %v653, 0.0
      %v662 = vmax.f32 %v654, 0.0
      %v663 = vmax.f32 %v655, 0.0
      %v664 = vmax.f32 %v656, 0.0
      %v665 = vmax.f32 %v657, 0.0
      %v666 = vmax.f32 %v658, 0.0
      %v667 = vmax.f32 %v659, 0.0
      %v668 = vmax.f32 %v660, 0.0
      %669 = vrot.lane.b32.xlu0 %v661, 73
      %v670 = vpop.permute.xlu0 %669
      %671 = vrot.lane.b32.xlu0 %v665, 73
      %v672 = vpop.permute.xlu0 %671
      %673 = vrot.lane.b32.xlu0 %v662, 73
      %v674 = vpop.permute.xlu0 %673
      %675 = vrot.lane.b32.xlu0 %v666, 73
      %v676 = vpop.permute.xlu0 %675
      %677 = vrot.lane.b32.xlu0 %v663, 73
      %v678 = vpop.permute.xlu0 %677
      %679 = vrot.lane.b32.xlu0 %v667, 73
      %v680 = vpop.permute.xlu0 %679
      %681 = vrot.lane.b32.xlu0 %v664, 73
      %v682 = vpop.permute.xlu0 %681
      %683 = vrot.lane.b32.xlu0 %v668, 73
      %v684 = vpop.permute.xlu0 %683
      %v685 = vlaneseq
      %v686 = vand.u32 %v685, 127
      %vm687 = vcmp.lt.s32.totalorder %v686, 73
      %v688 = vsel %vm687, %v678, %v682
      %v689 = vsel %vm687, %v680, %v684
      %v690 = vsel %vm687, %v674, %v678
      %v691 = vsel %vm687, %v676, %v680
      %v692 = vsel %vm687, %v670, %v674
      %v693 = vsel %vm687, %v672, %v676
      %v694 = vsel %vm687, %v682, %v670
      %v695 = vsel %vm687, %v684, %v672
      %v696 = vld [vmem:[%s10] ss:$8 sm:$0xf]
      %v698 = vlaneseq
      %v699 = vshrl.u32 %v698, 7
      %v700 = vsub.s32 0, %v699
      %v701 = vrot.slane %v696, %v700
      %v702 = vlaneseq
      %v703 = vshrl.u32 %v702, 7
      %v704 = vsub.s32 1, %v703
      %v705 = vrot.slane %v696, %v704
      %v706 = vlaneseq
      %v707 = vshrl.u32 %v706, 7
      %v708 = vsub.s32 2, %v707
      %v709 = vrot.slane %v696, %v708
      %v710 = vlaneseq
      %v711 = vshrl.u32 %v710, 7
      %v712 = vsub.s32 3, %v711
      %v713 = vrot.slane %v696, %v712
      %v718 = vmul.f32 %v694, %v701
      %v719 = vmul.f32 %v692, %v705
      %v720 = vmul.f32 %v690, %v709
      %v721 = vmul.f32 %v688, %v713
      %v722 = vmul.f32 %v695, %v701
      %v723 = vmul.f32 %v693, %v705
      %v724 = vmul.f32 %v691, %v709
      %v725 = vmul.f32 %v689, %v713
      %v726 = vpack.c.bf16 %v722, %v718
      %v727 = vpack.c.bf16 %v723, %v719
      %v728 = vpack.c.bf16 %v724, %v720
      %v729 = vpack.c.bf16 %v725, %v721
      %730 = vst [vmem:[#allocation2] sm:$0xff] %v726
      %731 = vst [vmem:[#allocation2 + $0x8] sm:$0xff] %v727
      %732 = vst [vmem:[#allocation2 + $0x10] sm:$0xff] %v728
      %733 = vst [vmem:[#allocation2 + $0x18] sm:$0xff] %v729
      %734 = vrot.lane.b32.xlu0 %v661, 72
      %v735 = vpop.permute.xlu0 %734
      %736 = vrot.lane.b32.xlu0 %v665, 72
      %v737 = vpop.permute.xlu0 %736
      %738 = vrot.lane.b32.xlu0 %v662, 72
      %v739 = vpop.permute.xlu0 %738
      %740 = vrot.lane.b32.xlu0 %v666, 72
      %v741 = vpop.permute.xlu0 %740
      %742 = vrot.lane.b32.xlu0 %v663, 72
      %v743 = vpop.permute.xlu0 %742
      %744 = vrot.lane.b32.xlu0 %v667, 72
      %v745 = vpop.permute.xlu0 %744
      %746 = vrot.lane.b32.xlu0 %v664, 72
      %v747 = vpop.permute.xlu0 %746
      %748 = vrot.lane.b32.xlu0 %v668, 72
      %v749 = vpop.permute.xlu0 %748
      %vm750 = vcmp.lt.s32.totalorder %v686, 72
      %v751 = vsel %vm750, %v743, %v747
      %v752 = vsel %vm750, %v745, %v749
      %v753 = vsel %vm750, %v739, %v743
      %v754 = vsel %vm750, %v741, %v745
      %v755 = vsel %vm750, %v735, %v739
      %v756 = vsel %vm750, %v737, %v741
      %v757 = vsel %vm750, %v747, %v735
      %v758 = vsel %vm750, %v749, %v737
      %s759 = scalar_lea.vmem %s10, 1
      %v760 = vld [vmem:[%s759] ss:$8 sm:$0xf]
      %v762 = vlaneseq
      %v763 = vshrl.u32 %v762, 7
      %v764 = vsub.s32 0, %v763
      %v765 = vrot.slane %v760, %v764
      %v766 = vlaneseq
      %v767 = vshrl.u32 %v766, 7
      %v768 = vsub.s32 1, %v767
      %v769 = vrot.slane %v760, %v768
      %v770 = vlaneseq
      %v771 = vshrl.u32 %v770, 7
      %v772 = vsub.s32 2, %v771
      %v773 = vrot.slane %v760, %v772
      %v774 = vlaneseq
      %v775 = vshrl.u32 %v774, 7
      %v776 = vsub.s32 3, %v775
      %v777 = vrot.slane %v760, %v776
      %v782 = vmul.f32 %v757, %v765
      %v783 = vmul.f32 %v755, %v769
      %v784 = vmul.f32 %v753, %v773
      %v785 = vmul.f32 %v751, %v777
      %v786 = vmul.f32 %v758, %v765
      %v787 = vmul.f32 %v756, %v769
      %v788 = vmul.f32 %v754, %v773
      %v789 = vmul.f32 %v752, %v777
      %v790 = vpack.c.bf16 %v786, %v782
      %v791 = vpack.c.bf16 %v787, %v783
      %v792 = vpack.c.bf16 %v788, %v784
      %v793 = vpack.c.bf16 %v789, %v785
      %794 = vst [vmem:[#allocation2 + $0x20] sm:$0xff] %v790
      %795 = vst [vmem:[#allocation2 + $0x28] sm:$0xff] %v791
      %796 = vst [vmem:[#allocation2 + $0x30] sm:$0xff] %v792
      %797 = vst [vmem:[#allocation2 + $0x38] sm:$0xff] %v793
      %798 = vrot.lane.b32.xlu0 %v661, 71
      %v799 = vpop.permute.xlu0 %798
      %800 = vrot.lane.b32.xlu0 %v665, 71
      %v801 = vpop.permute.xlu0 %800
      %802 = vrot.lane.b32.xlu0 %v662, 71
      %v803 = vpop.permute.xlu0 %802
      %804 = vrot.lane.b32.xlu0 %v666, 71
      %v805 = vpop.permute.xlu0 %804
      %806 = vrot.lane.b32.xlu0 %v663, 71
      %v807 = vpop.permute.xlu0 %806
      %808 = vrot.lane.b32.xlu0 %v667, 71
      %v809 = vpop.permute.xlu0 %808
      %810 = vrot.lane.b32.xlu0 %v664, 71
      %v811 = vpop.permute.xlu0 %810
      %812 = vrot.lane.b32.xlu0 %v668, 71
      %v813 = vpop.permute.xlu0 %812
      %vm814 = vcmp.lt.s32.totalorder %v686, 71
      %v815 = vsel %vm814, %v807, %v811
      %v816 = vsel %vm814, %v809, %v813
      %v817 = vsel %vm814, %v803, %v807
      %v818 = vsel %vm814, %v805, %v809
      %v819 = vsel %vm814, %v799, %v803
      %v820 = vsel %vm814, %v801, %v805
      %v821 = vsel %vm814, %v811, %v799
      %v822 = vsel %vm814, %v813, %v801
      %s823 = scalar_lea.vmem %s10, 2
      %v824 = vld [vmem:[%s823] ss:$8 sm:$0xf]
      %v826 = vlaneseq
      %v827 = vshrl.u32 %v826, 7
      %v828 = vsub.s32 0, %v827
      %v829 = vrot.slane %v824, %v828
      %v830 = vlaneseq
      %v831 = vshrl.u32 %v830, 7
      %v832 = vsub.s32 1, %v831
      %v833 = vrot.slane %v824, %v832
      %v834 = vlaneseq
      %v835 = vshrl.u32 %v834, 7
      %v836 = vsub.s32 2, %v835
      %v837 = vrot.slane %v824, %v836
      %v838 = vlaneseq
      %v839 = vshrl.u32 %v838, 7
      %v840 = vsub.s32 3, %v839
      %v841 = vrot.slane %v824, %v840
      %v846 = vmul.f32 %v821, %v829
      %v847 = vmul.f32 %v819, %v833
      %v848 = vmul.f32 %v817, %v837
      %v849 = vmul.f32 %v815, %v841
      %v850 = vmul.f32 %v822, %v829
      %v851 = vmul.f32 %v820, %v833
      %v852 = vmul.f32 %v818, %v837
      %v853 = vmul.f32 %v816, %v841
      %v854 = vpack.c.bf16 %v850, %v846
      %v855 = vpack.c.bf16 %v851, %v847
      %v856 = vpack.c.bf16 %v852, %v848
      %v857 = vpack.c.bf16 %v853, %v849
      %858 = vst [vmem:[#allocation2 + $0x40] sm:$0xff] %v854
      %859 = vst [vmem:[#allocation2 + $0x48] sm:$0xff] %v855
      %860 = vst [vmem:[#allocation2 + $0x50] sm:$0xff] %v856
      %861 = vst [vmem:[#allocation2 + $0x58] sm:$0xff] %v857
      %862 = vrot.lane.b32.xlu0 %v661, 65
      %v863 = vpop.permute.xlu0 %862
      %864 = vrot.lane.b32.xlu0 %v665, 65
      %v865 = vpop.permute.xlu0 %864
      %866 = vrot.lane.b32.xlu0 %v662, 65
      %v867 = vpop.permute.xlu0 %866
      %868 = vrot.lane.b32.xlu0 %v666, 65
      %v869 = vpop.permute.xlu0 %868
      %870 = vrot.lane.b32.xlu0 %v663, 65
      %v871 = vpop.permute.xlu0 %870
      %872 = vrot.lane.b32.xlu0 %v667, 65
      %v873 = vpop.permute.xlu0 %872
      %874 = vrot.lane.b32.xlu0 %v664, 65
      %v875 = vpop.permute.xlu0 %874
      %876 = vrot.lane.b32.xlu0 %v668, 65
      %v877 = vpop.permute.xlu0 %876
      %vm878 = vcmp.lt.s32.totalorder %v686, 65
      %v879 = vsel %vm878, %v871, %v875
      %v880 = vsel %vm878, %v873, %v877
      %v881 = vsel %vm878, %v867, %v871
      %v882 = vsel %vm878, %v869, %v873
      %v883 = vsel %vm878, %v863, %v867
      %v884 = vsel %vm878, %v865, %v869
      %v885 = vsel %vm878, %v875, %v863
      %v886 = vsel %vm878, %v877, %v865
      %s887 = scalar_lea.vmem %s10, 3
      %v888 = vld [vmem:[%s887] ss:$8 sm:$0xf]
      %v890 = vlaneseq
      %v891 = vshrl.u32 %v890, 7
      %v892 = vsub.s32 0, %v891
      %v893 = vrot.slane %v888, %v892
      %v894 = vlaneseq
      %v895 = vshrl.u32 %v894, 7
      %v896 = vsub.s32 1, %v895
      %v897 = vrot.slane %v888, %v896
      %v898 = vlaneseq
      %v899 = vshrl.u32 %v898, 7
      %v900 = vsub.s32 2, %v899
      %v901 = vrot.slane %v888, %v900
      %v902 = vlaneseq
      %v903 = vshrl.u32 %v902, 7
      %v904 = vsub.s32 3, %v903
      %v905 = vrot.slane %v888, %v904
      %v910 = vmul.f32 %v885, %v893
      %v911 = vmul.f32 %v883, %v897
      %v912 = vmul.f32 %v881, %v901
      %v913 = vmul.f32 %v879, %v905
      %v914 = vmul.f32 %v886, %v893
      %v915 = vmul.f32 %v884, %v897
      %v916 = vmul.f32 %v882, %v901
      %v917 = vmul.f32 %v880, %v905
      %v918 = vpack.c.bf16 %v914, %v910
      %v919 = vpack.c.bf16 %v915, %v911
      %v920 = vpack.c.bf16 %v916, %v912
      %v921 = vpack.c.bf16 %v917, %v913
      %922 = vst [vmem:[#allocation2 + $0x60] sm:$0xff] %v918
      %923 = vst [vmem:[#allocation2 + $0x68] sm:$0xff] %v919
      %924 = vst [vmem:[#allocation2 + $0x70] sm:$0xff] %v920
      %925 = vst [vmem:[#allocation2 + $0x78] sm:$0xff] %v921
      %926 = vrot.lane.b32.xlu0 %v661, 64
      %v927 = vpop.permute.xlu0 %926
      %928 = vrot.lane.b32.xlu0 %v665, 64
      %v929 = vpop.permute.xlu0 %928
      %930 = vrot.lane.b32.xlu0 %v662, 64
      %v931 = vpop.permute.xlu0 %930
      %932 = vrot.lane.b32.xlu0 %v666, 64
      %v933 = vpop.permute.xlu0 %932
      %934 = vrot.lane.b32.xlu0 %v663, 64
      %v935 = vpop.permute.xlu0 %934
      %936 = vrot.lane.b32.xlu0 %v667, 64
      %v937 = vpop.permute.xlu0 %936
      %938 = vrot.lane.b32.xlu0 %v664, 64
      %v939 = vpop.permute.xlu0 %938
      %940 = vrot.lane.b32.xlu0 %v668, 64
      %v941 = vpop.permute.xlu0 %940
      %vm942 = vcmp.lt.s32.totalorder %v686, 64
      %v943 = vsel %vm942, %v935, %v939
      %v944 = vsel %vm942, %v937, %v941
      %v945 = vsel %vm942, %v931, %v935
      %v946 = vsel %vm942, %v933, %v937
      %v947 = vsel %vm942, %v927, %v931
      %v948 = vsel %vm942, %v929, %v933
      %v949 = vsel %vm942, %v939, %v927
      %v950 = vsel %vm942, %v941, %v929
      %s951 = scalar_lea.vmem %s10, 4
      %v952 = vld [vmem:[%s951] ss:$8 sm:$0xf]
      %v954 = vlaneseq
      %v955 = vshrl.u32 %v954, 7
      %v956 = vsub.s32 0, %v955
      %v957 = vrot.slane %v952, %v956
      %v958 = vlaneseq
      %v959 = vshrl.u32 %v958, 7
      %v960 = vsub.s32 1, %v959
      %v961 = vrot.slane %v952, %v960
      %v962 = vlaneseq
      %v963 = vshrl.u32 %v962, 7
      %v964 = vsub.s32 2, %v963
      %v965 = vrot.slane %v952, %v964
      %v966 = vlaneseq
      %v967 = vshrl.u32 %v966, 7
      %v968 = vsub.s32 3, %v967
      %v969 = vrot.slane %v952, %v968
      %v974 = vmul.f32 %v949, %v957
      %v975 = vmul.f32 %v947, %v961
      %v976 = vmul.f32 %v945, %v965
      %v977 = vmul.f32 %v943, %v969
      %v978 = vmul.f32 %v950, %v957
      %v979 = vmul.f32 %v948, %v961
      %v980 = vmul.f32 %v946, %v965
      %v981 = vmul.f32 %v944, %v969
      %v982 = vpack.c.bf16 %v978, %v974
      %v983 = vpack.c.bf16 %v979, %v975
      %v984 = vpack.c.bf16 %v980, %v976
      %v985 = vpack.c.bf16 %v981, %v977
      %986 = vst [vmem:[#allocation2 + $0x80] sm:$0xff] %v982
      %987 = vst [vmem:[#allocation2 + $0x88] sm:$0xff] %v983
      %988 = vst [vmem:[#allocation2 + $0x90] sm:$0xff] %v984
      %989 = vst [vmem:[#allocation2 + $0x98] sm:$0xff] %v985
      %990 = vrot.lane.b32.xlu0 %v661, 63
      %v991 = vpop.permute.xlu0 %990
      %992 = vrot.lane.b32.xlu0 %v665, 63
      %v993 = vpop.permute.xlu0 %992
      %994 = vrot.lane.b32.xlu0 %v662, 63
      %v995 = vpop.permute.xlu0 %994
      %996 = vrot.lane.b32.xlu0 %v666, 63
      %v997 = vpop.permute.xlu0 %996
      %998 = vrot.lane.b32.xlu0 %v663, 63
      %v999 = vpop.permute.xlu0 %998
      %1000 = vrot.lane.b32.xlu0 %v667, 63
      %v1001 = vpop.permute.xlu0 %1000
      %1002 = vrot.lane.b32.xlu0 %v664, 63
      %v1003 = vpop.permute.xlu0 %1002
      %1004 = vrot.lane.b32.xlu0 %v668, 63
      %v1005 = vpop.permute.xlu0 %1004
      %vm1006 = vcmp.lt.s32.totalorder %v686, 63
      %v1007 = vsel %vm1006, %v999, %v1003
      %v1008 = vsel %vm1006, %v1001, %v1005
      %v1009 = vsel %vm1006, %v995, %v999
      %v1010 = vsel %vm1006, %v997, %v1001
      %v1011 = vsel %vm1006, %v991, %v995
      %v1012 = vsel %vm1006, %v993, %v997
      %v1013 = vsel %vm1006, %v1003, %v991
      %v1014 = vsel %vm1006, %v1005, %v993
      %s1015 = scalar_lea.vmem %s10, 5
      %v1016 = vld [vmem:[%s1015] ss:$8 sm:$0xf]
      %v1018 = vlaneseq
      %v1019 = vshrl.u32 %v1018, 7
      %v1020 = vsub.s32 0, %v1019
      %v1021 = vrot.slane %v1016, %v1020
      %v1022 = vlaneseq
      %v1023 = vshrl.u32 %v1022, 7
      %v1024 = vsub.s32 1, %v1023
      %v1025 = vrot.slane %v1016, %v1024
      %v1026 = vlaneseq
      %v1027 = vshrl.u32 %v1026, 7
      %v1028 = vsub.s32 2, %v1027
      %v1029 = vrot.slane %v1016, %v1028
      %v1030 = vlaneseq
      %v1031 = vshrl.u32 %v1030, 7
      %v1032 = vsub.s32 3, %v1031
      %v1033 = vrot.slane %v1016, %v1032
      %v1038 = vmul.f32 %v1013, %v1021
      %v1039 = vmul.f32 %v1011, %v1025
      %v1040 = vmul.f32 %v1009, %v1029
      %v1041 = vmul.f32 %v1007, %v1033
      %v1042 = vmul.f32 %v1014, %v1021
      %v1043 = vmul.f32 %v1012, %v1025
      %v1044 = vmul.f32 %v1010, %v1029
      %v1045 = vmul.f32 %v1008, %v1033
      %v1046 = vpack.c.bf16 %v1042, %v1038
      %v1047 = vpack.c.bf16 %v1043, %v1039
      %v1048 = vpack.c.bf16 %v1044, %v1040
      %v1049 = vpack.c.bf16 %v1045, %v1041
      %1050 = vst [vmem:[#allocation2 + $0xa0] sm:$0xff] %v1046
      %1051 = vst [vmem:[#allocation2 + $0xa8] sm:$0xff] %v1047
      %1052 = vst [vmem:[#allocation2 + $0xb0] sm:$0xff] %v1048
      %1053 = vst [vmem:[#allocation2 + $0xb8] sm:$0xff] %v1049
      %1054 = vrot.lane.b32.xlu0 %v661, 57
      %v1055 = vpop.permute.xlu0 %1054
      %1056 = vrot.lane.b32.xlu0 %v665, 57
      %v1057 = vpop.permute.xlu0 %1056
      %1058 = vrot.lane.b32.xlu0 %v662, 57
      %v1059 = vpop.permute.xlu0 %1058
      %1060 = vrot.lane.b32.xlu0 %v666, 57
      %v1061 = vpop.permute.xlu0 %1060
      %1062 = vrot.lane.b32.xlu0 %v663, 57
      %v1063 = vpop.permute.xlu0 %1062
      %1064 = vrot.lane.b32.xlu0 %v667, 57
      %v1065 = vpop.permute.xlu0 %1064
      %1066 = vrot.lane.b32.xlu0 %v664, 57
      %v1067 = vpop.permute.xlu0 %1066
      %1068 = vrot.lane.b32.xlu0 %v668, 57
      %v1069 = vpop.permute.xlu0 %1068
      %vm1070 = vcmp.lt.s32.totalorder %v686, 57
      %v1071 = vsel %vm1070, %v1063, %v1067
      %v1072 = vsel %vm1070, %v1065, %v1069
      %v1073 = vsel %vm1070, %v1059, %v1063
      %v1074 = vsel %vm1070, %v1061, %v1065
      %v1075 = vsel %vm1070, %v1055, %v1059
      %v1076 = vsel %vm1070, %v1057, %v1061
      %v1077 = vsel %vm1070, %v1067, %v1055
      %v1078 = vsel %vm1070, %v1069, %v1057
      %s1079 = scalar_lea.vmem %s10, 6
      %v1080 = vld [vmem:[%s1079] ss:$8 sm:$0xf]
      %v1082 = vlaneseq
      %v1083 = vshrl.u32 %v1082, 7
      %v1084 = vsub.s32 0, %v1083
      %v1085 = vrot.slane %v1080, %v1084
      %v1086 = vlaneseq
      %v1087 = vshrl.u32 %v1086, 7
      %v1088 = vsub.s32 1, %v1087
      %v1089 = vrot.slane %v1080, %v1088
      %v1090 = vlaneseq
      %v1091 = vshrl.u32 %v1090, 7
      %v1092 = vsub.s32 2, %v1091
      %v1093 = vrot.slane %v1080, %v1092
      %v1094 = vlaneseq
      %v1095 = vshrl.u32 %v1094, 7
      %v1096 = vsub.s32 3, %v1095
      %v1097 = vrot.slane %v1080, %v1096
      %v1102 = vmul.f32 %v1077, %v1085
      %v1103 = vmul.f32 %v1075, %v1089
      %v1104 = vmul.f32 %v1073, %v1093
      %v1105 = vmul.f32 %v1071, %v1097
      %v1106 = vmul.f32 %v1078, %v1085
      %v1107 = vmul.f32 %v1076, %v1089
      %v1108 = vmul.f32 %v1074, %v1093
      %v1109 = vmul.f32 %v1072, %v1097
      %v1110 = vpack.c.bf16 %v1106, %v1102
      %v1111 = vpack.c.bf16 %v1107, %v1103
      %v1112 = vpack.c.bf16 %v1108, %v1104
      %v1113 = vpack.c.bf16 %v1109, %v1105
      %1114 = vst [vmem:[#allocation2 + $0xc0] sm:$0xff] %v1110
      %1115 = vst [vmem:[#allocation2 + $0xc8] sm:$0xff] %v1111
      %1116 = vst [vmem:[#allocation2 + $0xd0] sm:$0xff] %v1112
      %1117 = vst [vmem:[#allocation2 + $0xd8] sm:$0xff] %v1113
      %1118 = vrot.lane.b32.xlu0 %v661, 56
      %v1119 = vpop.permute.xlu0 %1118
      %1120 = vrot.lane.b32.xlu0 %v665, 56
      %v1121 = vpop.permute.xlu0 %1120
      %1122 = vrot.lane.b32.xlu0 %v662, 56
      %v1123 = vpop.permute.xlu0 %1122
      %1124 = vrot.lane.b32.xlu0 %v666, 56
      %v1125 = vpop.permute.xlu0 %1124
      %1126 = vrot.lane.b32.xlu0 %v663, 56
      %v1127 = vpop.permute.xlu0 %1126
      %1128 = vrot.lane.b32.xlu0 %v667, 56
      %v1129 = vpop.permute.xlu0 %1128
      %1130 = vrot.lane.b32.xlu0 %v664, 56
      %v1131 = vpop.permute.xlu0 %1130
      %1132 = vrot.lane.b32.xlu0 %v668, 56
      %v1133 = vpop.permute.xlu0 %1132
      %vm1134 = vcmp.lt.s32.totalorder %v686, 56
      %v1135 = vsel %vm1134, %v1127, %v1131
      %v1136 = vsel %vm1134, %v1129, %v1133
      %v1137 = vsel %vm1134, %v1123, %v1127
      %v1138 = vsel %vm1134, %v1125, %v1129
      %v1139 = vsel %vm1134, %v1119, %v1123
      %v1140 = vsel %vm1134, %v1121, %v1125
      %v1141 = vsel %vm1134, %v1131, %v1119
      %v1142 = vsel %vm1134, %v1133, %v1121
      %s1143 = scalar_lea.vmem %s10, 7
      %v1144 = vld [vmem:[%s1143] ss:$8 sm:$0xf]
      %v1146 = vlaneseq
      %v1147 = vshrl.u32 %v1146, 7
      %v1148 = vsub.s32 0, %v1147
      %v1149 = vrot.slane %v1144, %v1148
      %v1150 = vlaneseq
      %v1151 = vshrl.u32 %v1150, 7
      %v1152 = vsub.s32 1, %v1151
      %v1153 = vrot.slane %v1144, %v1152
      %v1154 = vlaneseq
      %v1155 = vshrl.u32 %v1154, 7
      %v1156 = vsub.s32 2, %v1155
      %v1157 = vrot.slane %v1144, %v1156
      %v1158 = vlaneseq
      %v1159 = vshrl.u32 %v1158, 7
      %v1160 = vsub.s32 3, %v1159
      %v1161 = vrot.slane %v1144, %v1160
      %v1166 = vmul.f32 %v1141, %v1149
      %v1167 = vmul.f32 %v1139, %v1153
      %v1168 = vmul.f32 %v1137, %v1157
      %v1169 = vmul.f32 %v1135, %v1161
      %v1170 = vmul.f32 %v1142, %v1149
      %v1171 = vmul.f32 %v1140, %v1153
      %v1172 = vmul.f32 %v1138, %v1157
      %v1173 = vmul.f32 %v1136, %v1161
      %v1174 = vpack.c.bf16 %v1170, %v1166
      %v1175 = vpack.c.bf16 %v1171, %v1167
      %v1176 = vpack.c.bf16 %v1172, %v1168
      %v1177 = vpack.c.bf16 %v1173, %v1169
      %1178 = vst [vmem:[#allocation2 + $0xe0] sm:$0xff] %v1174
      %1179 = vst [vmem:[#allocation2 + $0xe8] sm:$0xff] %v1175
      %1180 = vst [vmem:[#allocation2 + $0xf0] sm:$0xff] %v1176
      %1181 = vst [vmem:[#allocation2 + $0xf8] sm:$0xff] %v1177
      %1182 = vrot.lane.b32.xlu0 %v661, 55
      %v1183 = vpop.permute.xlu0 %1182
      %1184 = vrot.lane.b32.xlu0 %v665, 55
      %v1185 = vpop.permute.xlu0 %1184
      %1186 = vrot.lane.b32.xlu0 %v662, 55
      %v1187 = vpop.permute.xlu0 %1186
      %1188 = vrot.lane.b32.xlu0 %v666, 55
      %v1189 = vpop.permute.xlu0 %1188
      %1190 = vrot.lane.b32.xlu0 %v663, 55
      %v1191 = vpop.permute.xlu0 %1190
      %1192 = vrot.lane.b32.xlu0 %v667, 55
      %v1193 = vpop.permute.xlu0 %1192
      %1194 = vrot.lane.b32.xlu0 %v664, 55
      %v1195 = vpop.permute.xlu0 %1194
      %1196 = vrot.lane.b32.xlu0 %v668, 55
      %v1197 = vpop.permute.xlu0 %1196
      %vm1198 = vcmp.lt.s32.totalorder %v686, 55
      %v1199 = vsel %vm1198, %v1191, %v1195
      %v1200 = vsel %vm1198, %v1193, %v1197
      %v1201 = vsel %vm1198, %v1187, %v1191
      %v1202 = vsel %vm1198, %v1189, %v1193
      %v1203 = vsel %vm1198, %v1183, %v1187
      %v1204 = vsel %vm1198, %v1185, %v1189
      %v1205 = vsel %vm1198, %v1195, %v1183
      %v1206 = vsel %vm1198, %v1197, %v1185
      %s1207 = scalar_lea.vmem %s10, 32
      %v1208 = vld [vmem:[%s1207] ss:$8 sm:$0xf]
      %v1210 = vlaneseq
      %v1211 = vshrl.u32 %v1210, 7
      %v1212 = vsub.s32 0, %v1211
      %v1213 = vrot.slane %v1208, %v1212
      %v1214 = vlaneseq
      %v1215 = vshrl.u32 %v1214, 7
      %v1216 = vsub.s32 1, %v1215
      %v1217 = vrot.slane %v1208, %v1216
      %v1218 = vlaneseq
      %v1219 = vshrl.u32 %v1218, 7
      %v1220 = vsub.s32 2, %v1219
      %v1221 = vrot.slane %v1208, %v1220
      %v1222 = vlaneseq
      %v1223 = vshrl.u32 %v1222, 7
      %v1224 = vsub.s32 3, %v1223
      %v1225 = vrot.slane %v1208, %v1224
      %v1230 = vmul.f32 %v1205, %v1213
      %v1231 = vmul.f32 %v1203, %v1217
      %v1232 = vmul.f32 %v1201, %v1221
      %v1233 = vmul.f32 %v1199, %v1225
      %v1234 = vmul.f32 %v1206, %v1213
      %v1235 = vmul.f32 %v1204, %v1217
      %v1236 = vmul.f32 %v1202, %v1221
      %v1237 = vmul.f32 %v1200, %v1225
      %v1238 = vpack.c.bf16 %v1234, %v1230
      %v1239 = vpack.c.bf16 %v1235, %v1231
      %v1240 = vpack.c.bf16 %v1236, %v1232
      %v1241 = vpack.c.bf16 %v1237, %v1233
      %1242 = vst [vmem:[#allocation2 + $0x100] sm:$0xff] %v1238
      %1243 = vst [vmem:[#allocation2 + $0x108] sm:$0xff] %v1239
      %1244 = vst [vmem:[#allocation2 + $0x110] sm:$0xff] %v1240
      %1245 = vst [vmem:[#allocation2 + $0x118] sm:$0xff] %v1241
      %1246 = vrot.lane.b32.xlu0 %v661, 9
      %v1247 = vpop.permute.xlu0 %1246
      %1248 = vrot.lane.b32.xlu0 %v665, 9
      %v1249 = vpop.permute.xlu0 %1248
      %1250 = vrot.lane.b32.xlu0 %v662, 9
      %v1251 = vpop.permute.xlu0 %1250
      %1252 = vrot.lane.b32.xlu0 %v666, 9
      %v1253 = vpop.permute.xlu0 %1252
      %1254 = vrot.lane.b32.xlu0 %v663, 9
      %v1255 = vpop.permute.xlu0 %1254
      %1256 = vrot.lane.b32.xlu0 %v667, 9
      %v1257 = vpop.permute.xlu0 %1256
      %1258 = vrot.lane.b32.xlu0 %v664, 9
      %v1259 = vpop.permute.xlu0 %1258
      %1260 = vrot.lane.b32.xlu0 %v668, 9
      %v1261 = vpop.permute.xlu0 %1260
      %vm1262 = vcmp.lt.s32.totalorder %v686, 9
      %v1263 = vsel %vm1262, %v1255, %v1259
      %v1264 = vsel %vm1262, %v1257, %v1261
      %v1265 = vsel %vm1262, %v1251, %v1255
      %v1266 = vsel %vm1262, %v1253, %v1257
      %v1267 = vsel %vm1262, %v1247, %v1251
      %v1268 = vsel %vm1262, %v1249, %v1253
      %v1269 = vsel %vm1262, %v1259, %v1247
      %v1270 = vsel %vm1262, %v1261, %v1249
      %s1271 = scalar_lea.vmem %s10, 33
      %v1272 = vld [vmem:[%s1271] ss:$8 sm:$0xf]
      %v1274 = vlaneseq
      %v1275 = vshrl.u32 %v1274, 7
      %v1276 = vsub.s32 0, %v1275
      %v1277 = vrot.slane %v1272, %v1276
      %v1278 = vlaneseq
      %v1279 = vshrl.u32 %v1278, 7
      %v1280 = vsub.s32 1, %v1279
      %v1281 = vrot.slane %v1272, %v1280
      %v1282 = vlaneseq
      %v1283 = vshrl.u32 %v1282, 7
      %v1284 = vsub.s32 2, %v1283
      %v1285 = vrot.slane %v1272, %v1284
      %v1286 = vlaneseq
      %v1287 = vshrl.u32 %v1286, 7
      %v1288 = vsub.s32 3, %v1287
      %v1289 = vrot.slane %v1272, %v1288
      %v1294 = vmul.f32 %v1269, %v1277
      %v1295 = vmul.f32 %v1267, %v1281
      %v1296 = vmul.f32 %v1265, %v1285
      %v1297 = vmul.f32 %v1263, %v1289
      %v1298 = vmul.f32 %v1270, %v1277
      %v1299 = vmul.f32 %v1268, %v1281
      %v1300 = vmul.f32 %v1266, %v1285
      %v1301 = vmul.f32 %v1264, %v1289
      %v1302 = vpack.c.bf16 %v1298, %v1294
      %v1303 = vpack.c.bf16 %v1299, %v1295
      %v1304 = vpack.c.bf16 %v1300, %v1296
      %v1305 = vpack.c.bf16 %v1301, %v1297
      %1306 = vst [vmem:[#allocation2 + $0x120] sm:$0xff] %v1302
      %1307 = vst [vmem:[#allocation2 + $0x128] sm:$0xff] %v1303
      %1308 = vst [vmem:[#allocation2 + $0x130] sm:$0xff] %v1304
      %1309 = vst [vmem:[#allocation2 + $0x138] sm:$0xff] %v1305
      %1310 = vrot.lane.b32.xlu0 %v661, 8
      %v1311 = vpop.permute.xlu0 %1310
      %1312 = vrot.lane.b32.xlu0 %v665, 8
      %v1313 = vpop.permute.xlu0 %1312
      %1314 = vrot.lane.b32.xlu0 %v662, 8
      %v1315 = vpop.permute.xlu0 %1314
      %1316 = vrot.lane.b32.xlu0 %v666, 8
      %v1317 = vpop.permute.xlu0 %1316
      %1318 = vrot.lane.b32.xlu0 %v663, 8
      %v1319 = vpop.permute.xlu0 %1318
      %1320 = vrot.lane.b32.xlu0 %v667, 8
      %v1321 = vpop.permute.xlu0 %1320
      %1322 = vrot.lane.b32.xlu0 %v664, 8
      %v1323 = vpop.permute.xlu0 %1322
      %1324 = vrot.lane.b32.xlu0 %v668, 8
      %v1325 = vpop.permute.xlu0 %1324
      %vm1326 = vcmp.lt.s32.totalorder %v686, 8
      %v1327 = vsel %vm1326, %v1319, %v1323
      %v1328 = vsel %vm1326, %v1321, %v1325
      %v1329 = vsel %vm1326, %v1315, %v1319
      %v1330 = vsel %vm1326, %v1317, %v1321
      %v1331 = vsel %vm1326, %v1311, %v1315
      %v1332 = vsel %vm1326, %v1313, %v1317
      %v1333 = vsel %vm1326, %v1323, %v1311
      %v1334 = vsel %vm1326, %v1325, %v1313
      %s1335 = scalar_lea.vmem %s10, 34
      %v1336 = vld [vmem:[%s1335] ss:$8 sm:$0xf]
      %v1338 = vlaneseq
      %v1339 = vshrl.u32 %v1338, 7
      %v1340 = vsub.s32 0, %v1339
      %v1341 = vrot.slane %v1336, %v1340
      %v1342 = vlaneseq
      %v1343 = vshrl.u32 %v1342, 7
      %v1344 = vsub.s32 1, %v1343
      %v1345 = vrot.slane %v1336, %v1344
      %v1346 = vlaneseq
      %v1347 = vshrl.u32 %v1346, 7
      %v1348 = vsub.s32 2, %v1347
      %v1349 = vrot.slane %v1336, %v1348
      %v1350 = vlaneseq
      %v1351 = vshrl.u32 %v1350, 7
      %v1352 = vsub.s32 3, %v1351
      %v1353 = vrot.slane %v1336, %v1352
      %v1358 = vmul.f32 %v1333, %v1341
      %v1359 = vmul.f32 %v1331, %v1345
      %v1360 = vmul.f32 %v1329, %v1349
      %v1361 = vmul.f32 %v1327, %v1353
      %v1362 = vmul.f32 %v1334, %v1341
      %v1363 = vmul.f32 %v1332, %v1345
      %v1364 = vmul.f32 %v1330, %v1349
      %v1365 = vmul.f32 %v1328, %v1353
      %v1366 = vpack.c.bf16 %v1362, %v1358
      %v1367 = vpack.c.bf16 %v1363, %v1359
      %v1368 = vpack.c.bf16 %v1364, %v1360
      %v1369 = vpack.c.bf16 %v1365, %v1361
      %1370 = vst [vmem:[#allocation2 + $0x140] sm:$0xff] %v1366
      %1371 = vst [vmem:[#allocation2 + $0x148] sm:$0xff] %v1367
      %1372 = vst [vmem:[#allocation2 + $0x150] sm:$0xff] %v1368
      %1373 = vst [vmem:[#allocation2 + $0x158] sm:$0xff] %v1369
      %1374 = vrot.lane.b32.xlu0 %v661, 7
      %v1375 = vpop.permute.xlu0 %1374
      %1376 = vrot.lane.b32.xlu0 %v665, 7
      %v1377 = vpop.permute.xlu0 %1376
      %1378 = vrot.lane.b32.xlu0 %v662, 7
      %v1379 = vpop.permute.xlu0 %1378
      %1380 = vrot.lane.b32.xlu0 %v666, 7
      %v1381 = vpop.permute.xlu0 %1380
      %1382 = vrot.lane.b32.xlu0 %v663, 7
      %v1383 = vpop.permute.xlu0 %1382
      %1384 = vrot.lane.b32.xlu0 %v667, 7
      %v1385 = vpop.permute.xlu0 %1384
      %1386 = vrot.lane.b32.xlu0 %v664, 7
      %v1387 = vpop.permute.xlu0 %1386
      %1388 = vrot.lane.b32.xlu0 %v668, 7
      %v1389 = vpop.permute.xlu0 %1388
      %vm1390 = vcmp.lt.s32.totalorder %v686, 7
      %v1391 = vsel %vm1390, %v1383, %v1387
      %v1392 = vsel %vm1390, %v1385, %v1389
      %v1393 = vsel %vm1390, %v1379, %v1383
      %v1394 = vsel %vm1390, %v1381, %v1385
      %v1395 = vsel %vm1390, %v1375, %v1379
      %v1396 = vsel %vm1390, %v1377, %v1381
      %v1397 = vsel %vm1390, %v1387, %v1375
      %v1398 = vsel %vm1390, %v1389, %v1377
      %s1399 = scalar_lea.vmem %s10, 35
      %v1400 = vld [vmem:[%s1399] ss:$8 sm:$0xf]
      %v1402 = vlaneseq
      %v1403 = vshrl.u32 %v1402, 7
      %v1404 = vsub.s32 0, %v1403
      %v1405 = vrot.slane %v1400, %v1404
      %v1406 = vlaneseq
      %v1407 = vshrl.u32 %v1406, 7
      %v1408 = vsub.s32 1, %v1407
      %v1409 = vrot.slane %v1400, %v1408
      %v1410 = vlaneseq
      %v1411 = vshrl.u32 %v1410, 7
      %v1412 = vsub.s32 2, %v1411
      %v1413 = vrot.slane %v1400, %v1412
      %v1414 = vlaneseq
      %v1415 = vshrl.u32 %v1414, 7
      %v1416 = vsub.s32 3, %v1415
      %v1417 = vrot.slane %v1400, %v1416
      %v1422 = vmul.f32 %v1397, %v1405
      %v1423 = vmul.f32 %v1395, %v1409
      %v1424 = vmul.f32 %v1393, %v1413
      %v1425 = vmul.f32 %v1391, %v1417
      %v1426 = vmul.f32 %v1398, %v1405
      %v1427 = vmul.f32 %v1396, %v1409
      %v1428 = vmul.f32 %v1394, %v1413
      %v1429 = vmul.f32 %v1392, %v1417
      %v1430 = vpack.c.bf16 %v1426, %v1422
      %v1431 = vpack.c.bf16 %v1427, %v1423
      %v1432 = vpack.c.bf16 %v1428, %v1424
      %v1433 = vpack.c.bf16 %v1429, %v1425
      %1434 = vst [vmem:[#allocation2 + $0x160] sm:$0xff] %v1430
      %1435 = vst [vmem:[#allocation2 + $0x168] sm:$0xff] %v1431
      %1436 = vst [vmem:[#allocation2 + $0x170] sm:$0xff] %v1432
      %1437 = vst [vmem:[#allocation2 + $0x178] sm:$0xff] %v1433
      %1438 = vrot.lane.b32.xlu0 %v661, 1
      %v1439 = vpop.permute.xlu0 %1438
      %1440 = vrot.lane.b32.xlu0 %v665, 1
      %v1441 = vpop.permute.xlu0 %1440
      %1442 = vrot.lane.b32.xlu0 %v662, 1
      %v1443 = vpop.permute.xlu0 %1442
      %1444 = vrot.lane.b32.xlu0 %v666, 1
      %v1445 = vpop.permute.xlu0 %1444
      %1446 = vrot.lane.b32.xlu0 %v663, 1
      %v1447 = vpop.permute.xlu0 %1446
      %1448 = vrot.lane.b32.xlu0 %v667, 1
      %v1449 = vpop.permute.xlu0 %1448
      %1450 = vrot.lane.b32.xlu0 %v664, 1
      %v1451 = vpop.permute.xlu0 %1450
      %1452 = vrot.lane.b32.xlu0 %v668, 1
      %v1453 = vpop.permute.xlu0 %1452
      %vm1454 = vcmp.lt.s32.totalorder %v686, 1
      %v1455 = vsel %vm1454, %v1447, %v1451
      %v1456 = vsel %vm1454, %v1449, %v1453
      %v1457 = vsel %vm1454, %v1443, %v1447
      %v1458 = vsel %vm1454, %v1445, %v1449
      %v1459 = vsel %vm1454, %v1439, %v1443
      %v1460 = vsel %vm1454, %v1441, %v1445
      %v1461 = vsel %vm1454, %v1451, %v1439
      %v1462 = vsel %vm1454, %v1453, %v1441
      %s1463 = scalar_lea.vmem %s10, 36
      %v1464 = vld [vmem:[%s1463] ss:$8 sm:$0xf]
      %v1466 = vlaneseq
      %v1467 = vshrl.u32 %v1466, 7
      %v1468 = vsub.s32 0, %v1467
      %v1469 = vrot.slane %v1464, %v1468
      %v1470 = vlaneseq
      %v1471 = vshrl.u32 %v1470, 7
      %v1472 = vsub.s32 1, %v1471
      %v1473 = vrot.slane %v1464, %v1472
      %v1474 = vlaneseq
      %v1475 = vshrl.u32 %v1474, 7
      %v1476 = vsub.s32 2, %v1475
      %v1477 = vrot.slane %v1464, %v1476
      %v1478 = vlaneseq
      %v1479 = vshrl.u32 %v1478, 7
      %v1480 = vsub.s32 3, %v1479
      %v1481 = vrot.slane %v1464, %v1480
      %v1486 = vmul.f32 %v1461, %v1469
      %v1487 = vmul.f32 %v1459, %v1473
      %v1488 = vmul.f32 %v1457, %v1477
      %v1489 = vmul.f32 %v1455, %v1481
      %v1490 = vmul.f32 %v1462, %v1469
      %v1491 = vmul.f32 %v1460, %v1473
      %v1492 = vmul.f32 %v1458, %v1477
      %v1493 = vmul.f32 %v1456, %v1481
      %v1494 = vpack.c.bf16 %v1490, %v1486
      %v1495 = vpack.c.bf16 %v1491, %v1487
      %v1496 = vpack.c.bf16 %v1492, %v1488
      %v1497 = vpack.c.bf16 %v1493, %v1489
      %1498 = vst [vmem:[#allocation2 + $0x180] sm:$0xff] %v1494
      %1499 = vst [vmem:[#allocation2 + $0x188] sm:$0xff] %v1495
      %1500 = vst [vmem:[#allocation2 + $0x190] sm:$0xff] %v1496
      %1501 = vst [vmem:[#allocation2 + $0x198] sm:$0xff] %v1497
      %s1502 = scalar_lea.vmem %s10, 37
      %v1503 = vld [vmem:[%s1502] ss:$8 sm:$0xf]
      %v1505 = vlaneseq
      %v1506 = vshrl.u32 %v1505, 7
      %v1507 = vsub.s32 0, %v1506
      %v1508 = vrot.slane %v1503, %v1507
      %v1509 = vlaneseq
      %v1510 = vshrl.u32 %v1509, 7
      %v1511 = vsub.s32 1, %v1510
      %v1512 = vrot.slane %v1503, %v1511
      %v1513 = vlaneseq
      %v1514 = vshrl.u32 %v1513, 7
      %v1515 = vsub.s32 2, %v1514
      %v1516 = vrot.slane %v1503, %v1515
      %v1517 = vlaneseq
      %v1518 = vshrl.u32 %v1517, 7
      %v1519 = vsub.s32 3, %v1518
      %v1520 = vrot.slane %v1503, %v1519
      %v1525 = vmul.f32 %v661, %v1508
      %v1526 = vmul.f32 %v662, %v1512
      %v1527 = vmul.f32 %v663, %v1516
      %v1528 = vmul.f32 %v664, %v1520
      %v1529 = vmul.f32 %v665, %v1508
      %v1530 = vmul.f32 %v666, %v1512
      %v1531 = vmul.f32 %v667, %v1516
      %v1532 = vmul.f32 %v668, %v1520
      %v1533 = vpack.c.bf16 %v1529, %v1525
      %v1534 = vpack.c.bf16 %v1530, %v1526
      %v1535 = vpack.c.bf16 %v1531, %v1527
      %v1536 = vpack.c.bf16 %v1532, %v1528
      %1537 = vst [vmem:[#allocation2 + $0x1a0] sm:$0xff] %v1533
      %1538 = vst [vmem:[#allocation2 + $0x1a8] sm:$0xff] %v1534
      %1539 = vst [vmem:[#allocation2 + $0x1b0] sm:$0xff] %v1535
      %1540 = vst [vmem:[#allocation2 + $0x1b8] sm:$0xff] %v1536
      %1541 = vrot.lane.b32.xlu0 %v661, 127
      %v1542 = vpop.permute.xlu0 %1541
      %1543 = vrot.lane.b32.xlu0 %v665, 127
      %v1544 = vpop.permute.xlu0 %1543
      %1545 = vrot.lane.b32.xlu0 %v662, 127
      %v1546 = vpop.permute.xlu0 %1545
      %1547 = vrot.lane.b32.xlu0 %v666, 127
      %v1548 = vpop.permute.xlu0 %1547
      %1549 = vrot.lane.b32.xlu0 %v663, 127
      %v1550 = vpop.permute.xlu0 %1549
      %1551 = vrot.lane.b32.xlu0 %v667, 127
      %v1552 = vpop.permute.xlu0 %1551
      %1553 = vrot.lane.b32.xlu0 %v664, 127
      %v1554 = vpop.permute.xlu0 %1553
      %1555 = vrot.lane.b32.xlu0 %v668, 127
      %v1556 = vpop.permute.xlu0 %1555
      %vm1557 = vcmp.lt.s32.totalorder %v686, 127
      %v1558 = vsel %vm1557, %v1550, %v1554
      %v1559 = vsel %vm1557, %v1552, %v1556
      %v1560 = vsel %vm1557, %v1546, %v1550
      %v1561 = vsel %vm1557, %v1548, %v1552
      %v1562 = vsel %vm1557, %v1542, %v1546
      %v1563 = vsel %vm1557, %v1544, %v1548
      %v1564 = vsel %vm1557, %v1554, %v1542
      %v1565 = vsel %vm1557, %v1556, %v1544
      %s1566 = scalar_lea.vmem %s10, 38
      %v1567 = vld [vmem:[%s1566] ss:$8 sm:$0xf]
      %v1569 = vlaneseq
      %v1570 = vshrl.u32 %v1569, 7
      %v1571 = vsub.s32 0, %v1570
      %v1572 = vrot.slane %v1567, %v1571
      %v1573 = vlaneseq
      %v1574 = vshrl.u32 %v1573, 7
      %v1575 = vsub.s32 1, %v1574
      %v1576 = vrot.slane %v1567, %v1575
      %v1577 = vlaneseq
      %v1578 = vshrl.u32 %v1577, 7
      %v1579 = vsub.s32 2, %v1578
      %v1580 = vrot.slane %v1567, %v1579
      %v1581 = vlaneseq
      %v1582 = vshrl.u32 %v1581, 7
      %v1583 = vsub.s32 3, %v1582
      %v1584 = vrot.slane %v1567, %v1583
      %v1589 = vmul.f32 %v1562, %v1572
      %v1590 = vmul.f32 %v1560, %v1576
      %v1591 = vmul.f32 %v1558, %v1580
      %v1592 = vmul.f32 %v1564, %v1584
      %v1593 = vmul.f32 %v1563, %v1572
      %v1594 = vmul.f32 %v1561, %v1576
      %v1595 = vmul.f32 %v1559, %v1580
      %v1596 = vmul.f32 %v1565, %v1584
      %v1597 = vpack.c.bf16 %v1593, %v1589
      %v1598 = vpack.c.bf16 %v1594, %v1590
      %v1599 = vpack.c.bf16 %v1595, %v1591
      %v1600 = vpack.c.bf16 %v1596, %v1592
      %1601 = vst [vmem:[#allocation2 + $0x1c0] sm:$0xff] %v1597
      %1602 = vst [vmem:[#allocation2 + $0x1c8] sm:$0xff] %v1598
      %1603 = vst [vmem:[#allocation2 + $0x1d0] sm:$0xff] %v1599
      %1604 = vst [vmem:[#allocation2 + $0x1d8] sm:$0xff] %v1600
      %1605 = vrot.lane.b32.xlu0 %v661, 121
      %v1606 = vpop.permute.xlu0 %1605
      %1607 = vrot.lane.b32.xlu0 %v665, 121
      %v1608 = vpop.permute.xlu0 %1607
      %1609 = vrot.lane.b32.xlu0 %v662, 121
      %v1610 = vpop.permute.xlu0 %1609
      %1611 = vrot.lane.b32.xlu0 %v666, 121
      %v1612 = vpop.permute.xlu0 %1611
      %1613 = vrot.lane.b32.xlu0 %v663, 121
      %v1614 = vpop.permute.xlu0 %1613
      %1615 = vrot.lane.b32.xlu0 %v667, 121
      %v1616 = vpop.permute.xlu0 %1615
      %1617 = vrot.lane.b32.xlu0 %v664, 121
      %v1618 = vpop.permute.xlu0 %1617
      %1619 = vrot.lane.b32.xlu0 %v668, 121
      %v1620 = vpop.permute.xlu0 %1619
      %vm1621 = vcmp.lt.s32.totalorder %v686, 121
      %v1622 = vsel %vm1621, %v1614, %v1618
      %v1623 = vsel %vm1621, %v1616, %v1620
      %v1624 = vsel %vm1621, %v1610, %v1614
      %v1625 = vsel %vm1621, %v1612, %v1616
      %v1626 = vsel %vm1621, %v1606, %v1610
      %v1627 = vsel %vm1621, %v1608, %v1612
      %v1628 = vsel %vm1621, %v1618, %v1606
      %v1629 = vsel %vm1621, %v1620, %v1608
      %s1630 = scalar_lea.vmem %s10, 39
      %v1631 = vld [vmem:[%s1630] ss:$8 sm:$0xf]
      %v1633 = vlaneseq
      %v1634 = vshrl.u32 %v1633, 7
      %v1635 = vsub.s32 0, %v1634
      %v1636 = vrot.slane %v1631, %v1635
      %v1637 = vlaneseq
      %v1638 = vshrl.u32 %v1637, 7
      %v1639 = vsub.s32 1, %v1638
      %v1640 = vrot.slane %v1631, %v1639
      %v1641 = vlaneseq
      %v1642 = vshrl.u32 %v1641, 7
      %v1643 = vsub.s32 2, %v1642
      %v1644 = vrot.slane %v1631, %v1643
      %v1645 = vlaneseq
      %v1646 = vshrl.u32 %v1645, 7
      %v1647 = vsub.s32 3, %v1646
      %v1648 = vrot.slane %v1631, %v1647
      %v1653 = vmul.f32 %v1626, %v1636
      %v1654 = vmul.f32 %v1624, %v1640
      %v1655 = vmul.f32 %v1622, %v1644
      %v1656 = vmul.f32 %v1628, %v1648
      %v1657 = vmul.f32 %v1627, %v1636
      %v1658 = vmul.f32 %v1625, %v1640
      %v1659 = vmul.f32 %v1623, %v1644
      %v1660 = vmul.f32 %v1629, %v1648
      %v1661 = vpack.c.bf16 %v1657, %v1653
      %v1662 = vpack.c.bf16 %v1658, %v1654
      %v1663 = vpack.c.bf16 %v1659, %v1655
      %v1664 = vpack.c.bf16 %v1660, %v1656
      %1665 = vst [vmem:[#allocation2 + $0x1e0] sm:$0xff] %v1661
      %1666 = vst [vmem:[#allocation2 + $0x1e8] sm:$0xff] %v1662
      %1667 = vst [vmem:[#allocation2 + $0x1f0] sm:$0xff] %v1663
      %1668 = vst [vmem:[#allocation2 + $0x1f8] sm:$0xff] %v1664
      %1669 = vrot.lane.b32.xlu0 %v661, 120
      %v1670 = vpop.permute.xlu0 %1669
      %1671 = vrot.lane.b32.xlu0 %v665, 120
      %v1672 = vpop.permute.xlu0 %1671
      %1673 = vrot.lane.b32.xlu0 %v662, 120
      %v1674 = vpop.permute.xlu0 %1673
      %1675 = vrot.lane.b32.xlu0 %v666, 120
      %v1676 = vpop.permute.xlu0 %1675
      %1677 = vrot.lane.b32.xlu0 %v663, 120
      %v1678 = vpop.permute.xlu0 %1677
      %1679 = vrot.lane.b32.xlu0 %v667, 120
      %v1680 = vpop.permute.xlu0 %1679
      %1681 = vrot.lane.b32.xlu0 %v664, 120
      %v1682 = vpop.permute.xlu0 %1681
      %1683 = vrot.lane.b32.xlu0 %v668, 120
      %v1684 = vpop.permute.xlu0 %1683
      %vm1685 = vcmp.lt.s32.totalorder %v686, 120
      %v1686 = vsel %vm1685, %v1678, %v1682
      %v1687 = vsel %vm1685, %v1680, %v1684
      %v1688 = vsel %vm1685, %v1674, %v1678
      %v1689 = vsel %vm1685, %v1676, %v1680
      %v1690 = vsel %vm1685, %v1670, %v1674
      %v1691 = vsel %vm1685, %v1672, %v1676
      %v1692 = vsel %vm1685, %v1682, %v1670
      %v1693 = vsel %vm1685, %v1684, %v1672
      %s1694 = scalar_lea.vmem %s10, 64
      %v1695 = vld [vmem:[%s1694] ss:$8 sm:$0xf]
      %v1697 = vlaneseq
      %v1698 = vshrl.u32 %v1697, 7
      %v1699 = vsub.s32 0, %v1698
      %v1700 = vrot.slane %v1695, %v1699
      %v1701 = vlaneseq
      %v1702 = vshrl.u32 %v1701, 7
      %v1703 = vsub.s32 1, %v1702
      %v1704 = vrot.slane %v1695, %v1703
      %v1705 = vlaneseq
      %v1706 = vshrl.u32 %v1705, 7
      %v1707 = vsub.s32 2, %v1706
      %v1708 = vrot.slane %v1695, %v1707
      %v1709 = vlaneseq
      %v1710 = vshrl.u32 %v1709, 7
      %v1711 = vsub.s32 3, %v1710
      %v1712 = vrot.slane %v1695, %v1711
      %v1717 = vmul.f32 %v1690, %v1700
      %v1718 = vmul.f32 %v1688, %v1704
      %v1719 = vmul.f32 %v1686, %v1708
      %v1720 = vmul.f32 %v1692, %v1712
      %v1721 = vmul.f32 %v1691, %v1700
      %v1722 = vmul.f32 %v1689, %v1704
      %v1723 = vmul.f32 %v1687, %v1708
      %v1724 = vmul.f32 %v1693, %v1712
      %v1725 = vpack.c.bf16 %v1721, %v1717
      %v1726 = vpack.c.bf16 %v1722, %v1718
      %v1727 = vpack.c.bf16 %v1723, %v1719
      %v1728 = vpack.c.bf16 %v1724, %v1720
      %1729 = vst [vmem:[#allocation2 + $0x200] sm:$0xff] %v1725
      %1730 = vst [vmem:[#allocation2 + $0x208] sm:$0xff] %v1726
      %1731 = vst [vmem:[#allocation2 + $0x210] sm:$0xff] %v1727
      %1732 = vst [vmem:[#allocation2 + $0x218] sm:$0xff] %v1728
      %1733 = vrot.lane.b32.xlu0 %v661, 119
      %v1734 = vpop.permute.xlu0 %1733
      %1735 = vrot.lane.b32.xlu0 %v665, 119
      %v1736 = vpop.permute.xlu0 %1735
      %1737 = vrot.lane.b32.xlu0 %v662, 119
      %v1738 = vpop.permute.xlu0 %1737
      %1739 = vrot.lane.b32.xlu0 %v666, 119
      %v1740 = vpop.permute.xlu0 %1739
      %1741 = vrot.lane.b32.xlu0 %v663, 119
      %v1742 = vpop.permute.xlu0 %1741
      %1743 = vrot.lane.b32.xlu0 %v667, 119
      %v1744 = vpop.permute.xlu0 %1743
      %1745 = vrot.lane.b32.xlu0 %v664, 119
      %v1746 = vpop.permute.xlu0 %1745
      %1747 = vrot.lane.b32.xlu0 %v668, 119
      %v1748 = vpop.permute.xlu0 %1747
      %vm1749 = vcmp.lt.s32.totalorder %v686, 119
      %v1750 = vsel %vm1749, %v1742, %v1746
      %v1751 = vsel %vm1749, %v1744, %v1748
      %v1752 = vsel %vm1749, %v1738, %v1742
      %v1753 = vsel %vm1749, %v1740, %v1744
      %v1754 = vsel %vm1749, %v1734, %v1738
      %v1755 = vsel %vm1749, %v1736, %v1740
      %v1756 = vsel %vm1749, %v1746, %v1734
      %v1757 = vsel %vm1749, %v1748, %v1736
      %s1758 = scalar_lea.vmem %s10, 65
      %v1759 = vld [vmem:[%s1758] ss:$8 sm:$0xf]
      %v1761 = vlaneseq
      %v1762 = vshrl.u32 %v1761, 7
      %v1763 = vsub.s32 0, %v1762
      %v1764 = vrot.slane %v1759, %v1763
      %v1765 = vlaneseq
      %v1766 = vshrl.u32 %v1765, 7
      %v1767 = vsub.s32 1, %v1766
      %v1768 = vrot.slane %v1759, %v1767
      %v1769 = vlaneseq
      %v1770 = vshrl.u32 %v1769, 7
      %v1771 = vsub.s32 2, %v1770
      %v1772 = vrot.slane %v1759, %v1771
      %v1773 = vlaneseq
      %v1774 = vshrl.u32 %v1773, 7
      %v1775 = vsub.s32 3, %v1774
      %v1776 = vrot.slane %v1759, %v1775
      %v1781 = vmul.f32 %v1754, %v1764
      %v1782 = vmul.f32 %v1752, %v1768
      %v1783 = vmul.f32 %v1750, %v1772
      %v1784 = vmul.f32 %v1756, %v1776
      %v1785 = vmul.f32 %v1755, %v1764
      %v1786 = vmul.f32 %v1753, %v1768
      %v1787 = vmul.f32 %v1751, %v1772
      %v1788 = vmul.f32 %v1757, %v1776
      %v1789 = vpack.c.bf16 %v1785, %v1781
      %v1790 = vpack.c.bf16 %v1786, %v1782
      %v1791 = vpack.c.bf16 %v1787, %v1783
      %v1792 = vpack.c.bf16 %v1788, %v1784
      %1793 = vst [vmem:[#allocation2 + $0x220] sm:$0xff] %v1789
      %1794 = vst [vmem:[#allocation2 + $0x228] sm:$0xff] %v1790
      %1795 = vst [vmem:[#allocation2 + $0x230] sm:$0xff] %v1791
      %1796 = vst [vmem:[#allocation2 + $0x238] sm:$0xff] %v1792
      %s1797 = scalar_lea.vmem %s10, 66
      %v1798 = vld [vmem:[%s1797] ss:$8 sm:$0xf]
      %v1800 = vlaneseq
      %v1801 = vshrl.u32 %v1800, 7
      %v1802 = vsub.s32 0, %v1801
      %v1803 = vrot.slane %v1798, %v1802
      %v1804 = vlaneseq
      %v1805 = vshrl.u32 %v1804, 7
      %v1806 = vsub.s32 1, %v1805
      %v1807 = vrot.slane %v1798, %v1806
      %v1808 = vlaneseq
      %v1809 = vshrl.u32 %v1808, 7
      %v1810 = vsub.s32 2, %v1809
      %v1811 = vrot.slane %v1798, %v1810
      %v1812 = vlaneseq
      %v1813 = vshrl.u32 %v1812, 7
      %v1814 = vsub.s32 3, %v1813
      %v1815 = vrot.slane %v1798, %v1814
      %v1820 = vmul.f32 %v692, %v1803
      %v1821 = vmul.f32 %v690, %v1807
      %v1822 = vmul.f32 %v688, %v1811
      %v1823 = vmul.f32 %v694, %v1815
      %v1824 = vmul.f32 %v693, %v1803
      %v1825 = vmul.f32 %v691, %v1807
      %v1826 = vmul.f32 %v689, %v1811
      %v1827 = vmul.f32 %v695, %v1815
      %v1828 = vpack.c.bf16 %v1824, %v1820
      %v1829 = vpack.c.bf16 %v1825, %v1821
      %v1830 = vpack.c.bf16 %v1826, %v1822
      %v1831 = vpack.c.bf16 %v1827, %v1823
      %1832 = vst [vmem:[#allocation2 + $0x240] sm:$0xff] %v1828
      %1833 = vst [vmem:[#allocation2 + $0x248] sm:$0xff] %v1829
      %1834 = vst [vmem:[#allocation2 + $0x250] sm:$0xff] %v1830
      %1835 = vst [vmem:[#allocation2 + $0x258] sm:$0xff] %v1831
      %s1836 = scalar_lea.vmem %s10, 67
      %v1837 = vld [vmem:[%s1836] ss:$8 sm:$0xf]
      %v1839 = vlaneseq
      %v1840 = vshrl.u32 %v1839, 7
      %v1841 = vsub.s32 0, %v1840
      %v1842 = vrot.slane %v1837, %v1841
      %v1843 = vlaneseq
      %v1844 = vshrl.u32 %v1843, 7
      %v1845 = vsub.s32 1, %v1844
      %v1846 = vrot.slane %v1837, %v1845
      %v1847 = vlaneseq
      %v1848 = vshrl.u32 %v1847, 7
      %v1849 = vsub.s32 2, %v1848
      %v1850 = vrot.slane %v1837, %v1849
      %v1851 = vlaneseq
      %v1852 = vshrl.u32 %v1851, 7
      %v1853 = vsub.s32 3, %v1852
      %v1854 = vrot.slane %v1837, %v1853
      %v1859 = vmul.f32 %v755, %v1842
      %v1860 = vmul.f32 %v753, %v1846
      %v1861 = vmul.f32 %v751, %v1850
      %v1862 = vmul.f32 %v757, %v1854
      %v1863 = vmul.f32 %v756, %v1842
      %v1864 = vmul.f32 %v754, %v1846
      %v1865 = vmul.f32 %v752, %v1850
      %v1866 = vmul.f32 %v758, %v1854
      %v1867 = vpack.c.bf16 %v1863, %v1859
      %v1868 = vpack.c.bf16 %v1864, %v1860
      %v1869 = vpack.c.bf16 %v1865, %v1861
      %v1870 = vpack.c.bf16 %v1866, %v1862
      %1871 = vst [vmem:[#allocation2 + $0x260] sm:$0xff] %v1867
      %1872 = vst [vmem:[#allocation2 + $0x268] sm:$0xff] %v1868
      %1873 = vst [vmem:[#allocation2 + $0x270] sm:$0xff] %v1869
      %1874 = vst [vmem:[#allocation2 + $0x278] sm:$0xff] %v1870
      %s1875 = scalar_lea.vmem %s10, 68
      %v1876 = vld [vmem:[%s1875] ss:$8 sm:$0xf]
      %v1878 = vlaneseq
      %v1879 = vshrl.u32 %v1878, 7
      %v1880 = vsub.s32 0, %v1879
      %v1881 = vrot.slane %v1876, %v1880
      %v1882 = vlaneseq
      %v1883 = vshrl.u32 %v1882, 7
      %v1884 = vsub.s32 1, %v1883
      %v1885 = vrot.slane %v1876, %v1884
      %v1886 = vlaneseq
      %v1887 = vshrl.u32 %v1886, 7
      %v1888 = vsub.s32 2, %v1887
      %v1889 = vrot.slane %v1876, %v1888
      %v1890 = vlaneseq
      %v1891 = vshrl.u32 %v1890, 7
      %v1892 = vsub.s32 3, %v1891
      %v1893 = vrot.slane %v1876, %v1892
      %v1898 = vmul.f32 %v819, %v1881
      %v1899 = vmul.f32 %v817, %v1885
      %v1900 = vmul.f32 %v815, %v1889
      %v1901 = vmul.f32 %v821, %v1893
      %v1902 = vmul.f32 %v820, %v1881
      %v1903 = vmul.f32 %v818, %v1885
      %v1904 = vmul.f32 %v816, %v1889
      %v1905 = vmul.f32 %v822, %v1893
      %v1906 = vpack.c.bf16 %v1902, %v1898
      %v1907 = vpack.c.bf16 %v1903, %v1899
      %v1908 = vpack.c.bf16 %v1904, %v1900
      %v1909 = vpack.c.bf16 %v1905, %v1901
      %1910 = vst [vmem:[#allocation2 + $0x280] sm:$0xff] %v1906
      %1911 = vst [vmem:[#allocation2 + $0x288] sm:$0xff] %v1907
      %1912 = vst [vmem:[#allocation2 + $0x290] sm:$0xff] %v1908
      %1913 = vst [vmem:[#allocation2 + $0x298] sm:$0xff] %v1909
      %s1914 = scalar_lea.vmem %s10, 69
      %v1915 = vld [vmem:[%s1914] ss:$8 sm:$0xf]
      %v1917 = vlaneseq
      %v1918 = vshrl.u32 %v1917, 7
      %v1919 = vsub.s32 0, %v1918
      %v1920 = vrot.slane %v1915, %v1919
      %v1921 = vlaneseq
      %v1922 = vshrl.u32 %v1921, 7
      %v1923 = vsub.s32 1, %v1922
      %v1924 = vrot.slane %v1915, %v1923
      %v1925 = vlaneseq
      %v1926 = vshrl.u32 %v1925, 7
      %v1927 = vsub.s32 2, %v1926
      %v1928 = vrot.slane %v1915, %v1927
      %v1929 = vlaneseq
      %v1930 = vshrl.u32 %v1929, 7
      %v1931 = vsub.s32 3, %v1930
      %v1932 = vrot.slane %v1915, %v1931
      %v1937 = vmul.f32 %v883, %v1920
      %v1938 = vmul.f32 %v881, %v1924
      %v1939 = vmul.f32 %v879, %v1928
      %v1940 = vmul.f32 %v885, %v1932
      %v1941 = vmul.f32 %v884, %v1920
      %v1942 = vmul.f32 %v882, %v1924
      %v1943 = vmul.f32 %v880, %v1928
      %v1944 = vmul.f32 %v886, %v1932
      %v1945 = vpack.c.bf16 %v1941, %v1937
      %v1946 = vpack.c.bf16 %v1942, %v1938
      %v1947 = vpack.c.bf16 %v1943, %v1939
      %v1948 = vpack.c.bf16 %v1944, %v1940
      %1949 = vst [vmem:[#allocation2 + $0x2a0] sm:$0xff] %v1945
      %1950 = vst [vmem:[#allocation2 + $0x2a8] sm:$0xff] %v1946
      %1951 = vst [vmem:[#allocation2 + $0x2b0] sm:$0xff] %v1947
      %1952 = vst [vmem:[#allocation2 + $0x2b8] sm:$0xff] %v1948
      %s1953 = scalar_lea.vmem %s10, 70
      %v1954 = vld [vmem:[%s1953] ss:$8 sm:$0xf]
      %v1956 = vlaneseq
      %v1957 = vshrl.u32 %v1956, 7
      %v1958 = vsub.s32 0, %v1957
      %v1959 = vrot.slane %v1954, %v1958
      %v1960 = vlaneseq
      %v1961 = vshrl.u32 %v1960, 7
      %v1962 = vsub.s32 1, %v1961
      %v1963 = vrot.slane %v1954, %v1962
      %v1964 = vlaneseq
      %v1965 = vshrl.u32 %v1964, 7
      %v1966 = vsub.s32 2, %v1965
      %v1967 = vrot.slane %v1954, %v1966
      %v1968 = vlaneseq
      %v1969 = vshrl.u32 %v1968, 7
      %v1970 = vsub.s32 3, %v1969
      %v1971 = vrot.slane %v1954, %v1970
      %v1976 = vmul.f32 %v947, %v1959
      %v1977 = vmul.f32 %v945, %v1963
      %v1978 = vmul.f32 %v943, %v1967
      %v1979 = vmul.f32 %v949, %v1971
      %v1980 = vmul.f32 %v948, %v1959
      %v1981 = vmul.f32 %v946, %v1963
      %v1982 = vmul.f32 %v944, %v1967
      %v1983 = vmul.f32 %v950, %v1971
      %v1984 = vpack.c.bf16 %v1980, %v1976
      %v1985 = vpack.c.bf16 %v1981, %v1977
      %v1986 = vpack.c.bf16 %v1982, %v1978
      %v1987 = vpack.c.bf16 %v1983, %v1979
      %1988 = vst [vmem:[#allocation2 + $0x2c0] sm:$0xff] %v1984
      %1989 = vst [vmem:[#allocation2 + $0x2c8] sm:$0xff] %v1985
      %1990 = vst [vmem:[#allocation2 + $0x2d0] sm:$0xff] %v1986
      %1991 = vst [vmem:[#allocation2 + $0x2d8] sm:$0xff] %v1987
      %s1992 = scalar_lea.vmem %s10, 71
      %v1993 = vld [vmem:[%s1992] ss:$8 sm:$0xf]
      %v1995 = vlaneseq
      %v1996 = vshrl.u32 %v1995, 7
      %v1997 = vsub.s32 0, %v1996
      %v1998 = vrot.slane %v1993, %v1997
      %v1999 = vlaneseq
      %v2000 = vshrl.u32 %v1999, 7
      %v2001 = vsub.s32 1, %v2000
      %v2002 = vrot.slane %v1993, %v2001
      %v2003 = vlaneseq
      %v2004 = vshrl.u32 %v2003, 7
      %v2005 = vsub.s32 2, %v2004
      %v2006 = vrot.slane %v1993, %v2005
      %v2007 = vlaneseq
      %v2008 = vshrl.u32 %v2007, 7
      %v2009 = vsub.s32 3, %v2008
      %v2010 = vrot.slane %v1993, %v2009
      %v2015 = vmul.f32 %v1011, %v1998
      %v2016 = vmul.f32 %v1009, %v2002
      %v2017 = vmul.f32 %v1007, %v2006
      %v2018 = vmul.f32 %v1013, %v2010
      %v2019 = vmul.f32 %v1012, %v1998
      %v2020 = vmul.f32 %v1010, %v2002
      %v2021 = vmul.f32 %v1008, %v2006
      %v2022 = vmul.f32 %v1014, %v2010
      %v2023 = vpack.c.bf16 %v2019, %v2015
      %v2024 = vpack.c.bf16 %v2020, %v2016
      %v2025 = vpack.c.bf16 %v2021, %v2017
      %v2026 = vpack.c.bf16 %v2022, %v2018
      %2027 = vst [vmem:[#allocation2 + $0x2e0] sm:$0xff] %v2023
      %2028 = vst [vmem:[#allocation2 + $0x2e8] sm:$0xff] %v2024
      %2029 = vst [vmem:[#allocation2 + $0x2f0] sm:$0xff] %v2025
      %2030 = vst [vmem:[#allocation2 + $0x2f8] sm:$0xff] %v2026
      %s2031 = scalar_lea.vmem %s10, 96
      %v2032 = vld [vmem:[%s2031] ss:$8 sm:$0xf]
      %v2034 = vlaneseq
      %v2035 = vshrl.u32 %v2034, 7
      %v2036 = vsub.s32 0, %v2035
      %v2037 = vrot.slane %v2032, %v2036
      %v2038 = vlaneseq
      %v2039 = vshrl.u32 %v2038, 7
      %v2040 = vsub.s32 1, %v2039
      %v2041 = vrot.slane %v2032, %v2040
      %v2042 = vlaneseq
      %v2043 = vshrl.u32 %v2042, 7
      %v2044 = vsub.s32 2, %v2043
      %v2045 = vrot.slane %v2032, %v2044
      %v2046 = vlaneseq
      %v2047 = vshrl.u32 %v2046, 7
      %v2048 = vsub.s32 3, %v2047
      %v2049 = vrot.slane %v2032, %v2048
      %v2054 = vmul.f32 %v1075, %v2037
      %v2055 = vmul.f32 %v1073, %v2041
      %v2056 = vmul.f32 %v1071, %v2045
      %v2057 = vmul.f32 %v1077, %v2049
      %v2058 = vmul.f32 %v1076, %v2037
      %v2059 = vmul.f32 %v1074, %v2041
      %v2060 = vmul.f32 %v1072, %v2045
      %v2061 = vmul.f32 %v1078, %v2049
      %v2062 = vpack.c.bf16 %v2058, %v2054
      %v2063 = vpack.c.bf16 %v2059, %v2055
      %v2064 = vpack.c.bf16 %v2060, %v2056
      %v2065 = vpack.c.bf16 %v2061, %v2057
      %2066 = vst [vmem:[#allocation2 + $0x300] sm:$0xff] %v2062
      %2067 = vst [vmem:[#allocation2 + $0x308] sm:$0xff] %v2063
      %2068 = vst [vmem:[#allocation2 + $0x310] sm:$0xff] %v2064
      %2069 = vst [vmem:[#allocation2 + $0x318] sm:$0xff] %v2065
      %s2070 = scalar_lea.vmem %s10, 97
      %v2071 = vld [vmem:[%s2070] ss:$8 sm:$0xf]
      %v2073 = vlaneseq
      %v2074 = vshrl.u32 %v2073, 7
      %v2075 = vsub.s32 0, %v2074
      %v2076 = vrot.slane %v2071, %v2075
      %v2077 = vlaneseq
      %v2078 = vshrl.u32 %v2077, 7
      %v2079 = vsub.s32 1, %v2078
      %v2080 = vrot.slane %v2071, %v2079
      %v2081 = vlaneseq
      %v2082 = vshrl.u32 %v2081, 7
      %v2083 = vsub.s32 2, %v2082
      %v2084 = vrot.slane %v2071, %v2083
      %v2085 = vlaneseq
      %v2086 = vshrl.u32 %v2085, 7
      %v2087 = vsub.s32 3, %v2086
      %v2088 = vrot.slane %v2071, %v2087
      %v2093 = vmul.f32 %v1139, %v2076
      %v2094 = vmul.f32 %v1137, %v2080
      %v2095 = vmul.f32 %v1135, %v2084
      %v2096 = vmul.f32 %v1141, %v2088
      %v2097 = vmul.f32 %v1140, %v2076
      %v2098 = vmul.f32 %v1138, %v2080
      %v2099 = vmul.f32 %v1136, %v2084
      %v2100 = vmul.f32 %v1142, %v2088
      %v2101 = vpack.c.bf16 %v2097, %v2093
      %v2102 = vpack.c.bf16 %v2098, %v2094
      %v2103 = vpack.c.bf16 %v2099, %v2095
      %v2104 = vpack.c.bf16 %v2100, %v2096
      %2105 = vst [vmem:[#allocation2 + $0x320] sm:$0xff] %v2101
      %2106 = vst [vmem:[#allocation2 + $0x328] sm:$0xff] %v2102
      %2107 = vst [vmem:[#allocation2 + $0x330] sm:$0xff] %v2103
      %2108 = vst [vmem:[#allocation2 + $0x338] sm:$0xff] %v2104
      %s2109 = scalar_lea.vmem %s10, 98
      %v2110 = vld [vmem:[%s2109] ss:$8 sm:$0xf]
      %v2112 = vlaneseq
      %v2113 = vshrl.u32 %v2112, 7
      %v2114 = vsub.s32 0, %v2113
      %v2115 = vrot.slane %v2110, %v2114
      %v2116 = vlaneseq
      %v2117 = vshrl.u32 %v2116, 7
      %v2118 = vsub.s32 1, %v2117
      %v2119 = vrot.slane %v2110, %v2118
      %v2120 = vlaneseq
      %v2121 = vshrl.u32 %v2120, 7
      %v2122 = vsub.s32 2, %v2121
      %v2123 = vrot.slane %v2110, %v2122
      %v2124 = vlaneseq
      %v2125 = vshrl.u32 %v2124, 7
      %v2126 = vsub.s32 3, %v2125
      %v2127 = vrot.slane %v2110, %v2126
      %v2132 = vmul.f32 %v1203, %v2115
      %v2133 = vmul.f32 %v1201, %v2119
      %v2134 = vmul.f32 %v1199, %v2123
      %v2135 = vmul.f32 %v1205, %v2127
      %v2136 = vmul.f32 %v1204, %v2115
      %v2137 = vmul.f32 %v1202, %v2119
      %v2138 = vmul.f32 %v1200, %v2123
      %v2139 = vmul.f32 %v1206, %v2127
      %v2140 = vpack.c.bf16 %v2136, %v2132
      %v2141 = vpack.c.bf16 %v2137, %v2133
      %v2142 = vpack.c.bf16 %v2138, %v2134
      %v2143 = vpack.c.bf16 %v2139, %v2135
      %2144 = vst [vmem:[#allocation2 + $0x340] sm:$0xff] %v2140
      %2145 = vst [vmem:[#allocation2 + $0x348] sm:$0xff] %v2141
      %2146 = vst [vmem:[#allocation2 + $0x350] sm:$0xff] %v2142
      %2147 = vst [vmem:[#allocation2 + $0x358] sm:$0xff] %v2143
      %v2148 = vld [vmem:[%s3] sm:$0xff]
      %v2149 = vld [vmem:[%s3 + $0x8] sm:$0xff]
      %v2150 = vld [vmem:[%s3 + $0x10] sm:$0xff]
      %v2151 = vld [vmem:[%s3 + $0x18] sm:$0xff]
      %v2152 = vld [vmem:[#allocation2] sm:$0xff]
      %v2153 = vld [vmem:[#allocation2 + $0x8] sm:$0xff]
      %v2154 = vld [vmem:[#allocation2 + $0x10] sm:$0xff]
      %v2155 = vld [vmem:[#allocation2 + $0x18] sm:$0xff]
      %v2156 = vld [vmem:[#allocation2 + $0x20] sm:$0xff]
      %v2157 = vld [vmem:[#allocation2 + $0x28] sm:$0xff]
      %v2158 = vld [vmem:[#allocation2 + $0x30] sm:$0xff]
      %v2159 = vld [vmem:[#allocation2 + $0x38] sm:$0xff]
      %v2160 = vld [vmem:[#allocation2 + $0x40] sm:$0xff]
      %v2161 = vld [vmem:[#allocation2 + $0x48] sm:$0xff]
      %v2162 = vld [vmem:[#allocation2 + $0x50] sm:$0xff]
      %v2163 = vld [vmem:[#allocation2 + $0x58] sm:$0xff]
      %v2164 = vld [vmem:[#allocation2 + $0x60] sm:$0xff]
      %v2165 = vld [vmem:[#allocation2 + $0x68] sm:$0xff]
      %v2166 = vld [vmem:[#allocation2 + $0x70] sm:$0xff]
      %v2167 = vld [vmem:[#allocation2 + $0x78] sm:$0xff]
      %v2168 = vld [vmem:[#allocation2 + $0x80] sm:$0xff]
      %v2169 = vld [vmem:[#allocation2 + $0x88] sm:$0xff]
      %v2170 = vld [vmem:[#allocation2 + $0x90] sm:$0xff]
      %v2171 = vld [vmem:[#allocation2 + $0x98] sm:$0xff]
      %v2172 = vld [vmem:[#allocation2 + $0xa0] sm:$0xff]
      %v2173 = vld [vmem:[#allocation2 + $0xa8] sm:$0xff]
      %v2174 = vld [vmem:[#allocation2 + $0xb0] sm:$0xff]
      %v2175 = vld [vmem:[#allocation2 + $0xb8] sm:$0xff]
      %v2176 = vld [vmem:[#allocation2 + $0xc0] sm:$0xff]
      %v2177 = vld [vmem:[#allocation2 + $0xc8] sm:$0xff]
      %v2178 = vld [vmem:[#allocation2 + $0xd0] sm:$0xff]
      %v2179 = vld [vmem:[#allocation2 + $0xd8] sm:$0xff]
      %v2180 = vld [vmem:[#allocation2 + $0xe0] sm:$0xff]
      %v2181 = vld [vmem:[#allocation2 + $0xe8] sm:$0xff]
      %v2182 = vld [vmem:[#allocation2 + $0xf0] sm:$0xff]
      %v2183 = vld [vmem:[#allocation2 + $0xf8] sm:$0xff]
      %v2184 = vld [vmem:[#allocation2 + $0x100] sm:$0xff]
      %v2185 = vld [vmem:[#allocation2 + $0x108] sm:$0xff]
      %v2186 = vld [vmem:[#allocation2 + $0x110] sm:$0xff]
      %v2187 = vld [vmem:[#allocation2 + $0x118] sm:$0xff]
      %v2188 = vld [vmem:[#allocation2 + $0x120] sm:$0xff]
      %v2189 = vld [vmem:[#allocation2 + $0x128] sm:$0xff]
      %v2190 = vld [vmem:[#allocation2 + $0x130] sm:$0xff]
      %v2191 = vld [vmem:[#allocation2 + $0x138] sm:$0xff]
      %v2192 = vld [vmem:[#allocation2 + $0x140] sm:$0xff]
      %v2193 = vld [vmem:[#allocation2 + $0x148] sm:$0xff]
      %v2194 = vld [vmem:[#allocation2 + $0x150] sm:$0xff]
      %v2195 = vld [vmem:[#allocation2 + $0x158] sm:$0xff]
      %v2196 = vld [vmem:[#allocation2 + $0x160] sm:$0xff]
      %v2197 = vld [vmem:[#allocation2 + $0x168] sm:$0xff]
      %v2198 = vld [vmem:[#allocation2 + $0x170] sm:$0xff]
      %v2199 = vld [vmem:[#allocation2 + $0x178] sm:$0xff]
      %v2200 = vld [vmem:[#allocation2 + $0x180] sm:$0xff]
      %v2201 = vld [vmem:[#allocation2 + $0x188] sm:$0xff]
      %v2202 = vld [vmem:[#allocation2 + $0x190] sm:$0xff]
      %v2203 = vld [vmem:[#allocation2 + $0x198] sm:$0xff]
      %v2204 = vld [vmem:[#allocation2 + $0x1a0] sm:$0xff]
      %v2205 = vld [vmem:[#allocation2 + $0x1a8] sm:$0xff]
      %v2206 = vld [vmem:[#allocation2 + $0x1b0] sm:$0xff]
      %v2207 = vld [vmem:[#allocation2 + $0x1b8] sm:$0xff]
      %v2208 = vld [vmem:[#allocation2 + $0x1c0] sm:$0xff]
      %v2209 = vld [vmem:[#allocation2 + $0x1c8] sm:$0xff]
      %v2210 = vld [vmem:[#allocation2 + $0x1d0] sm:$0xff]
      %v2211 = vld [vmem:[#allocation2 + $0x1d8] sm:$0xff]
      %v2212 = vld [vmem:[#allocation2 + $0x1e0] sm:$0xff]
      %v2213 = vld [vmem:[#allocation2 + $0x1e8] sm:$0xff]
      %v2214 = vld [vmem:[#allocation2 + $0x1f0] sm:$0xff]
      %v2215 = vld [vmem:[#allocation2 + $0x1f8] sm:$0xff]
      %v2216 = vld [vmem:[#allocation2 + $0x200] sm:$0xff]
      %v2217 = vld [vmem:[#allocation2 + $0x208] sm:$0xff]
      %v2218 = vld [vmem:[#allocation2 + $0x210] sm:$0xff]
      %v2219 = vld [vmem:[#allocation2 + $0x218] sm:$0xff]
      %v2220 = vld [vmem:[#allocation2 + $0x220] sm:$0xff]
      %v2221 = vld [vmem:[#allocation2 + $0x228] sm:$0xff]
      %v2222 = vld [vmem:[#allocation2 + $0x230] sm:$0xff]
      %v2223 = vld [vmem:[#allocation2 + $0x238] sm:$0xff]
      %v2224 = vld [vmem:[#allocation2 + $0x240] sm:$0xff]
      %v2225 = vld [vmem:[#allocation2 + $0x248] sm:$0xff]
      %v2226 = vld [vmem:[#allocation2 + $0x250] sm:$0xff]
      %v2227 = vld [vmem:[#allocation2 + $0x258] sm:$0xff]
      %v2228 = vld [vmem:[#allocation2 + $0x260] sm:$0xff]
      %v2229 = vld [vmem:[#allocation2 + $0x268] sm:$0xff]
      %v2230 = vld [vmem:[#allocation2 + $0x270] sm:$0xff]
      %v2231 = vld [vmem:[#allocation2 + $0x278] sm:$0xff]
      %v2232 = vld [vmem:[#allocation2 + $0x280] sm:$0xff]
      %v2233 = vld [vmem:[#allocation2 + $0x288] sm:$0xff]
      %v2234 = vld [vmem:[#allocation2 + $0x290] sm:$0xff]
      %v2235 = vld [vmem:[#allocation2 + $0x298] sm:$0xff]
      %v2236 = vld [vmem:[#allocation2 + $0x2a0] sm:$0xff]
      %v2237 = vld [vmem:[#allocation2 + $0x2a8] sm:$0xff]
      %v2238 = vld [vmem:[#allocation2 + $0x2b0] sm:$0xff]
      %v2239 = vld [vmem:[#allocation2 + $0x2b8] sm:$0xff]
      %v2240 = vld [vmem:[#allocation2 + $0x2c0] sm:$0xff]
      %v2241 = vld [vmem:[#allocation2 + $0x2c8] sm:$0xff]
      %v2242 = vld [vmem:[#allocation2 + $0x2d0] sm:$0xff]
      %v2243 = vld [vmem:[#allocation2 + $0x2d8] sm:$0xff]
      %v2244 = vld [vmem:[#allocation2 + $0x2e0] sm:$0xff]
      %v2245 = vld [vmem:[#allocation2 + $0x2e8] sm:$0xff]
      %v2246 = vld [vmem:[#allocation2 + $0x2f0] sm:$0xff]
      %v2247 = vld [vmem:[#allocation2 + $0x2f8] sm:$0xff]
      %v2248 = vld [vmem:[#allocation2 + $0x300] sm:$0xff]
      %v2249 = vld [vmem:[#allocation2 + $0x308] sm:$0xff]
      %v2250 = vld [vmem:[#allocation2 + $0x310] sm:$0xff]
      %v2251 = vld [vmem:[#allocation2 + $0x318] sm:$0xff]
      %v2252 = vld [vmem:[#allocation2 + $0x320] sm:$0xff]
      %v2253 = vld [vmem:[#allocation2 + $0x328] sm:$0xff]
      %v2254 = vld [vmem:[#allocation2 + $0x330] sm:$0xff]
      %v2255 = vld [vmem:[#allocation2 + $0x338] sm:$0xff]
      %v2256 = vld [vmem:[#allocation2 + $0x340] sm:$0xff]
      %v2257 = vld [vmem:[#allocation2 + $0x348] sm:$0xff]
      %v2258 = vld [vmem:[#allocation2 + $0x350] sm:$0xff]
      %v2259 = vld [vmem:[#allocation2 + $0x358] sm:$0xff]
      %v2260 = vld [vmem:[%s4] sm:$0xff]
      %v2261 = vld [vmem:[%s4 + $0x8] sm:$0xff]
      %2263 = vset.pattern.permute.xlu0 0
      %2264 = vperm.xlu0 %2263, %v2260
      %v2265 = vpop.permute.xlu0 %2264
      %2268 = vset.pattern.permute.xlu0 0
      %2269 = vperm.xlu0 %2268, %v2261
      %v2270 = vpop.permute.xlu0 %2269
      %v2276 = vunpack.c.l.b16 %v2148
      %v2277 = vunpack.c.h.b16 %v2148
      %v2278 = vunpack.c.l.b16 %v2149
      %v2279 = vunpack.c.h.b16 %v2149
      %v2280 = vunpack.c.l.b16 %v2150
      %v2281 = vunpack.c.h.b16 %v2150
      %v2282 = vunpack.c.l.b16 %v2151
      %v2283 = vunpack.c.h.b16 %v2151
      %v2284 = vpack.c.b16 %v2280, %v2276
      %v2285 = vpack.c.b16 %v2281, %v2277
      %v2286 = vpack.c.b16 %v2282, %v2278
      %v2287 = vpack.c.b16 %v2283, %v2279
      %vm2291 = vcmask 392192
      %v2293 = vsel %vm2291, %v2287, 0
      %2295 = vmatprep.subr.bf16.mxu0 %v2153
      %2296 = vmatpush1.bf16.msra.mxu0 %v2152
      %2297 = vmatprep.subr.bf16.mxu0 %v2157
      %2298 = vmatpush1.bf16.msra.mxu0 %v2156
      %2299 = vmatprep.subr.bf16.mxu0 %v2161
      %2300 = vmatpush1.bf16.msra.mxu0 %v2160
      %2301 = vmatprep.subr.bf16.mxu0 %v2165
      %2302 = vmatpush1.bf16.msra.mxu0 %v2164
      %2303 = vmatprep.subr.bf16.mxu0 %v2169
      %2304 = vmatpush1.bf16.msra.mxu0 %v2168
      %2305 = vmatprep.subr.bf16.mxu0 %v2173
      %2306 = vmatpush1.bf16.msra.mxu0 %v2172
      %2307 = vmatprep.subr.bf16.mxu0 %v2177
      %2308 = vmatpush1.bf16.msra.mxu0 %v2176
      %2309 = vmatprep.subr.bf16.mxu0 %v2181
      %2310 = vmatpush1.bf16.msra.mxu0 %v2180
      %2311 = vmatprep.subr.bf16.mxu0 %v2185
      %2312 = vmatpush1.bf16.msra.mxu0 %v2184
      %2313 = vmatprep.subr.bf16.mxu0 %v2189
      %2314 = vmatpush1.bf16.msra.mxu0 %v2188
      %2315 = vmatprep.subr.bf16.mxu0 %v2193
      %2316 = vmatpush1.bf16.msra.mxu0 %v2192
      %2317 = vmatprep.subr.bf16.mxu0 %v2197
      %2318 = vmatpush1.bf16.msra.mxu0 %v2196
      %2319 = vmatprep.subr.bf16.mxu0 %v2201
      %2320 = vmatpush1.bf16.msra.mxu0 %v2200
      %2321 = vmatprep.subr.bf16.mxu0 %v2205
      %2322 = vmatpush1.bf16.msra.mxu0 %v2204
      %2323 = vmatprep.subr.bf16.mxu0 %v2209
      %2324 = vmatpush1.bf16.msra.mxu0 %v2208
      %2325 = vmatprep.subr.bf16.mxu0 %v2213
      %2326 = vmatpush1.bf16.msra.mxu0 %v2212
      %2327 = vmatprep.mubr.bf16.mxu0 %v2285
      %2328 = vmatmul.mubr.bf16.gmra.mrb[0].mxu0 %v2284
      %v2329 = vpop.f32.mrb[0].mxu0
      %v2330 = vadd.f32 %v2265, %v2329
      %v2331 = vpop.f32.mrb[0].mxu0
      %v2332 = vadd.f32 %v2265, %v2331
      %v2333 = vpop.f32.mrb[0].mxu0
      %v2334 = vadd.f32 %v2270, %v2333
      %v2335 = vpop.f32.mrb[0].mxu0
      %v2336 = vadd.f32 %v2270, %v2335
      %2337 = vdwg.mxu0
      %2338 = vmatprep.subr.bf16.mxu0 %v2217
      %2339 = vmatpush1.bf16.msra.mxu0 %v2216
      %2340 = vmatprep.subr.bf16.mxu0 %v2221
      %2341 = vmatpush1.bf16.msra.mxu0 %v2220
      %2342 = vmatprep.subr.bf16.mxu0 %v2225
      %2343 = vmatpush1.bf16.msra.mxu0 %v2224
      %2344 = vmatprep.subr.bf16.mxu0 %v2229
      %2345 = vmatpush1.bf16.msra.mxu0 %v2228
      %2346 = vmatprep.subr.bf16.mxu0 %v2233
      %2347 = vmatpush1.bf16.msra.mxu0 %v2232
      %2348 = vmatprep.subr.bf16.mxu0 %v2237
      %2349 = vmatpush1.bf16.msra.mxu0 %v2236
      %2350 = vmatprep.subr.bf16.mxu0 %v2241
      %2351 = vmatpush1.bf16.msra.mxu0 %v2240
      %2352 = vmatprep.subr.bf16.mxu0 %v2245
      %2353 = vmatpush1.bf16.msra.mxu0 %v2244
      %2354 = vmatprep.subr.bf16.mxu0 %v2249
      %2355 = vmatpush1.bf16.msra.mxu0 %v2248
      %2356 = vmatprep.subr.bf16.mxu0 %v2253
      %2357 = vmatpush1.bf16.msra.mxu0 %v2252
      %2358 = vmatprep.subr.bf16.mxu0 %v2257
      %2359 = vmatpush1.bf16.msra.mxu0 %v2256
      %2360 = vmatprep.subr.bf16.mxu0 0
      %2361 = vmatpush1.bf16.msra.mxu0 0
      %2362 = vmatprep.subr.bf16.mxu0 0
      %2363 = vmatpush1.bf16.msra.mxu0 0
      %2364 = vmatprep.subr.bf16.mxu0 0
      %2365 = vmatpush1.bf16.msra.mxu0 0
      %2366 = vmatprep.subr.bf16.mxu0 0
      %2367 = vmatpush1.bf16.msra.mxu0 0
      %2368 = vmatprep.subr.bf16.mxu0 0
      %2369 = vmatpush1.bf16.msra.mxu0 0
      %2370 = vmatprep.mubr.bf16.mxu0 %v2293
      %2371 = vmatmul.mubr.bf16.gmra.mrb[0].mxu0 %v2286
      %v2372 = vpop.f32.mrb[0].mxu0
      %v2373 = vadd.f32 %v2330, %v2372
      %v2374 = vpop.f32.mrb[0].mxu0
      %v2375 = vadd.f32 %v2332, %v2374
      %v2376 = vpop.f32.mrb[0].mxu0
      %v2377 = vadd.f32 %v2334, %v2376
      %v2378 = vpop.f32.mrb[0].mxu0
      %v2379 = vadd.f32 %v2336, %v2378
      %2380 = vdwg.mxu0
      %2381 = vmatprep.subr.bf16.mxu0 %v2155
      %2382 = vmatpush1.bf16.msra.mxu0 %v2154
      %2383 = vmatprep.subr.bf16.mxu0 %v2159
      %2384 = vmatpush1.bf16.msra.mxu0 %v2158
      %2385 = vmatprep.subr.bf16.mxu0 %v2163
      %2386 = vmatpush1.bf16.msra.mxu0 %v2162
      %2387 = vmatprep.subr.bf16.mxu0 %v2167
      %2388 = vmatpush1.bf16.msra.mxu0 %v2166
      %2389 = vmatprep.subr.bf16.mxu0 %v2171
      %2390 = vmatpush1.bf16.msra.mxu0 %v2170
      %2391 = vmatprep.subr.bf16.mxu0 %v2175
      %2392 = vmatpush1.bf16.msra.mxu0 %v2174
      %2393 = vmatprep.subr.bf16.mxu0 %v2179
      %2394 = vmatpush1.bf16.msra.mxu0 %v2178
      %2395 = vmatprep.subr.bf16.mxu0 %v2183
      %2396 = vmatpush1.bf16.msra.mxu0 %v2182
      %2397 = vmatprep.subr.bf16.mxu0 %v2187
      %2398 = vmatpush1.bf16.msra.mxu0 %v2186
      %2399 = vmatprep.subr.bf16.mxu0 %v2191
      %2400 = vmatpush1.bf16.msra.mxu0 %v2190
      %2401 = vmatprep.subr.bf16.mxu0 %v2195
      %2402 = vmatpush1.bf16.msra.mxu0 %v2194
      %2403 = vmatprep.subr.bf16.mxu0 %v2199
      %2404 = vmatpush1.bf16.msra.mxu0 %v2198
      %2405 = vmatprep.subr.bf16.mxu0 %v2203
      %2406 = vmatpush1.bf16.msra.mxu0 %v2202
      %2407 = vmatprep.subr.bf16.mxu0 %v2207
      %2408 = vmatpush1.bf16.msra.mxu0 %v2206
      %2409 = vmatprep.subr.bf16.mxu0 %v2211
      %2410 = vmatpush1.bf16.msra.mxu0 %v2210
      %2411 = vmatprep.subr.bf16.mxu0 %v2215
      %2412 = vmatpush1.bf16.msra.mxu0 %v2214
      %2413 = vmatprep.mubr.bf16.mxu0 %v2285
      %2414 = vmatmul.mubr.bf16.gmra.mrb[0].mxu0 %v2284
      %v2415 = vpop.f32.mrb[0].mxu0
      %v2416 = vadd.f32 %v2265, %v2415
      %v2417 = vpop.f32.mrb[0].mxu0
      %v2418 = vadd.f32 %v2265, %v2417
      %v2419 = vpop.f32.mrb[0].mxu0
      %v2420 = vadd.f32 %v2270, %v2419
      %v2421 = vpop.f32.mrb[0].mxu0
      %v2422 = vadd.f32 %v2270, %v2421
      %2423 = vdwg.mxu0
      %2424 = vmatprep.subr.bf16.mxu0 %v2219
      %2425 = vmatpush1.bf16.msra.mxu0 %v2218
      %2426 = vmatprep.subr.bf16.mxu0 %v2223
      %2427 = vmatpush1.bf16.msra.mxu0 %v2222
      %2428 = vmatprep.subr.bf16.mxu0 %v2227
      %2429 = vmatpush1.bf16.msra.mxu0 %v2226
      %2430 = vmatprep.subr.bf16.mxu0 %v2231
      %2431 = vmatpush1.bf16.msra.mxu0 %v2230
      %2432 = vmatprep.subr.bf16.mxu0 %v2235
      %2433 = vmatpush1.bf16.msra.mxu0 %v2234
      %2434 = vmatprep.subr.bf16.mxu0 %v2239
      %2435 = vmatpush1.bf16.msra.mxu0 %v2238
      %2436 = vmatprep.subr.bf16.mxu0 %v2243
      %2437 = vmatpush1.bf16.msra.mxu0 %v2242
      %2438 = vmatprep.subr.bf16.mxu0 %v2247
      %2439 = vmatpush1.bf16.msra.mxu0 %v2246
      %2440 = vmatprep.subr.bf16.mxu0 %v2251
      %2441 = vmatpush1.bf16.msra.mxu0 %v2250
      %2442 = vmatprep.subr.bf16.mxu0 %v2255
      %2443 = vmatpush1.bf16.msra.mxu0 %v2254
      %2444 = vmatprep.subr.bf16.mxu0 %v2259
      %2445 = vmatpush1.bf16.msra.mxu0 %v2258
      %2446 = vmatprep.subr.bf16.mxu0 0
      %2447 = vmatpush1.bf16.msra.mxu0 0
      %2448 = vmatprep.subr.bf16.mxu0 0
      %2449 = vmatpush1.bf16.msra.mxu0 0
      %2450 = vmatprep.subr.bf16.mxu0 0
      %2451 = vmatpush1.bf16.msra.mxu0 0
      %2452 = vmatprep.subr.bf16.mxu0 0
      %2453 = vmatpush1.bf16.msra.mxu0 0
      %2454 = vmatprep.subr.bf16.mxu0 0
      %2455 = vmatpush1.bf16.msra.mxu0 0
      %2456 = vmatprep.mubr.bf16.mxu0 %v2293
      %2457 = vmatmul.mubr.bf16.gmra.mrb[0].mxu0 %v2286
      %v2458 = vpop.f32.mrb[0].mxu0
      %v2459 = vadd.f32 %v2416, %v2458
      %v2460 = vpop.f32.mrb[0].mxu0
      %v2461 = vadd.f32 %v2418, %v2460
      %v2462 = vpop.f32.mrb[0].mxu0
      %v2463 = vadd.f32 %v2420, %v2462
      %v2464 = vpop.f32.mrb[0].mxu0
      %v2465 = vadd.f32 %v2422, %v2464
      %2466 = vdwg.mxu0
      %v2467 = vld [vmem:[%s5] sm:$0xff]
      %v2468 = vld [vmem:[%s5 + $0x8] sm:$0xff]
      %v2469 = vld [vmem:[%s6] sm:$0xff]
      %v2470 = vld [vmem:[%s6 + $0x8] sm:$0xff]
      %v2471 = vadd.f32 %v2373, %v2375
      %v2472 = vadd.f32 %v2471, %v2459
      %v2473 = vadd.f32 %v2472, %v2461
      %2474 = vadd.xlane.f32.xlu0 %v2473
      %v2475 = vpop.xlane.xlu0 %2474
      %v2476 = vadd.f32 %v2377, %v2379
      %v2477 = vadd.f32 %v2476, %v2463
      %v2478 = vadd.f32 %v2477, %v2465
      %2479 = vadd.xlane.f32.xlu0 %v2478
      %v2480 = vpop.xlane.xlu0 %2479
      %2481 = vmatprep.subr.mxu0 0.0
      %2482 = vmatpush1.msra.mxu0 %v2475
      %2483 = vmatprep.subr.mxu0 0.0
      %2484 = vmatpush1.msra.mxu0 %v2480
      %2485 = vmatprep.subr.mxu0 0.0
      %2486 = vmatpush1.msra.mxu0 0.0
      %2487 = vmatprep.subr.mxu0 0.0
      %2488 = vmatpush1.msra.mxu0 0.0
      %2489 = vmatprep.subr.mxu0 0.0
      %2490 = vmatpush1.msra.mxu0 0.0
      %2491 = vmatprep.subr.mxu0 0.0
      %2492 = vmatpush1.msra.mxu0 0.0
      %2493 = vmatprep.subr.mxu0 0.0
      %2494 = vmatpush1.msra.mxu0 0.0
      %2495 = vmatprep.subr.mxu0 0.0
      %2496 = vmatpush1.msra.mxu0 0.0
      %2497 = vmatprep.subr.mxu0 0.0
      %2498 = vmatpush1.msra.mxu0 0.0
      %2499 = vmatprep.subr.mxu0 0.0
      %2500 = vmatpush1.msra.mxu0 0.0
      %2501 = vmatprep.subr.mxu0 0.0
      %2502 = vmatpush1.msra.mxu0 0.0
      %2503 = vmatprep.subr.mxu0 0.0
      %2504 = vmatpush1.msra.mxu0 0.0
      %2505 = vmatprep.subr.mxu0 0.0
      %2506 = vmatpush1.msra.mxu0 0.0
      %2507 = vmatprep.subr.mxu0 0.0
      %2508 = vmatpush1.msra.mxu0 0.0
      %2509 = vmatprep.subr.mxu0 0.0
      %2510 = vmatpush1.msra.mxu0 0.0
      %2511 = vmatprep.subr.mxu0 0.0
      %2512 = vmatpush1.msra.mxu0 0.0
      %2513 = vmatprep.subr.mxu0 0.0
      %2514 = vmatpush1.msra.mxu0 0.0
      %2515 = vmatprep.subr.mxu0 0.0
      %2516 = vmatpush1.msra.mxu0 0.0
      %2517 = vmatprep.subr.mxu0 0.0
      %2518 = vmatpush1.msra.mxu0 0.0
      %2519 = vmatprep.subr.mxu0 0.0
      %2520 = vmatpush1.msra.mxu0 0.0
      %2521 = vmatprep.subr.mxu0 0.0
      %2522 = vmatpush1.msra.mxu0 0.0
      %2523 = vmatprep.subr.mxu0 0.0
      %2524 = vmatpush1.msra.mxu0 0.0
      %2525 = vmatprep.subr.mxu0 0.0
      %2526 = vmatpush1.msra.mxu0 0.0
      %2527 = vmatprep.subr.mxu0 0.0
      %2528 = vmatpush1.msra.mxu0 0.0
      %2529 = vmatprep.subr.mxu0 0.0
      %2530 = vmatpush1.msra.mxu0 0.0
      %2531 = vmatprep.subr.mxu0 0.0
      %2532 = vmatpush1.msra.mxu0 0.0
      %2533 = vmatprep.subr.mxu0 0.0
      %2534 = vmatpush1.msra.mxu0 0.0
      %2535 = vmatprep.subr.mxu0 0.0
      %2536 = vmatpush1.msra.mxu0 0.0
      %2537 = vmatprep.subr.mxu0 0.0
      %2538 = vmatpush1.msra.mxu0 0.0
      %2539 = vmatprep.subr.mxu0 0.0
      %2540 = vmatpush1.msra.mxu0 0.0
      %2541 = vmatprep.subr.mxu0 0.0
      %2542 = vmatpush1.msra.mxu0 0.0
      %2543 = vmatprep.subr.mxu0 0.0
      %2544 = vmatpush1.msra.mxu0 0.0
      %2545 = vmatprep.mubr.f32.mxu0 0.0
      %2546 = vmatmul.mubr.f32.gmra.mrb[0].mxu0 %v414
      %v2547 = vpop.f32.mrb[0].mxu0
      %v2548 = vadd.f32 0.0, %v2547
      %v2549 = vpop.f32.mrb[0].mxu0
      %2550 = vmatprep.mubr.f32.mxu0 0.0
      %2551 = vmatmul.mubr.f32.gmra.mrb[0].mxu0 %v417
      %v2552 = vpop.f32.mrb[0].mxu0
      %v2553 = vadd.f32 0.0, %v2552
      %v2554 = vpop.f32.mrb[0].mxu0
      %2555 = vdwg.mxu0
      %2557 = vset.pattern.permute.xlu0 0
      %2558 = vperm.xlu0 %2557, %v2548
      %v2559 = vpop.permute.xlu0 %2558
      %2562 = vset.pattern.permute.xlu0 0
      %2563 = vperm.xlu0 %2562, %v2553
      %v2564 = vpop.permute.xlu0 %2563
      %v2566 = vsub.f32 %v2373, %v2559
      %v2567 = vsub.f32 %v2375, %v2559
      %v2568 = vsub.f32 %v2459, %v2559
      %v2569 = vsub.f32 %v2461, %v2559
      %v2570 = vsub.f32 %v2377, %v2564
      %v2571 = vsub.f32 %v2379, %v2564
      %v2572 = vsub.f32 %v2463, %v2564
      %v2573 = vsub.f32 %v2465, %v2564
      %v2574 = vmul.f32 %v2566, %v2566
      %v2575 = vmul.f32 %v2567, %v2567
      %v2576 = vmul.f32 %v2568, %v2568
      %v2577 = vmul.f32 %v2569, %v2569
      %v2578 = vmul.f32 %v2570, %v2570
      %v2579 = vmul.f32 %v2571, %v2571
      %v2580 = vmul.f32 %v2572, %v2572
      %v2581 = vmul.f32 %v2573, %v2573
      %v2582 = vadd.f32 %v2574, %v2575
      %v2583 = vadd.f32 %v2582, %v2576
      %v2584 = vadd.f32 %v2583, %v2577
      %2585 = vadd.xlane.f32.xlu0 %v2584
      %v2586 = vpop.xlane.xlu0 %2585
      %v2587 = vadd.f32 %v2578, %v2579
      %v2588 = vadd.f32 %v2587, %v2580
      %v2589 = vadd.f32 %v2588, %v2581
      %2590 = vadd.xlane.f32.xlu0 %v2589
      %v2591 = vpop.xlane.xlu0 %2590
      %2592 = vmatprep.subr.mxu0 0.0
      %2593 = vmatpush1.msra.mxu0 %v2586
      %2594 = vmatprep.subr.mxu0 0.0
      %2595 = vmatpush1.msra.mxu0 %v2591
      %2596 = vmatprep.subr.mxu0 0.0
      %2597 = vmatpush1.msra.mxu0 0.0
      %2598 = vmatprep.subr.mxu0 0.0
      %2599 = vmatpush1.msra.mxu0 0.0
      %2600 = vmatprep.subr.mxu0 0.0
      %2601 = vmatpush1.msra.mxu0 0.0
      %2602 = vmatprep.subr.mxu0 0.0
      %2603 = vmatpush1.msra.mxu0 0.0
      %2604 = vmatprep.subr.mxu0 0.0
      %2605 = vmatpush1.msra.mxu0 0.0
      %2606 = vmatprep.subr.mxu0 0.0
      %2607 = vmatpush1.msra.mxu0 0.0
      %2608 = vmatprep.subr.mxu0 0.0
      %2609 = vmatpush1.msra.mxu0 0.0
      %2610 = vmatprep.subr.mxu0 0.0
      %2611 = vmatpush1.msra.mxu0 0.0
      %2612 = vmatprep.subr.mxu0 0.0
      %2613 = vmatpush1.msra.mxu0 0.0
      %2614 = vmatprep.subr.mxu0 0.0
      %2615 = vmatpush1.msra.mxu0 0.0
      %2616 = vmatprep.subr.mxu0 0.0
      %2617 = vmatpush1.msra.mxu0 0.0
      %2618 = vmatprep.subr.mxu0 0.0
      %2619 = vmatpush1.msra.mxu0 0.0
      %2620 = vmatprep.subr.mxu0 0.0
      %2621 = vmatpush1.msra.mxu0 0.0
      %2622 = vmatprep.subr.mxu0 0.0
      %2623 = vmatpush1.msra.mxu0 0.0
      %2624 = vmatprep.subr.mxu0 0.0
      %2625 = vmatpush1.msra.mxu0 0.0
      %2626 = vmatprep.subr.mxu0 0.0
      %2627 = vmatpush1.msra.mxu0 0.0
      %2628 = vmatprep.subr.mxu0 0.0
      %2629 = vmatpush1.msra.mxu0 0.0
      %2630 = vmatprep.subr.mxu0 0.0
      %2631 = vmatpush1.msra.mxu0 0.0
      %2632 = vmatprep.subr.mxu0 0.0
      %2633 = vmatpush1.msra.mxu0 0.0
      %2634 = vmatprep.subr.mxu0 0.0
      %2635 = vmatpush1.msra.mxu0 0.0
      %2636 = vmatprep.subr.mxu0 0.0
      %2637 = vmatpush1.msra.mxu0 0.0
      %2638 = vmatprep.subr.mxu0 0.0
      %2639 = vmatpush1.msra.mxu0 0.0
      %2640 = vmatprep.subr.mxu0 0.0
      %2641 = vmatpush1.msra.mxu0 0.0
      %2642 = vmatprep.subr.mxu0 0.0
      %2643 = vmatpush1.msra.mxu0 0.0
      %2644 = vmatprep.subr.mxu0 0.0
      %2645 = vmatpush1.msra.mxu0 0.0
      %2646 = vmatprep.subr.mxu0 0.0
      %2647 = vmatpush1.msra.mxu0 0.0
      %2648 = vmatprep.subr.mxu0 0.0
      %2649 = vmatpush1.msra.mxu0 0.0
      %2650 = vmatprep.subr.mxu0 0.0
      %2651 = vmatpush1.msra.mxu0 0.0
      %2652 = vmatprep.subr.mxu0 0.0
      %2653 = vmatpush1.msra.mxu0 0.0
      %2654 = vmatprep.subr.mxu0 0.0
      %2655 = vmatpush1.msra.mxu0 0.0
      %2656 = vmatprep.mubr.f32.mxu0 0.0
      %2657 = vmatmul.mubr.f32.gmra.mrb[0].mxu0 %v414
      %v2658 = vpop.f32.mrb[0].mxu0
      %v2659 = vadd.f32 1e-05, %v2658
      %v2660 = vpop.f32.mrb[0].mxu0
      %2661 = vmatprep.mubr.f32.mxu0 0.0
      %2662 = vmatmul.mubr.f32.gmra.mrb[0].mxu0 %v417
      %v2663 = vpop.f32.mrb[0].mxu0
      %v2664 = vadd.f32 1e-05, %v2663
      %v2665 = vpop.f32.mrb[0].mxu0
      %2666 = vdwg.mxu0
      %v2667 = vrsqrt.pop %v2659
      %v2668 = vrsqrt.pop %v2664
      %2670 = vset.pattern.permute.xlu0 0
      %2671 = vperm.xlu0 %2670, %v2667
      %v2672 = vpop.permute.xlu0 %2671
      %2675 = vset.pattern.permute.xlu0 0
      %2676 = vperm.xlu0 %2675, %v2668
      %v2677 = vpop.permute.xlu0 %2676
      %v2679 = vmul.f32 %v2566, %v2672
      %v2680 = vmul.f32 %v2567, %v2672
      %v2681 = vmul.f32 %v2568, %v2672
      %v2682 = vmul.f32 %v2569, %v2672
      %v2683 = vmul.f32 %v2570, %v2677
      %v2684 = vmul.f32 %v2571, %v2677
      %v2685 = vmul.f32 %v2572, %v2677
      %v2686 = vmul.f32 %v2573, %v2677
      %2688 = vset.pattern.permute.xlu0 0
      %2689 = vperm.xlu0 %2688, %v2467
      %v2690 = vpop.permute.xlu0 %2689
      %2693 = vset.pattern.permute.xlu0 0
      %2694 = vperm.xlu0 %2693, %v2468
      %v2695 = vpop.permute.xlu0 %2694
      %v2697 = vmul.f32 %v2679, %v2690
      %v2698 = vmul.f32 %v2680, %v2690
      %v2699 = vmul.f32 %v2681, %v2690
      %v2700 = vmul.f32 %v2682, %v2690
      %v2701 = vmul.f32 %v2683, %v2695
      %v2702 = vmul.f32 %v2684, %v2695
      %v2703 = vmul.f32 %v2685, %v2695
      %v2704 = vmul.f32 %v2686, %v2695
      %2706 = vset.pattern.permute.xlu0 0
      %2707 = vperm.xlu0 %2706, %v2469
      %v2708 = vpop.permute.xlu0 %2707
      %2711 = vset.pattern.permute.xlu0 0
      %2712 = vperm.xlu0 %2711, %v2470
      %v2713 = vpop.permute.xlu0 %2712
      %v2715 = vadd.f32 %v2697, %v2708
      %v2716 = vadd.f32 %v2698, %v2708
      %v2717 = vadd.f32 %v2699, %v2708
      %v2718 = vadd.f32 %v2700, %v2708
      %v2719 = vadd.f32 %v2701, %v2713
      %v2720 = vadd.f32 %v2702, %v2713
      %v2721 = vadd.f32 %v2703, %v2713
      %v2722 = vadd.f32 %v2704, %v2713
      %v2723 = vmax.f32 %v2715, 0.0
      %v2724 = vmax.f32 %v2716, 0.0
      %v2725 = vmax.f32 %v2717, 0.0
      %v2726 = vmax.f32 %v2718, 0.0
      %v2727 = vmax.f32 %v2719, 0.0
      %v2728 = vmax.f32 %v2720, 0.0
      %v2729 = vmax.f32 %v2721, 0.0
      %v2730 = vmax.f32 %v2722, 0.0
      %2731 = vrot.lane.b32.xlu0 %v2723, 73
      %v2732 = vpop.permute.xlu0 %2731
      %2733 = vrot.lane.b32.xlu0 %v2727, 73
      %v2734 = vpop.permute.xlu0 %2733
      %2735 = vrot.lane.b32.xlu0 %v2724, 73
      %v2736 = vpop.permute.xlu0 %2735
      %2737 = vrot.lane.b32.xlu0 %v2728, 73
      %v2738 = vpop.permute.xlu0 %2737
      %2739 = vrot.lane.b32.xlu0 %v2725, 73
      %v2740 = vpop.permute.xlu0 %2739
      %2741 = vrot.lane.b32.xlu0 %v2729, 73
      %v2742 = vpop.permute.xlu0 %2741
      %2743 = vrot.lane.b32.xlu0 %v2726, 73
      %v2744 = vpop.permute.xlu0 %2743
      %2745 = vrot.lane.b32.xlu0 %v2730, 73
      %v2746 = vpop.permute.xlu0 %2745
      %v2747 = vsel %vm687, %v2740, %v2744
      %v2748 = vsel %vm687, %v2742, %v2746
      %v2749 = vsel %vm687, %v2736, %v2740
      %v2750 = vsel %vm687, %v2738, %v2742
      %v2751 = vsel %vm687, %v2732, %v2736
      %v2752 = vsel %vm687, %v2734, %v2738
      %v2753 = vsel %vm687, %v2744, %v2732
      %v2754 = vsel %vm687, %v2746, %v2734
      %v2755 = vld [vmem:[%s10] ss:$8 sm:$0xf]
      %v2757 = vlaneseq
      %v2758 = vshrl.u32 %v2757, 7
      %v2759 = vsub.s32 0, %v2758
      %v2760 = vrot.slane %v2755, %v2759
      %v2761 = vlaneseq
      %v2762 = vshrl.u32 %v2761, 7
      %v2763 = vsub.s32 1, %v2762
      %v2764 = vrot.slane %v2755, %v2763
      %v2765 = vlaneseq
      %v2766 = vshrl.u32 %v2765, 7
      %v2767 = vsub.s32 2, %v2766
      %v2768 = vrot.slane %v2755, %v2767
      %v2769 = vlaneseq
      %v2770 = vshrl.u32 %v2769, 7
      %v2771 = vsub.s32 3, %v2770
      %v2772 = vrot.slane %v2755, %v2771
      %v2777 = vmul.f32 %v2753, %v2760
      %v2778 = vmul.f32 %v2751, %v2764
      %v2779 = vmul.f32 %v2749, %v2768
      %v2780 = vmul.f32 %v2747, %v2772
      %v2781 = vmul.f32 %v2754, %v2760
      %v2782 = vmul.f32 %v2752, %v2764
      %v2783 = vmul.f32 %v2750, %v2768
      %v2784 = vmul.f32 %v2748, %v2772
      %v2785 = vpack.c.bf16 %v2781, %v2777
      %v2786 = vpack.c.bf16 %v2782, %v2778
      %v2787 = vpack.c.bf16 %v2783, %v2779
      %v2788 = vpack.c.bf16 %v2784, %v2780
      %2789 = vst [vmem:[#allocation2] sm:$0xff] %v2785
      %2790 = vst [vmem:[#allocation2 + $0x8] sm:$0xff] %v2786
      %2791 = vst [vmem:[#allocation2 + $0x10] sm:$0xff] %v2787
      %2792 = vst [vmem:[#allocation2 + $0x18] sm:$0xff] %v2788
      %2793 = vrot.lane.b32.xlu0 %v2723, 72
      %v2794 = vpop.permute.xlu0 %2793
      %2795 = vrot.lane.b32.xlu0 %v2727, 72
      %v2796 = vpop.permute.xlu0 %2795
      %2797 = vrot.lane.b32.xlu0 %v2724, 72
      %v2798 = vpop.permute.xlu0 %2797
      %2799 = vrot.lane.b32.xlu0 %v2728, 72
      %v2800 = vpop.permute.xlu0 %2799
      %2801 = vrot.lane.b32.xlu0 %v2725, 72
      %v2802 = vpop.permute.xlu0 %2801
      %2803 = vrot.lane.b32.xlu0 %v2729, 72
      %v2804 = vpop.permute.xlu0 %2803
      %2805 = vrot.lane.b32.xlu0 %v2726, 72
      %v2806 = vpop.permute.xlu0 %2805
      %2807 = vrot.lane.b32.xlu0 %v2730, 72
      %v2808 = vpop.permute.xlu0 %2807
      %v2809 = vsel %vm750, %v2802, %v2806
      %v2810 = vsel %vm750, %v2804, %v2808
      %v2811 = vsel %vm750, %v2798, %v2802
      %v2812 = vsel %vm750, %v2800, %v2804
      %v2813 = vsel %vm750, %v2794, %v2798
      %v2814 = vsel %vm750, %v2796, %v2800
      %v2815 = vsel %vm750, %v2806, %v2794
      %v2816 = vsel %vm750, %v2808, %v2796
      %v2817 = vld [vmem:[%s759] ss:$8 sm:$0xf]
      %v2819 = vlaneseq
      %v2820 = vshrl.u32 %v2819, 7
      %v2821 = vsub.s32 0, %v2820
      %v2822 = vrot.slane %v2817, %v2821
      %v2823 = vlaneseq
      %v2824 = vshrl.u32 %v2823, 7
      %v2825 = vsub.s32 1, %v2824
      %v2826 = vrot.slane %v2817, %v2825
      %v2827 = vlaneseq
      %v2828 = vshrl.u32 %v2827, 7
      %v2829 = vsub.s32 2, %v2828
      %v2830 = vrot.slane %v2817, %v2829
      %v2831 = vlaneseq
      %v2832 = vshrl.u32 %v2831, 7
      %v2833 = vsub.s32 3, %v2832
      %v2834 = vrot.slane %v2817, %v2833
      %v2839 = vmul.f32 %v2815, %v2822
      %v2840 = vmul.f32 %v2813, %v2826
      %v2841 = vmul.f32 %v2811, %v2830
      %v2842 = vmul.f32 %v2809, %v2834
      %v2843 = vmul.f32 %v2816, %v2822
      %v2844 = vmul.f32 %v2814, %v2826
      %v2845 = vmul.f32 %v2812, %v2830
      %v2846 = vmul.f32 %v2810, %v2834
      %v2847 = vpack.c.bf16 %v2843, %v2839
      %v2848 = vpack.c.bf16 %v2844, %v2840
      %v2849 = vpack.c.bf16 %v2845, %v2841
      %v2850 = vpack.c.bf16 %v2846, %v2842
      %2851 = vst [vmem:[#allocation2 + $0x20] sm:$0xff] %v2847
      %2852 = vst [vmem:[#allocation2 + $0x28] sm:$0xff] %v2848
      %2853 = vst [vmem:[#allocation2 + $0x30] sm:$0xff] %v2849
      %2854 = vst [vmem:[#allocation2 + $0x38] sm:$0xff] %v2850
      %2855 = vrot.lane.b32.xlu0 %v2723, 71
      %v2856 = vpop.permute.xlu0 %2855
      %2857 = vrot.lane.b32.xlu0 %v2727, 71
      %v2858 = vpop.permute.xlu0 %2857
      %2859 = vrot.lane.b32.xlu0 %v2724, 71
      %v2860 = vpop.permute.xlu0 %2859
      %2861 = vrot.lane.b32.xlu0 %v2728, 71
      %v2862 = vpop.permute.xlu0 %2861
      %2863 = vrot.lane.b32.xlu0 %v2725, 71
      %v2864 = vpop.permute.xlu0 %2863
      %2865 = vrot.lane.b32.xlu0 %v2729, 71
      %v2866 = vpop.permute.xlu0 %2865
      %2867 = vrot.lane.b32.xlu0 %v2726, 71
      %v2868 = vpop.permute.xlu0 %2867
      %2869 = vrot.lane.b32.xlu0 %v2730, 71
      %v2870 = vpop.permute.xlu0 %2869
      %v2871 = vsel %vm814, %v2864, %v2868
      %v2872 = vsel %vm814, %v2866, %v2870
      %v2873 = vsel %vm814, %v2860, %v2864
      %v2874 = vsel %vm814, %v2862, %v2866
      %v2875 = vsel %vm814, %v2856, %v2860
      %v2876 = vsel %vm814, %v2858, %v2862
      %v2877 = vsel %vm814, %v2868, %v2856
      %v2878 = vsel %vm814, %v2870, %v2858
      %v2879 = vld [vmem:[%s823] ss:$8 sm:$0xf]
      %v2881 = vlaneseq
      %v2882 = vshrl.u32 %v2881, 7
      %v2883 = vsub.s32 0, %v2882
      %v2884 = vrot.slane %v2879, %v2883
      %v2885 = vlaneseq
      %v2886 = vshrl.u32 %v2885, 7
      %v2887 = vsub.s32 1, %v2886
      %v2888 = vrot.slane %v2879, %v2887
      %v2889 = vlaneseq
      %v2890 = vshrl.u32 %v2889, 7
      %v2891 = vsub.s32 2, %v2890
      %v2892 = vrot.slane %v2879, %v2891
      %v2893 = vlaneseq
      %v2894 = vshrl.u32 %v2893, 7
      %v2895 = vsub.s32 3, %v2894
      %v2896 = vrot.slane %v2879, %v2895
      %v2901 = vmul.f32 %v2877, %v2884
      %v2902 = vmul.f32 %v2875, %v2888
      %v2903 = vmul.f32 %v2873, %v2892
      %v2904 = vmul.f32 %v2871, %v2896
      %v2905 = vmul.f32 %v2878, %v2884
      %v2906 = vmul.f32 %v2876, %v2888
      %v2907 = vmul.f32 %v2874, %v2892
      %v2908 = vmul.f32 %v2872, %v2896
      %v2909 = vpack.c.bf16 %v2905, %v2901
      %v2910 = vpack.c.bf16 %v2906, %v2902
      %v2911 = vpack.c.bf16 %v2907, %v2903
      %v2912 = vpack.c.bf16 %v2908, %v2904
      %2913 = vst [vmem:[#allocation2 + $0x40] sm:$0xff] %v2909
      %2914 = vst [vmem:[#allocation2 + $0x48] sm:$0xff] %v2910
      %2915 = vst [vmem:[#allocation2 + $0x50] sm:$0xff] %v2911
      %2916 = vst [vmem:[#allocation2 + $0x58] sm:$0xff] %v2912
      %2917 = vrot.lane.b32.xlu0 %v2723, 65
      %v2918 = vpop.permute.xlu0 %2917
      %2919 = vrot.lane.b32.xlu0 %v2727, 65
      %v2920 = vpop.permute.xlu0 %2919
      %2921 = vrot.lane.b32.xlu0 %v2724, 65
      %v2922 = vpop.permute.xlu0 %2921
      %2923 = vrot.lane.b32.xlu0 %v2728, 65
      %v2924 = vpop.permute.xlu0 %2923
      %2925 = vrot.lane.b32.xlu0 %v2725, 65
      %v2926 = vpop.permute.xlu0 %2925
      %2927 = vrot.lane.b32.xlu0 %v2729, 65
      %v2928 = vpop.permute.xlu0 %2927
      %2929 = vrot.lane.b32.xlu0 %v2726, 65
      %v2930 = vpop.permute.xlu0 %2929
      %2931 = vrot.lane.b32.xlu0 %v2730, 65
      %v2932 = vpop.permute.xlu0 %2931
      %v2933 = vsel %vm878, %v2926, %v2930
      %v2934 = vsel %vm878, %v2928, %v2932
      %v2935 = vsel %vm878, %v2922, %v2926
      %v2936 = vsel %vm878, %v2924, %v2928
      %v2937 = vsel %vm878, %v2918, %v2922
      %v2938 = vsel %vm878, %v2920, %v2924
      %v2939 = vsel %vm878, %v2930, %v2918
      %v2940 = vsel %vm878, %v2932, %v2920
      %v2941 = vld [vmem:[%s887] ss:$8 sm:$0xf]
      %v2943 = vlaneseq
      %v2944 = vshrl.u32 %v2943, 7
      %v2945 = vsub.s32 0, %v2944
      %v2946 = vrot.slane %v2941, %v2945
      %v2947 = vlaneseq
      %v2948 = vshrl.u32 %v2947, 7
      %v2949 = vsub.s32 1, %v2948
      %v2950 = vrot.slane %v2941, %v2949
      %v2951 = vlaneseq
      %v2952 = vshrl.u32 %v2951, 7
      %v2953 = vsub.s32 2, %v2952
      %v2954 = vrot.slane %v2941, %v2953
      %v2955 = vlaneseq
      %v2956 = vshrl.u32 %v2955, 7
      %v2957 = vsub.s32 3, %v2956
      %v2958 = vrot.slane %v2941, %v2957
      %v2963 = vmul.f32 %v2939, %v2946
      %v2964 = vmul.f32 %v2937, %v2950
      %v2965 = vmul.f32 %v2935, %v2954
      %v2966 = vmul.f32 %v2933, %v2958
      %v2967 = vmul.f32 %v2940, %v2946
      %v2968 = vmul.f32 %v2938, %v2950
      %v2969 = vmul.f32 %v2936, %v2954
      %v2970 = vmul.f32 %v2934, %v2958
      %v2971 = vpack.c.bf16 %v2967, %v2963
      %v2972 = vpack.c.bf16 %v2968, %v2964
      %v2973 = vpack.c.bf16 %v2969, %v2965
      %v2974 = vpack.c.bf16 %v2970, %v2966
      %2975 = vst [vmem:[#allocation2 + $0x60] sm:$0xff] %v2971
      %2976 = vst [vmem:[#allocation2 + $0x68] sm:$0xff] %v2972
      %2977 = vst [vmem:[#allocation2 + $0x70] sm:$0xff] %v2973
      %2978 = vst [vmem:[#allocation2 + $0x78] sm:$0xff] %v2974
      %2979 = vrot.lane.b32.xlu0 %v2723, 64
      %v2980 = vpop.permute.xlu0 %2979
      %2981 = vrot.lane.b32.xlu0 %v2727, 64
      %v2982 = vpop.permute.xlu0 %2981
      %2983 = vrot.lane.b32.xlu0 %v2724, 64
      %v2984 = vpop.permute.xlu0 %2983
      %2985 = vrot.lane.b32.xlu0 %v2728, 64
      %v2986 = vpop.permute.xlu0 %2985
      %2987 = vrot.lane.b32.xlu0 %v2725, 64
      %v2988 = vpop.permute.xlu0 %2987
      %2989 = vrot.lane.b32.xlu0 %v2729, 64
      %v2990 = vpop.permute.xlu0 %2989
      %2991 = vrot.lane.b32.xlu0 %v2726, 64
      %v2992 = vpop.permute.xlu0 %2991
      %2993 = vrot.lane.b32.xlu0 %v2730, 64
      %v2994 = vpop.permute.xlu0 %2993
      %v2995 = vsel %vm942, %v2988, %v2992
      %v2996 = vsel %vm942, %v2990, %v2994
      %v2997 = vsel %vm942, %v2984, %v2988
      %v2998 = vsel %vm942, %v2986, %v2990
      %v2999 = vsel %vm942, %v2980, %v2984
      %v3000 = vsel %vm942, %v2982, %v2986
      %v3001 = vsel %vm942, %v2992, %v2980
      %v3002 = vsel %vm942, %v2994, %v2982
      %v3003 = vld [vmem:[%s951] ss:$8 sm:$0xf]
      %v3005 = vlaneseq
      %v3006 = vshrl.u32 %v3005, 7
      %v3007 = vsub.s32 0, %v3006
      %v3008 = vrot.slane %v3003, %v3007
      %v3009 = vlaneseq
      %v3010 = vshrl.u32 %v3009, 7
      %v3011 = vsub.s32 1, %v3010
      %v3012 = vrot.slane %v3003, %v3011
      %v3013 = vlaneseq
      %v3014 = vshrl.u32 %v3013, 7
      %v3015 = vsub.s32 2, %v3014
      %v3016 = vrot.slane %v3003, %v3015
      %v3017 = vlaneseq
      %v3018 = vshrl.u32 %v3017, 7
      %v3019 = vsub.s32 3, %v3018
      %v3020 = vrot.slane %v3003, %v3019
      %v3025 = vmul.f32 %v3001, %v3008
      %v3026 = vmul.f32 %v2999, %v3012
      %v3027 = vmul.f32 %v2997, %v3016
      %v3028 = vmul.f32 %v2995, %v3020
      %v3029 = vmul.f32 %v3002, %v3008
      %v3030 = vmul.f32 %v3000, %v3012
      %v3031 = vmul.f32 %v2998, %v3016
      %v3032 = vmul.f32 %v2996, %v3020
      %v3033 = vpack.c.bf16 %v3029, %v3025
      %v3034 = vpack.c.bf16 %v3030, %v3026
      %v3035 = vpack.c.bf16 %v3031, %v3027
      %v3036 = vpack.c.bf16 %v3032, %v3028
      %3037 = vst [vmem:[#allocation2 + $0x80] sm:$0xff] %v3033
      %3038 = vst [vmem:[#allocation2 + $0x88] sm:$0xff] %v3034
      %3039 = vst [vmem:[#allocation2 + $0x90] sm:$0xff] %v3035
      %3040 = vst [vmem:[#allocation2 + $0x98] sm:$0xff] %v3036
      %3041 = vrot.lane.b32.xlu0 %v2723, 63
      %v3042 = vpop.permute.xlu0 %3041
      %3043 = vrot.lane.b32.xlu0 %v2727, 63
      %v3044 = vpop.permute.xlu0 %3043
      %3045 = vrot.lane.b32.xlu0 %v2724, 63
      %v3046 = vpop.permute.xlu0 %3045
      %3047 = vrot.lane.b32.xlu0 %v2728, 63
      %v3048 = vpop.permute.xlu0 %3047
      %3049 = vrot.lane.b32.xlu0 %v2725, 63
      %v3050 = vpop.permute.xlu0 %3049
      %3051 = vrot.lane.b32.xlu0 %v2729, 63
      %v3052 = vpop.permute.xlu0 %3051
      %3053 = vrot.lane.b32.xlu0 %v2726, 63
      %v3054 = vpop.permute.xlu0 %3053
      %3055 = vrot.lane.b32.xlu0 %v2730, 63
      %v3056 = vpop.permute.xlu0 %3055
      %v3057 = vsel %vm1006, %v3050, %v3054
      %v3058 = vsel %vm1006, %v3052, %v3056
      %v3059 = vsel %vm1006, %v3046, %v3050
      %v3060 = vsel %vm1006, %v3048, %v3052
      %v3061 = vsel %vm1006, %v3042, %v3046
      %v3062 = vsel %vm1006, %v3044, %v3048
      %v3063 = vsel %vm1006, %v3054, %v3042
      %v3064 = vsel %vm1006, %v3056, %v3044
      %v3065 = vld [vmem:[%s1015] ss:$8 sm:$0xf]
      %v3067 = vlaneseq
      %v3068 = vshrl.u32 %v3067, 7
      %v3069 = vsub.s32 0, %v3068
      %v3070 = vrot.slane %v3065, %v3069
      %v3071 = vlaneseq
      %v3072 = vshrl.u32 %v3071, 7
      %v3073 = vsub.s32 1, %v3072
      %v3074 = vrot.slane %v3065, %v3073
      %v3075 = vlaneseq
      %v3076 = vshrl.u32 %v3075, 7
      %v3077 = vsub.s32 2, %v3076
      %v3078 = vrot.slane %v3065, %v3077
      %v3079 = vlaneseq
      %v3080 = vshrl.u32 %v3079, 7
      %v3081 = vsub.s32 3, %v3080
      %v3082 = vrot.slane %v3065, %v3081
      %v3087 = vmul.f32 %v3063, %v3070
      %v3088 = vmul.f32 %v3061, %v3074
      %v3089 = vmul.f32 %v3059, %v3078
      %v3090 = vmul.f32 %v3057, %v3082
      %v3091 = vmul.f32 %v3064, %v3070
      %v3092 = vmul.f32 %v3062, %v3074
      %v3093 = vmul.f32 %v3060, %v3078
      %v3094 = vmul.f32 %v3058, %v3082
      %v3095 = vpack.c.bf16 %v3091, %v3087
      %v3096 = vpack.c.bf16 %v3092, %v3088
      %v3097 = vpack.c.bf16 %v3093, %v3089
      %v3098 = vpack.c.bf16 %v3094, %v3090
      %3099 = vst [vmem:[#allocation2 + $0xa0] sm:$0xff] %v3095
      %3100 = vst [vmem:[#allocation2 + $0xa8] sm:$0xff] %v3096
      %3101 = vst [vmem:[#allocation2 + $0xb0] sm:$0xff] %v3097
      %3102 = vst [vmem:[#allocation2 + $0xb8] sm:$0xff] %v3098
      %3103 = vrot.lane.b32.xlu0 %v2723, 57
      %v3104 = vpop.permute.xlu0 %3103
      %3105 = vrot.lane.b32.xlu0 %v2727, 57
      %v3106 = vpop.permute.xlu0 %3105
      %3107 = vrot.lane.b32.xlu0 %v2724, 57
      %v3108 = vpop.permute.xlu0 %3107
      %3109 = vrot.lane.b32.xlu0 %v2728, 57
      %v3110 = vpop.permute.xlu0 %3109
      %3111 = vrot.lane.b32.xlu0 %v2725, 57
      %v3112 = vpop.permute.xlu0 %3111
      %3113 = vrot.lane.b32.xlu0 %v2729, 57
      %v3114 = vpop.permute.xlu0 %3113
      %3115 = vrot.lane.b32.xlu0 %v2726, 57
      %v3116 = vpop.permute.xlu0 %3115
      %3117 = vrot.lane.b32.xlu0 %v2730, 57
      %v3118 = vpop.permute.xlu0 %3117
      %v3119 = vsel %vm1070, %v3112, %v3116
      %v3120 = vsel %vm1070, %v3114, %v3118
      %v3121 = vsel %vm1070, %v3108, %v3112
      %v3122 = vsel %vm1070, %v3110, %v3114
      %v3123 = vsel %vm1070, %v3104, %v3108
      %v3124 = vsel %vm1070, %v3106, %v3110
      %v3125 = vsel %vm1070, %v3116, %v3104
      %v3126 = vsel %vm1070, %v3118, %v3106
      %v3127 = vld [vmem:[%s1079] ss:$8 sm:$0xf]
      %v3129 = vlaneseq
      %v3130 = vshrl.u32 %v3129, 7
      %v3131 = vsub.s32 0, %v3130
      %v3132 = vrot.slane %v3127, %v3131
      %v3133 = vlaneseq
      %v3134 = vshrl.u32 %v3133, 7
      %v3135 = vsub.s32 1, %v3134
      %v3136 = vrot.slane %v3127, %v3135
      %v3137 = vlaneseq
      %v3138 = vshrl.u32 %v3137, 7
      %v3139 = vsub.s32 2, %v3138
      %v3140 = vrot.slane %v3127, %v3139
      %v3141 = vlaneseq
      %v3142 = vshrl.u32 %v3141, 7
      %v3143 = vsub.s32 3, %v3142
      %v3144 = vrot.slane %v3127, %v3143
      %v3149 = vmul.f32 %v3125, %v3132
      %v3150 = vmul.f32 %v3123, %v3136
      %v3151 = vmul.f32 %v3121, %v3140
      %v3152 = vmul.f32 %v3119, %v3144
      %v3153 = vmul.f32 %v3126, %v3132
      %v3154 = vmul.f32 %v3124, %v3136
      %v3155 = vmul.f32 %v3122, %v3140
      %v3156 = vmul.f32 %v3120, %v3144
      %v3157 = vpack.c.bf16 %v3153, %v3149
      %v3158 = vpack.c.bf16 %v3154, %v3150
      %v3159 = vpack.c.bf16 %v3155, %v3151
      %v3160 = vpack.c.bf16 %v3156, %v3152
      %3161 = vst [vmem:[#allocation2 + $0xc0] sm:$0xff] %v3157
      %3162 = vst [vmem:[#allocation2 + $0xc8] sm:$0xff] %v3158
      %3163 = vst [vmem:[#allocation2 + $0xd0] sm:$0xff] %v3159
      %3164 = vst [vmem:[#allocation2 + $0xd8] sm:$0xff] %v3160
      %3165 = vrot.lane.b32.xlu0 %v2723, 56
      %v3166 = vpop.permute.xlu0 %3165
      %3167 = vrot.lane.b32.xlu0 %v2727, 56
      %v3168 = vpop.permute.xlu0 %3167
      %3169 = vrot.lane.b32.xlu0 %v2724, 56
      %v3170 = vpop.permute.xlu0 %3169
      %3171 = vrot.lane.b32.xlu0 %v2728, 56
      %v3172 = vpop.permute.xlu0 %3171
      %3173 = vrot.lane.b32.xlu0 %v2725, 56
      %v3174 = vpop.permute.xlu0 %3173
      %3175 = vrot.lane.b32.xlu0 %v2729, 56
      %v3176 = vpop.permute.xlu0 %3175
      %3177 = vrot.lane.b32.xlu0 %v2726, 56
      %v3178 = vpop.permute.xlu0 %3177
      %3179 = vrot.lane.b32.xlu0 %v2730, 56
      %v3180 = vpop.permute.xlu0 %3179
      %v3181 = vsel %vm1134, %v3174, %v3178
      %v3182 = vsel %vm1134, %v3176, %v3180
      %v3183 = vsel %vm1134, %v3170, %v3174
      %v3184 = vsel %vm1134, %v3172, %v3176
      %v3185 = vsel %vm1134, %v3166, %v3170
      %v3186 = vsel %vm1134, %v3168, %v3172
      %v3187 = vsel %vm1134, %v3178, %v3166
      %v3188 = vsel %vm1134, %v3180, %v3168
      %v3189 = vld [vmem:[%s1143] ss:$8 sm:$0xf]
      %v3191 = vlaneseq
      %v3192 = vshrl.u32 %v3191, 7
      %v3193 = vsub.s32 0, %v3192
      %v3194 = vrot.slane %v3189, %v3193
      %v3195 = vlaneseq
      %v3196 = vshrl.u32 %v3195, 7
      %v3197 = vsub.s32 1, %v3196
      %v3198 = vrot.slane %v3189, %v3197
      %v3199 = vlaneseq
      %v3200 = vshrl.u32 %v3199, 7
      %v3201 = vsub.s32 2, %v3200
      %v3202 = vrot.slane %v3189, %v3201
      %v3203 = vlaneseq
      %v3204 = vshrl.u32 %v3203, 7
      %v3205 = vsub.s32 3, %v3204
      %v3206 = vrot.slane %v3189, %v3205
      %v3211 = vmul.f32 %v3187, %v3194
      %v3212 = vmul.f32 %v3185, %v3198
      %v3213 = vmul.f32 %v3183, %v3202
      %v3214 = vmul.f32 %v3181, %v3206
      %v3215 = vmul.f32 %v3188, %v3194
      %v3216 = vmul.f32 %v3186, %v3198
      %v3217 = vmul.f32 %v3184, %v3202
      %v3218 = vmul.f32 %v3182, %v3206
      %v3219 = vpack.c.bf16 %v3215, %v3211
      %v3220 = vpack.c.bf16 %v3216, %v3212
      %v3221 = vpack.c.bf16 %v3217, %v3213
      %v3222 = vpack.c.bf16 %v3218, %v3214
      %3223 = vst [vmem:[#allocation2 + $0xe0] sm:$0xff] %v3219
      %3224 = vst [vmem:[#allocation2 + $0xe8] sm:$0xff] %v3220
      %3225 = vst [vmem:[#allocation2 + $0xf0] sm:$0xff] %v3221
      %3226 = vst [vmem:[#allocation2 + $0xf8] sm:$0xff] %v3222
      %3227 = vrot.lane.b32.xlu0 %v2723, 55
      %v3228 = vpop.permute.xlu0 %3227
      %3229 = vrot.lane.b32.xlu0 %v2727, 55
      %v3230 = vpop.permute.xlu0 %3229
      %3231 = vrot.lane.b32.xlu0 %v2724, 55
      %v3232 = vpop.permute.xlu0 %3231
      %3233 = vrot.lane.b32.xlu0 %v2728, 55
      %v3234 = vpop.permute.xlu0 %3233
      %3235 = vrot.lane.b32.xlu0 %v2725, 55
      %v3236 = vpop.permute.xlu0 %3235
      %3237 = vrot.lane.b32.xlu0 %v2729, 55
      %v3238 = vpop.permute.xlu0 %3237
      %3239 = vrot.lane.b32.xlu0 %v2726, 55
      %v3240 = vpop.permute.xlu0 %3239
      %3241 = vrot.lane.b32.xlu0 %v2730, 55
      %v3242 = vpop.permute.xlu0 %3241
      %v3243 = vsel %vm1198, %v3236, %v3240
      %v3244 = vsel %vm1198, %v3238, %v3242
      %v3245 = vsel %vm1198, %v3232, %v3236
      %v3246 = vsel %vm1198, %v3234, %v3238
      %v3247 = vsel %vm1198, %v3228, %v3232
      %v3248 = vsel %vm1198, %v3230, %v3234
      %v3249 = vsel %vm1198, %v3240, %v3228
      %v3250 = vsel %vm1198, %v3242, %v3230
      %v3251 = vld [vmem:[%s1207] ss:$8 sm:$0xf]
      %v3253 = vlaneseq
      %v3254 = vshrl.u32 %v3253, 7
      %v3255 = vsub.s32 0, %v3254
      %v3256 = vrot.slane %v3251, %v3255
      %v3257 = vlaneseq
      %v3258 = vshrl.u32 %v3257, 7
      %v3259 = vsub.s32 1, %v3258
      %v3260 = vrot.slane %v3251, %v3259
      %v3261 = vlaneseq
      %v3262 = vshrl.u32 %v3261, 7
      %v3263 = vsub.s32 2, %v3262
      %v3264 = vrot.slane %v3251, %v3263
      %v3265 = vlaneseq
      %v3266 = vshrl.u32 %v3265, 7
      %v3267 = vsub.s32 3, %v3266
      %v3268 = vrot.slane %v3251, %v3267
      %v3273 = vmul.f32 %v3249, %v3256
      %v3274 = vmul.f32 %v3247, %v3260
      %v3275 = vmul.f32 %v3245, %v3264
      %v3276 = vmul.f32 %v3243, %v3268
      %v3277 = vmul.f32 %v3250, %v3256
      %v3278 = vmul.f32 %v3248, %v3260
      %v3279 = vmul.f32 %v3246, %v3264
      %v3280 = vmul.f32 %v3244, %v3268
      %v3281 = vpack.c.bf16 %v3277, %v3273
      %v3282 = vpack.c.bf16 %v3278, %v3274
      %v3283 = vpack.c.bf16 %v3279, %v3275
      %v3284 = vpack.c.bf16 %v3280, %v3276
      %3285 = vst [vmem:[#allocation2 + $0x100] sm:$0xff] %v3281
      %3286 = vst [vmem:[#allocation2 + $0x108] sm:$0xff] %v3282
      %3287 = vst [vmem:[#allocation2 + $0x110] sm:$0xff] %v3283
      %3288 = vst [vmem:[#allocation2 + $0x118] sm:$0xff] %v3284
      %3289 = vrot.lane.b32.xlu0 %v2723, 9
      %v3290 = vpop.permute.xlu0 %3289
      %3291 = vrot.lane.b32.xlu0 %v2727, 9
      %v3292 = vpop.permute.xlu0 %3291
      %3293 = vrot.lane.b32.xlu0 %v2724, 9
      %v3294 = vpop.permute.xlu0 %3293
      %3295 = vrot.lane.b32.xlu0 %v2728, 9
      %v3296 = vpop.permute.xlu0 %3295
      %3297 = vrot.lane.b32.xlu0 %v2725, 9
      %v3298 = vpop.permute.xlu0 %3297
      %3299 = vrot.lane.b32.xlu0 %v2729, 9
      %v3300 = vpop.permute.xlu0 %3299
      %3301 = vrot.lane.b32.xlu0 %v2726, 9
      %v3302 = vpop.permute.xlu0 %3301
      %3303 = vrot.lane.b32.xlu0 %v2730, 9
      %v3304 = vpop.permute.xlu0 %3303
      %v3305 = vsel %vm1262, %v3298, %v3302
      %v3306 = vsel %vm1262, %v3300, %v3304
      %v3307 = vsel %vm1262, %v3294, %v3298
      %v3308 = vsel %vm1262, %v3296, %v3300
      %v3309 = vsel %vm1262, %v3290, %v3294
      %v3310 = vsel %vm1262, %v3292, %v3296
      %v3311 = vsel %vm1262, %v3302, %v3290
      %v3312 = vsel %vm1262, %v3304, %v3292
      %v3313 = vld [vmem:[%s1271] ss:$8 sm:$0xf]
      %v3315 = vlaneseq
      %v3316 = vshrl.u32 %v3315, 7
      %v3317 = vsub.s32 0, %v3316
      %v3318 = vrot.slane %v3313, %v3317
      %v3319 = vlaneseq
      %v3320 = vshrl.u32 %v3319, 7
      %v3321 = vsub.s32 1, %v3320
      %v3322 = vrot.slane %v3313, %v3321
      %v3323 = vlaneseq
      %v3324 = vshrl.u32 %v3323, 7
      %v3325 = vsub.s32 2, %v3324
      %v3326 = vrot.slane %v3313, %v3325
      %v3327 = vlaneseq
      %v3328 = vshrl.u32 %v3327, 7
      %v3329 = vsub.s32 3, %v3328
      %v3330 = vrot.slane %v3313, %v3329
      %v3335 = vmul.f32 %v3311, %v3318
      %v3336 = vmul.f32 %v3309, %v3322
      %v3337 = vmul.f32 %v3307, %v3326
      %v3338 = vmul.f32 %v3305, %v3330
      %v3339 = vmul.f32 %v3312, %v3318
      %v3340 = vmul.f32 %v3310, %v3322
      %v3341 = vmul.f32 %v3308, %v3326
      %v3342 = vmul.f32 %v3306, %v3330
      %v3343 = vpack.c.bf16 %v3339, %v3335
      %v3344 = vpack.c.bf16 %v3340, %v3336
      %v3345 = vpack.c.bf16 %v3341, %v3337
      %v3346 = vpack.c.bf16 %v3342, %v3338
      %3347 = vst [vmem:[#allocation2 + $0x120] sm:$0xff] %v3343
      %3348 = vst [vmem:[#allocation2 + $0x128] sm:$0xff] %v3344
      %3349 = vst [vmem:[#allocation2 + $0x130] sm:$0xff] %v3345
      %3350 = vst [vmem:[#allocation2 + $0x138] sm:$0xff] %v3346
      %3351 = vrot.lane.b32.xlu0 %v2723, 8
      %v3352 = vpop.permute.xlu0 %3351
      %3353 = vrot.lane.b32.xlu0 %v2727, 8
      %v3354 = vpop.permute.xlu0 %3353
      %3355 = vrot.lane.b32.xlu0 %v2724, 8
      %v3356 = vpop.permute.xlu0 %3355
      %3357 = vrot.lane.b32.xlu0 %v2728, 8
      %v3358 = vpop.permute.xlu0 %3357
      %3359 = vrot.lane.b32.xlu0 %v2725, 8
      %v3360 = vpop.permute.xlu0 %3359
      %3361 = vrot.lane.b32.xlu0 %v2729, 8
      %v3362 = vpop.permute.xlu0 %3361
      %3363 = vrot.lane.b32.xlu0 %v2726, 8
      %v3364 = vpop.permute.xlu0 %3363
      %3365 = vrot.lane.b32.xlu0 %v2730, 8
      %v3366 = vpop.permute.xlu0 %3365
      %v3367 = vsel %vm1326, %v3360, %v3364
      %v3368 = vsel %vm1326, %v3362, %v3366
      %v3369 = vsel %vm1326, %v3356, %v3360
      %v3370 = vsel %vm1326, %v3358, %v3362
      %v3371 = vsel %vm1326, %v3352, %v3356
      %v3372 = vsel %vm1326, %v3354, %v3358
      %v3373 = vsel %vm1326, %v3364, %v3352
      %v3374 = vsel %vm1326, %v3366, %v3354
      %v3375 = vld [vmem:[%s1335] ss:$8 sm:$0xf]
      %v3377 = vlaneseq
      %v3378 = vshrl.u32 %v3377, 7
      %v3379 = vsub.s32 0, %v3378
      %v3380 = vrot.slane %v3375, %v3379
      %v3381 = vlaneseq
      %v3382 = vshrl.u32 %v3381, 7
      %v3383 = vsub.s32 1, %v3382
      %v3384 = vrot.slane %v3375, %v3383
      %v3385 = vlaneseq
      %v3386 = vshrl.u32 %v3385, 7
      %v3387 = vsub.s32 2, %v3386
      %v3388 = vrot.slane %v3375, %v3387
      %v3389 = vlaneseq
      %v3390 = vshrl.u32 %v3389, 7
      %v3391 = vsub.s32 3, %v3390
      %v3392 = vrot.slane %v3375, %v3391
      %v3397 = vmul.f32 %v3373, %v3380
      %v3398 = vmul.f32 %v3371, %v3384
      %v3399 = vmul.f32 %v3369, %v3388
      %v3400 = vmul.f32 %v3367, %v3392
      %v3401 = vmul.f32 %v3374, %v3380
      %v3402 = vmul.f32 %v3372, %v3384
      %v3403 = vmul.f32 %v3370, %v3388
      %v3404 = vmul.f32 %v3368, %v3392
      %v3405 = vpack.c.bf16 %v3401, %v3397
      %v3406 = vpack.c.bf16 %v3402, %v3398
      %v3407 = vpack.c.bf16 %v3403, %v3399
      %v3408 = vpack.c.bf16 %v3404, %v3400
      %3409 = vst [vmem:[#allocation2 + $0x140] sm:$0xff] %v3405
      %3410 = vst [vmem:[#allocation2 + $0x148] sm:$0xff] %v3406
      %3411 = vst [vmem:[#allocation2 + $0x150] sm:$0xff] %v3407
      %3412 = vst [vmem:[#allocation2 + $0x158] sm:$0xff] %v3408
      %3413 = vrot.lane.b32.xlu0 %v2723, 7
      %v3414 = vpop.permute.xlu0 %3413
      %3415 = vrot.lane.b32.xlu0 %v2727, 7
      %v3416 = vpop.permute.xlu0 %3415
      %3417 = vrot.lane.b32.xlu0 %v2724, 7
      %v3418 = vpop.permute.xlu0 %3417
      %3419 = vrot.lane.b32.xlu0 %v2728, 7
      %v3420 = vpop.permute.xlu0 %3419
      %3421 = vrot.lane.b32.xlu0 %v2725, 7
      %v3422 = vpop.permute.xlu0 %3421
      %3423 = vrot.lane.b32.xlu0 %v2729, 7
      %v3424 = vpop.permute.xlu0 %3423
      %3425 = vrot.lane.b32.xlu0 %v2726, 7
      %v3426 = vpop.permute.xlu0 %3425
      %3427 = vrot.lane.b32.xlu0 %v2730, 7
      %v3428 = vpop.permute.xlu0 %3427
      %v3429 = vsel %vm1390, %v3422, %v3426
      %v3430 = vsel %vm1390, %v3424, %v3428
      %v3431 = vsel %vm1390, %v3418, %v3422
      %v3432 = vsel %vm1390, %v3420, %v3424
      %v3433 = vsel %vm1390, %v3414, %v3418
      %v3434 = vsel %vm1390, %v3416, %v3420
      %v3435 = vsel %vm1390, %v3426, %v3414
      %v3436 = vsel %vm1390, %v3428, %v3416
      %v3437 = vld [vmem:[%s1399] ss:$8 sm:$0xf]
      %v3439 = vlaneseq
      %v3440 = vshrl.u32 %v3439, 7
      %v3441 = vsub.s32 0, %v3440
      %v3442 = vrot.slane %v3437, %v3441
      %v3443 = vlaneseq
      %v3444 = vshrl.u32 %v3443, 7
      %v3445 = vsub.s32 1, %v3444
      %v3446 = vrot.slane %v3437, %v3445
      %v3447 = vlaneseq
      %v3448 = vshrl.u32 %v3447, 7
      %v3449 = vsub.s32 2, %v3448
      %v3450 = vrot.slane %v3437, %v3449
      %v3451 = vlaneseq
      %v3452 = vshrl.u32 %v3451, 7
      %v3453 = vsub.s32 3, %v3452
      %v3454 = vrot.slane %v3437, %v3453
      %v3459 = vmul.f32 %v3435, %v3442
      %v3460 = vmul.f32 %v3433, %v3446
      %v3461 = vmul.f32 %v3431, %v3450
      %v3462 = vmul.f32 %v3429, %v3454
      %v3463 = vmul.f32 %v3436, %v3442
      %v3464 = vmul.f32 %v3434, %v3446
      %v3465 = vmul.f32 %v3432, %v3450
      %v3466 = vmul.f32 %v3430, %v3454
      %v3467 = vpack.c.bf16 %v3463, %v3459
      %v3468 = vpack.c.bf16 %v3464, %v3460
      %v3469 = vpack.c.bf16 %v3465, %v3461
      %v3470 = vpack.c.bf16 %v3466, %v3462
      %3471 = vst [vmem:[#allocation2 + $0x160] sm:$0xff] %v3467
      %3472 = vst [vmem:[#allocation2 + $0x168] sm:$0xff] %v3468
      %3473 = vst [vmem:[#allocation2 + $0x170] sm:$0xff] %v3469
      %3474 = vst [vmem:[#allocation2 + $0x178] sm:$0xff] %v3470
      %3475 = vrot.lane.b32.xlu0 %v2723, 1
      %v3476 = vpop.permute.xlu0 %3475
      %3477 = vrot.lane.b32.xlu0 %v2727, 1
      %v3478 = vpop.permute.xlu0 %3477
      %3479 = vrot.lane.b32.xlu0 %v2724, 1
      %v3480 = vpop.permute.xlu0 %3479
      %3481 = vrot.lane.b32.xlu0 %v2728, 1
      %v3482 = vpop.permute.xlu0 %3481
      %3483 = vrot.lane.b32.xlu0 %v2725, 1
      %v3484 = vpop.permute.xlu0 %3483
      %3485 = vrot.lane.b32.xlu0 %v2729, 1
      %v3486 = vpop.permute.xlu0 %3485
      %3487 = vrot.lane.b32.xlu0 %v2726, 1
      %v3488 = vpop.permute.xlu0 %3487
      %3489 = vrot.lane.b32.xlu0 %v2730, 1
      %v3490 = vpop.permute.xlu0 %3489
      %v3491 = vsel %vm1454, %v3484, %v3488
      %v3492 = vsel %vm1454, %v3486, %v3490
      %v3493 = vsel %vm1454, %v3480, %v3484
      %v3494 = vsel %vm1454, %v3482, %v3486
      %v3495 = vsel %vm1454, %v3476, %v3480
      %v3496 = vsel %vm1454, %v3478, %v3482
      %v3497 = vsel %vm1454, %v3488, %v3476
      %v3498 = vsel %vm1454, %v3490, %v3478
      %v3499 = vld [vmem:[%s1463] ss:$8 sm:$0xf]
      %v3501 = vlaneseq
      %v3502 = vshrl.u32 %v3501, 7
      %v3503 = vsub.s32 0, %v3502
      %v3504 = vrot.slane %v3499, %v3503
      %v3505 = vlaneseq
      %v3506 = vshrl.u32 %v3505, 7
      %v3507 = vsub.s32 1, %v3506
      %v3508 = vrot.slane %v3499, %v3507
      %v3509 = vlaneseq
      %v3510 = vshrl.u32 %v3509, 7
      %v3511 = vsub.s32 2, %v3510
      %v3512 = vrot.slane %v3499, %v3511
      %v3513 = vlaneseq
      %v3514 = vshrl.u32 %v3513, 7
      %v3515 = vsub.s32 3, %v3514
      %v3516 = vrot.slane %v3499, %v3515
      %v3521 = vmul.f32 %v3497, %v3504
      %v3522 = vmul.f32 %v3495, %v3508
      %v3523 = vmul.f32 %v3493, %v3512
      %v3524 = vmul.f32 %v3491, %v3516
      %v3525 = vmul.f32 %v3498, %v3504
      %v3526 = vmul.f32 %v3496, %v3508
      %v3527 = vmul.f32 %v3494, %v3512
      %v3528 = vmul.f32 %v3492, %v3516
      %v3529 = vpack.c.bf16 %v3525, %v3521
      %v3530 = vpack.c.bf16 %v3526, %v3522
      %v3531 = vpack.c.bf16 %v3527, %v3523
      %v3532 = vpack.c.bf16 %v3528, %v3524
      %3533 = vst [vmem:[#allocation2 + $0x180] sm:$0xff] %v3529
      %3534 = vst [vmem:[#allocation2 + $0x188] sm:$0xff] %v3530
      %3535 = vst [vmem:[#allocation2 + $0x190] sm:$0xff] %v3531
      %3536 = vst [vmem:[#allocation2 + $0x198] sm:$0xff] %v3532
      %v3537 = vld [vmem:[%s1502] ss:$8 sm:$0xf]
      %v3539 = vlaneseq
      %v3540 = vshrl.u32 %v3539, 7
      %v3541 = vsub.s32 0, %v3540
      %v3542 = vrot.slane %v3537, %v3541
      %v3543 = vlaneseq
      %v3544 = vshrl.u32 %v3543, 7
      %v3545 = vsub.s32 1, %v3544
      %v3546 = vrot.slane %v3537, %v3545
      %v3547 = vlaneseq
      %v3548 = vshrl.u32 %v3547, 7
      %v3549 = vsub.s32 2, %v3548
      %v3550 = vrot.slane %v3537, %v3549
      %v3551 = vlaneseq
      %v3552 = vshrl.u32 %v3551, 7
      %v3553 = vsub.s32 3, %v3552
      %v3554 = vrot.slane %v3537, %v3553
      %v3559 = vmul.f32 %v2723, %v3542
      %v3560 = vmul.f32 %v2724, %v3546
      %v3561 = vmul.f32 %v2725, %v3550
      %v3562 = vmul.f32 %v2726, %v3554
      %v3563 = vmul.f32 %v2727, %v3542
      %v3564 = vmul.f32 %v2728, %v3546
      %v3565 = vmul.f32 %v2729, %v3550
      %v3566 = vmul.f32 %v2730, %v3554
      %v3567 = vpack.c.bf16 %v3563, %v3559
      %v3568 = vpack.c.bf16 %v3564, %v3560
      %v3569 = vpack.c.bf16 %v3565, %v3561
      %v3570 = vpack.c.bf16 %v3566, %v3562
      %3571 = vst [vmem:[#allocation2 + $0x1a0] sm:$0xff] %v3567
      %3572 = vst [vmem:[#allocation2 + $0x1a8] sm:$0xff] %v3568
      %3573 = vst [vmem:[#allocation2 + $0x1b0] sm:$0xff] %v3569
      %3574 = vst [vmem:[#allocation2 + $0x1b8] sm:$0xff] %v3570
      %3575 = vrot.lane.b32.xlu0 %v2723, 127
      %v3576 = vpop.permute.xlu0 %3575
      %3577 = vrot.lane.b32.xlu0 %v2727, 127
      %v3578 = vpop.permute.xlu0 %3577
      %3579 = vrot.lane.b32.xlu0 %v2724, 127
      %v3580 = vpop.permute.xlu0 %3579
      %3581 = vrot.lane.b32.xlu0 %v2728, 127
      %v3582 = vpop.permute.xlu0 %3581
      %3583 = vrot.lane.b32.xlu0 %v2725, 127
      %v3584 = vpop.permute.xlu0 %3583
      %3585 = vrot.lane.b32.xlu0 %v2729, 127
      %v3586 = vpop.permute.xlu0 %3585
      %3587 = vrot.lane.b32.xlu0 %v2726, 127
      %v3588 = vpop.permute.xlu0 %3587
      %3589 = vrot.lane.b32.xlu0 %v2730, 127
      %v3590 = vpop.permute.xlu0 %3589
      %v3591 = vsel %vm1557, %v3584, %v3588
      %v3592 = vsel %vm1557, %v3586, %v3590
      %v3593 = vsel %vm1557, %v3580, %v3584
      %v3594 = vsel %vm1557, %v3582, %v3586
      %v3595 = vsel %vm1557, %v3576, %v3580
      %v3596 = vsel %vm1557, %v3578, %v3582
      %v3597 = vsel %vm1557, %v3588, %v3576
      %v3598 = vsel %vm1557, %v3590, %v3578
      %v3599 = vld [vmem:[%s1566] ss:$8 sm:$0xf]
      %v3601 = vlaneseq
      %v3602 = vshrl.u32 %v3601, 7
      %v3603 = vsub.s32 0, %v3602
      %v3604 = vrot.slane %v3599, %v3603
      %v3605 = vlaneseq
      %v3606 = vshrl.u32 %v3605, 7
      %v3607 = vsub.s32 1, %v3606
      %v3608 = vrot.slane %v3599, %v3607
      %v3609 = vlaneseq
      %v3610 = vshrl.u32 %v3609, 7
      %v3611 = vsub.s32 2, %v3610
      %v3612 = vrot.slane %v3599, %v3611
      %v3613 = vlaneseq
      %v3614 = vshrl.u32 %v3613, 7
      %v3615 = vsub.s32 3, %v3614
      %v3616 = vrot.slane %v3599, %v3615
      %v3621 = vmul.f32 %v3595, %v3604
      %v3622 = vmul.f32 %v3593, %v3608
      %v3623 = vmul.f32 %v3591, %v3612
      %v3624 = vmul.f32 %v3597, %v3616
      %v3625 = vmul.f32 %v3596, %v3604
      %v3626 = vmul.f32 %v3594, %v3608
      %v3627 = vmul.f32 %v3592, %v3612
      %v3628 = vmul.f32 %v3598, %v3616
      %v3629 = vpack.c.bf16 %v3625, %v3621
      %v3630 = vpack.c.bf16 %v3626, %v3622
      %v3631 = vpack.c.bf16 %v3627, %v3623
      %v3632 = vpack.c.bf16 %v3628, %v3624
      %3633 = vst [vmem:[#allocation2 + $0x1c0] sm:$0xff] %v3629
      %3634 = vst [vmem:[#allocation2 + $0x1c8] sm:$0xff] %v3630
      %3635 = vst [vmem:[#allocation2 + $0x1d0] sm:$0xff] %v3631
      %3636 = vst [vmem:[#allocation2 + $0x1d8] sm:$0xff] %v3632
      %3637 = vrot.lane.b32.xlu0 %v2723, 121
      %v3638 = vpop.permute.xlu0 %3637
      %3639 = vrot.lane.b32.xlu0 %v2727, 121
      %v3640 = vpop.permute.xlu0 %3639
      %3641 = vrot.lane.b32.xlu0 %v2724, 121
      %v3642 = vpop.permute.xlu0 %3641
      %3643 = vrot.lane.b32.xlu0 %v2728, 121
      %v3644 = vpop.permute.xlu0 %3643
      %3645 = vrot.lane.b32.xlu0 %v2725, 121
      %v3646 = vpop.permute.xlu0 %3645
      %3647 = vrot.lane.b32.xlu0 %v2729, 121
      %v3648 = vpop.permute.xlu0 %3647
      %3649 = vrot.lane.b32.xlu0 %v2726, 121
      %v3650 = vpop.permute.xlu0 %3649
      %3651 = vrot.lane.b32.xlu0 %v2730, 121
      %v3652 = vpop.permute.xlu0 %3651
      %v3653 = vsel %vm1621, %v3646, %v3650
      %v3654 = vsel %vm1621, %v3648, %v3652
      %v3655 = vsel %vm1621, %v3642, %v3646
      %v3656 = vsel %vm1621, %v3644, %v3648
      %v3657 = vsel %vm1621, %v3638, %v3642
      %v3658 = vsel %vm1621, %v3640, %v3644
      %v3659 = vsel %vm1621, %v3650, %v3638
      %v3660 = vsel %vm1621, %v3652, %v3640
      %v3661 = vld [vmem:[%s1630] ss:$8 sm:$0xf]
      %v3663 = vlaneseq
      %v3664 = vshrl.u32 %v3663, 7
      %v3665 = vsub.s32 0, %v3664
      %v3666 = vrot.slane %v3661, %v3665
      %v3667 = vlaneseq
      %v3668 = vshrl.u32 %v3667, 7
      %v3669 = vsub.s32 1, %v3668
      %v3670 = vrot.slane %v3661, %v3669
      %v3671 = vlaneseq
      %v3672 = vshrl.u32 %v3671, 7
      %v3673 = vsub.s32 2, %v3672
      %v3674 = vrot.slane %v3661, %v3673
      %v3675 = vlaneseq
      %v3676 = vshrl.u32 %v3675, 7
      %v3677 = vsub.s32 3, %v3676
      %v3678 = vrot.slane %v3661, %v3677
      %v3683 = vmul.f32 %v3657, %v3666
      %v3684 = vmul.f32 %v3655, %v3670
      %v3685 = vmul.f32 %v3653, %v3674
      %v3686 = vmul.f32 %v3659, %v3678
      %v3687 = vmul.f32 %v3658, %v3666
      %v3688 = vmul.f32 %v3656, %v3670
      %v3689 = vmul.f32 %v3654, %v3674
      %v3690 = vmul.f32 %v3660, %v3678
      %v3691 = vpack.c.bf16 %v3687, %v3683
      %v3692 = vpack.c.bf16 %v3688, %v3684
      %v3693 = vpack.c.bf16 %v3689, %v3685
      %v3694 = vpack.c.bf16 %v3690, %v3686
      %3695 = vst [vmem:[#allocation2 + $0x1e0] sm:$0xff] %v3691
      %3696 = vst [vmem:[#allocation2 + $0x1e8] sm:$0xff] %v3692
      %3697 = vst [vmem:[#allocation2 + $0x1f0] sm:$0xff] %v3693
      %3698 = vst [vmem:[#allocation2 + $0x1f8] sm:$0xff] %v3694
      %3699 = vrot.lane.b32.xlu0 %v2723, 120
      %v3700 = vpop.permute.xlu0 %3699
      %3701 = vrot.lane.b32.xlu0 %v2727, 120
      %v3702 = vpop.permute.xlu0 %3701
      %3703 = vrot.lane.b32.xlu0 %v2724, 120
      %v3704 = vpop.permute.xlu0 %3703
      %3705 = vrot.lane.b32.xlu0 %v2728, 120
      %v3706 = vpop.permute.xlu0 %3705
      %3707 = vrot.lane.b32.xlu0 %v2725, 120
      %v3708 = vpop.permute.xlu0 %3707
      %3709 = vrot.lane.b32.xlu0 %v2729, 120
      %v3710 = vpop.permute.xlu0 %3709
      %3711 = vrot.lane.b32.xlu0 %v2726, 120
      %v3712 = vpop.permute.xlu0 %3711
      %3713 = vrot.lane.b32.xlu0 %v2730, 120
      %v3714 = vpop.permute.xlu0 %3713
      %v3715 = vsel %vm1685, %v3708, %v3712
      %v3716 = vsel %vm1685, %v3710, %v3714
      %v3717 = vsel %vm1685, %v3704, %v3708
      %v3718 = vsel %vm1685, %v3706, %v3710
      %v3719 = vsel %vm1685, %v3700, %v3704
      %v3720 = vsel %vm1685, %v3702, %v3706
      %v3721 = vsel %vm1685, %v3712, %v3700
      %v3722 = vsel %vm1685, %v3714, %v3702
      %v3723 = vld [vmem:[%s1694] ss:$8 sm:$0xf]
      %v3725 = vlaneseq
      %v3726 = vshrl.u32 %v3725, 7
      %v3727 = vsub.s32 0, %v3726
      %v3728 = vrot.slane %v3723, %v3727
      %v3729 = vlaneseq
      %v3730 = vshrl.u32 %v3729, 7
      %v3731 = vsub.s32 1, %v3730
      %v3732 = vrot.slane %v3723, %v3731
      %v3733 = vlaneseq
      %v3734 = vshrl.u32 %v3733, 7
      %v3735 = vsub.s32 2, %v3734
      %v3736 = vrot.slane %v3723, %v3735
      %v3737 = vlaneseq
      %v3738 = vshrl.u32 %v3737, 7
      %v3739 = vsub.s32 3, %v3738
      %v3740 = vrot.slane %v3723, %v3739
      %v3745 = vmul.f32 %v3719, %v3728
      %v3746 = vmul.f32 %v3717, %v3732
      %v3747 = vmul.f32 %v3715, %v3736
      %v3748 = vmul.f32 %v3721, %v3740
      %v3749 = vmul.f32 %v3720, %v3728
      %v3750 = vmul.f32 %v3718, %v3732
      %v3751 = vmul.f32 %v3716, %v3736
      %v3752 = vmul.f32 %v3722, %v3740
      %v3753 = vpack.c.bf16 %v3749, %v3745
      %v3754 = vpack.c.bf16 %v3750, %v3746
      %v3755 = vpack.c.bf16 %v3751, %v3747
      %v3756 = vpack.c.bf16 %v3752, %v3748
      %3757 = vst [vmem:[#allocation2 + $0x200] sm:$0xff] %v3753
      %3758 = vst [vmem:[#allocation2 + $0x208] sm:$0xff] %v3754
      %3759 = vst [vmem:[#allocation2 + $0x210] sm:$0xff] %v3755
      %3760 = vst [vmem:[#allocation2 + $0x218] sm:$0xff] %v3756
      %3761 = vrot.lane.b32.xlu0 %v2723, 119
      %v3762 = vpop.permute.xlu0 %3761
      %3763 = vrot.lane.b32.xlu0 %v2727, 119
      %v3764 = vpop.permute.xlu0 %3763
      %3765 = vrot.lane.b32.xlu0 %v2724, 119
      %v3766 = vpop.permute.xlu0 %3765
      %3767 = vrot.lane.b32.xlu0 %v2728, 119
      %v3768 = vpop.permute.xlu0 %3767
      %3769 = vrot.lane.b32.xlu0 %v2725, 119
      %v3770 = vpop.permute.xlu0 %3769
      %3771 = vrot.lane.b32.xlu0 %v2729, 119
      %v3772 = vpop.permute.xlu0 %3771
      %3773 = vrot.lane.b32.xlu0 %v2726, 119
      %v3774 = vpop.permute.xlu0 %3773
      %3775 = vrot.lane.b32.xlu0 %v2730, 119
      %v3776 = vpop.permute.xlu0 %3775
      %v3777 = vsel %vm1749, %v3770, %v3774
      %v3778 = vsel %vm1749, %v3772, %v3776
      %v3779 = vsel %vm1749, %v3766, %v3770
      %v3780 = vsel %vm1749, %v3768, %v3772
      %v3781 = vsel %vm1749, %v3762, %v3766
      %v3782 = vsel %vm1749, %v3764, %v3768
      %v3783 = vsel %vm1749, %v3774, %v3762
      %v3784 = vsel %vm1749, %v3776, %v3764
      %v3785 = vld [vmem:[%s1758] ss:$8 sm:$0xf]
      %v3787 = vlaneseq
      %v3788 = vshrl.u32 %v3787, 7
      %v3789 = vsub.s32 0, %v3788
      %v3790 = vrot.slane %v3785, %v3789
      %v3791 = vlaneseq
      %v3792 = vshrl.u32 %v3791, 7
      %v3793 = vsub.s32 1, %v3792
      %v3794 = vrot.slane %v3785, %v3793
      %v3795 = vlaneseq
      %v3796 = vshrl.u32 %v3795, 7
      %v3797 = vsub.s32 2, %v3796
      %v3798 = vrot.slane %v3785, %v3797
      %v3799 = vlaneseq
      %v3800 = vshrl.u32 %v3799, 7
      %v3801 = vsub.s32 3, %v3800
      %v3802 = vrot.slane %v3785, %v3801
      %v3807 = vmul.f32 %v3781, %v3790
      %v3808 = vmul.f32 %v3779, %v3794
      %v3809 = vmul.f32 %v3777, %v3798
      %v3810 = vmul.f32 %v3783, %v3802
      %v3811 = vmul.f32 %v3782, %v3790
      %v3812 = vmul.f32 %v3780, %v3794
      %v3813 = vmul.f32 %v3778, %v3798
      %v3814 = vmul.f32 %v3784, %v3802
      %v3815 = vpack.c.bf16 %v3811, %v3807
      %v3816 = vpack.c.bf16 %v3812, %v3808
      %v3817 = vpack.c.bf16 %v3813, %v3809
      %v3818 = vpack.c.bf16 %v3814, %v3810
      %3819 = vst [vmem:[#allocation2 + $0x220] sm:$0xff] %v3815
      %3820 = vst [vmem:[#allocation2 + $0x228] sm:$0xff] %v3816
      %3821 = vst [vmem:[#allocation2 + $0x230] sm:$0xff] %v3817
      %3822 = vst [vmem:[#allocation2 + $0x238] sm:$0xff] %v3818
      %v3823 = vld [vmem:[%s1797] ss:$8 sm:$0xf]
      %v3825 = vlaneseq
      %v3826 = vshrl.u32 %v3825, 7
      %v3827 = vsub.s32 0, %v3826
      %v3828 = vrot.slane %v3823, %v3827
      %v3829 = vlaneseq
      %v3830 = vshrl.u32 %v3829, 7
      %v3831 = vsub.s32 1, %v3830
      %v3832 = vrot.slane %v3823, %v3831
      %v3833 = vlaneseq
      %v3834 = vshrl.u32 %v3833, 7
      %v3835 = vsub.s32 2, %v3834
      %v3836 = vrot.slane %v3823, %v3835
      %v3837 = vlaneseq
      %v3838 = vshrl.u32 %v3837, 7
      %v3839 = vsub.s32 3, %v3838
      %v3840 = vrot.slane %v3823, %v3839
      %v3845 = vmul.f32 %v2751, %v3828
      %v3846 = vmul.f32 %v2749, %v3832
      %v3847 = vmul.f32 %v2747, %v3836
      %v3848 = vmul.f32 %v2753, %v3840
      %v3849 = vmul.f32 %v2752, %v3828
      %v3850 = vmul.f32 %v2750, %v3832
      %v3851 = vmul.f32 %v2748, %v3836
      %v3852 = vmul.f32 %v2754, %v3840
      %v3853 = vpack.c.bf16 %v3849, %v3845
      %v3854 = vpack.c.bf16 %v3850, %v3846
      %v3855 = vpack.c.bf16 %v3851, %v3847
      %v3856 = vpack.c.bf16 %v3852, %v3848
      %3857 = vst [vmem:[#allocation2 + $0x240] sm:$0xff] %v3853
      %3858 = vst [vmem:[#allocation2 + $0x248] sm:$0xff] %v3854
      %3859 = vst [vmem:[#allocation2 + $0x250] sm:$0xff] %v3855
      %3860 = vst [vmem:[#allocation2 + $0x258] sm:$0xff] %v3856
      %v3861 = vld [vmem:[%s1836] ss:$8 sm:$0xf]
      %v3863 = vlaneseq
      %v3864 = vshrl.u32 %v3863, 7
      %v3865 = vsub.s32 0, %v3864
      %v3866 = vrot.slane %v3861, %v3865
      %v3867 = vlaneseq
      %v3868 = vshrl.u32 %v3867, 7
      %v3869 = vsub.s32 1, %v3868
      %v3870 = vrot.slane %v3861, %v3869
      %v3871 = vlaneseq
      %v3872 = vshrl.u32 %v3871, 7
      %v3873 = vsub.s32 2, %v3872
      %v3874 = vrot.slane %v3861, %v3873
      %v3875 = vlaneseq
      %v3876 = vshrl.u32 %v3875, 7
      %v3877 = vsub.s32 3, %v3876
      %v3878 = vrot.slane %v3861, %v3877
      %v3883 = vmul.f32 %v2813, %v3866
      %v3884 = vmul.f32 %v2811, %v3870
      %v3885 = vmul.f32 %v2809, %v3874
      %v3886 = vmul.f32 %v2815, %v3878
      %v3887 = vmul.f32 %v2814, %v3866
      %v3888 = vmul.f32 %v2812, %v3870
      %v3889 = vmul.f32 %v2810, %v3874
      %v3890 = vmul.f32 %v2816, %v3878
      %v3891 = vpack.c.bf16 %v3887, %v3883
      %v3892 = vpack.c.bf16 %v3888, %v3884
      %v3893 = vpack.c.bf16 %v3889, %v3885
      %v3894 = vpack.c.bf16 %v3890, %v3886
      %3895 = vst [vmem:[#allocation2 + $0x260] sm:$0xff] %v3891
      %3896 = vst [vmem:[#allocation2 + $0x268] sm:$0xff] %v3892
      %3897 = vst [vmem:[#allocation2 + $0x270] sm:$0xff] %v3893
      %3898 = vst [vmem:[#allocation2 + $0x278] sm:$0xff] %v3894
      %v3899 = vld [vmem:[%s1875] ss:$8 sm:$0xf]
      %v3901 = vlaneseq
      %v3902 = vshrl.u32 %v3901, 7
      %v3903 = vsub.s32 0, %v3902
      %v3904 = vrot.slane %v3899, %v3903
      %v3905 = vlaneseq
      %v3906 = vshrl.u32 %v3905, 7
      %v3907 = vsub.s32 1, %v3906
      %v3908 = vrot.slane %v3899, %v3907
      %v3909 = vlaneseq
      %v3910 = vshrl.u32 %v3909, 7
      %v3911 = vsub.s32 2, %v3910
      %v3912 = vrot.slane %v3899, %v3911
      %v3913 = vlaneseq
      %v3914 = vshrl.u32 %v3913, 7
      %v3915 = vsub.s32 3, %v3914
      %v3916 = vrot.slane %v3899, %v3915
      %v3921 = vmul.f32 %v2875, %v3904
      %v3922 = vmul.f32 %v2873, %v3908
      %v3923 = vmul.f32 %v2871, %v3912
      %v3924 = vmul.f32 %v2877, %v3916
      %v3925 = vmul.f32 %v2876, %v3904
      %v3926 = vmul.f32 %v2874, %v3908
      %v3927 = vmul.f32 %v2872, %v3912
      %v3928 = vmul.f32 %v2878, %v3916
      %v3929 = vpack.c.bf16 %v3925, %v3921
      %v3930 = vpack.c.bf16 %v3926, %v3922
      %v3931 = vpack.c.bf16 %v3927, %v3923
      %v3932 = vpack.c.bf16 %v3928, %v3924
      %3933 = vst [vmem:[#allocation2 + $0x280] sm:$0xff] %v3929
      %3934 = vst [vmem:[#allocation2 + $0x288] sm:$0xff] %v3930
      %3935 = vst [vmem:[#allocation2 + $0x290] sm:$0xff] %v3931
      %3936 = vst [vmem:[#allocation2 + $0x298] sm:$0xff] %v3932
      %v3937 = vld [vmem:[%s1914] ss:$8 sm:$0xf]
      %v3939 = vlaneseq
      %v3940 = vshrl.u32 %v3939, 7
      %v3941 = vsub.s32 0, %v3940
      %v3942 = vrot.slane %v3937, %v3941
      %v3943 = vlaneseq
      %v3944 = vshrl.u32 %v3943, 7
      %v3945 = vsub.s32 1, %v3944
      %v3946 = vrot.slane %v3937, %v3945
      %v3947 = vlaneseq
      %v3948 = vshrl.u32 %v3947, 7
      %v3949 = vsub.s32 2, %v3948
      %v3950 = vrot.slane %v3937, %v3949
      %v3951 = vlaneseq
      %v3952 = vshrl.u32 %v3951, 7
      %v3953 = vsub.s32 3, %v3952
      %v3954 = vrot.slane %v3937, %v3953
      %v3959 = vmul.f32 %v2937, %v3942
      %v3960 = vmul.f32 %v2935, %v3946
      %v3961 = vmul.f32 %v2933, %v3950
      %v3962 = vmul.f32 %v2939, %v3954
      %v3963 = vmul.f32 %v2938, %v3942
      %v3964 = vmul.f32 %v2936, %v3946
      %v3965 = vmul.f32 %v2934, %v3950
      %v3966 = vmul.f32 %v2940, %v3954
      %v3967 = vpack.c.bf16 %v3963, %v3959
      %v3968 = vpack.c.bf16 %v3964, %v3960
      %v3969 = vpack.c.bf16 %v3965, %v3961
      %v3970 = vpack.c.bf16 %v3966, %v3962
      %3971 = vst [vmem:[#allocation2 + $0x2a0] sm:$0xff] %v3967
      %3972 = vst [vmem:[#allocation2 + $0x2a8] sm:$0xff] %v3968
      %3973 = vst [vmem:[#allocation2 + $0x2b0] sm:$0xff] %v3969
      %3974 = vst [vmem:[#allocation2 + $0x2b8] sm:$0xff] %v3970
      %v3975 = vld [vmem:[%s1953] ss:$8 sm:$0xf]
      %v3977 = vlaneseq
      %v3978 = vshrl.u32 %v3977, 7
      %v3979 = vsub.s32 0, %v3978
      %v3980 = vrot.slane %v3975, %v3979
      %v3981 = vlaneseq
      %v3982 = vshrl.u32 %v3981, 7
      %v3983 = vsub.s32 1, %v3982
      %v3984 = vrot.slane %v3975, %v3983
      %v3985 = vlaneseq
      %v3986 = vshrl.u32 %v3985, 7
      %v3987 = vsub.s32 2, %v3986
      %v3988 = vrot.slane %v3975, %v3987
      %v3989 = vlaneseq
      %v3990 = vshrl.u32 %v3989, 7
      %v3991 = vsub.s32 3, %v3990
      %v3992 = vrot.slane %v3975, %v3991
      %v3997 = vmul.f32 %v2999, %v3980
      %v3998 = vmul.f32 %v2997, %v3984
      %v3999 = vmul.f32 %v2995, %v3988
      %v4000 = vmul.f32 %v3001, %v3992
      %v4001 = vmul.f32 %v3000, %v3980
      %v4002 = vmul.f32 %v2998, %v3984
      %v4003 = vmul.f32 %v2996, %v3988
      %v4004 = vmul.f32 %v3002, %v3992
      %v4005 = vpack.c.bf16 %v4001, %v3997
      %v4006 = vpack.c.bf16 %v4002, %v3998
      %v4007 = vpack.c.bf16 %v4003, %v3999
      %v4008 = vpack.c.bf16 %v4004, %v4000
      %4009 = vst [vmem:[#allocation2 + $0x2c0] sm:$0xff] %v4005
      %4010 = vst [vmem:[#allocation2 + $0x2c8] sm:$0xff] %v4006
      %4011 = vst [vmem:[#allocation2 + $0x2d0] sm:$0xff] %v4007
      %4012 = vst [vmem:[#allocation2 + $0x2d8] sm:$0xff] %v4008
      %v4013 = vld [vmem:[%s1992] ss:$8 sm:$0xf]
      %v4015 = vlaneseq
      %v4016 = vshrl.u32 %v4015, 7
      %v4017 = vsub.s32 0, %v4016
      %v4018 = vrot.slane %v4013, %v4017
      %v4019 = vlaneseq
      %v4020 = vshrl.u32 %v4019, 7
      %v4021 = vsub.s32 1, %v4020
      %v4022 = vrot.slane %v4013, %v4021
      %v4023 = vlaneseq
      %v4024 = vshrl.u32 %v4023, 7
      %v4025 = vsub.s32 2, %v4024
      %v4026 = vrot.slane %v4013, %v4025
      %v4027 = vlaneseq
      %v4028 = vshrl.u32 %v4027, 7
      %v4029 = vsub.s32 3, %v4028
      %v4030 = vrot.slane %v4013, %v4029
      %v4035 = vmul.f32 %v3061, %v4018
      %v4036 = vmul.f32 %v3059, %v4022
      %v4037 = vmul.f32 %v3057, %v4026
      %v4038 = vmul.f32 %v3063, %v4030
      %v4039 = vmul.f32 %v3062, %v4018
      %v4040 = vmul.f32 %v3060, %v4022
      %v4041 = vmul.f32 %v3058, %v4026
      %v4042 = vmul.f32 %v3064, %v4030
      %v4043 = vpack.c.bf16 %v4039, %v4035
      %v4044 = vpack.c.bf16 %v4040, %v4036
      %v4045 = vpack.c.bf16 %v4041, %v4037
      %v4046 = vpack.c.bf16 %v4042, %v4038
      %4047 = vst [vmem:[#allocation2 + $0x2e0] sm:$0xff] %v4043
      %4048 = vst [vmem:[#allocation2 + $0x2e8] sm:$0xff] %v4044
      %4049 = vst [vmem:[#allocation2 + $0x2f0] sm:$0xff] %v4045
      %4050 = vst [vmem:[#allocation2 + $0x2f8] sm:$0xff] %v4046
      %v4051 = vld [vmem:[%s2031] ss:$8 sm:$0xf]
      %v4053 = vlaneseq
      %v4054 = vshrl.u32 %v4053, 7
      %v4055 = vsub.s32 0, %v4054
      %v4056 = vrot.slane %v4051, %v4055
      %v4057 = vlaneseq
      %v4058 = vshrl.u32 %v4057, 7
      %v4059 = vsub.s32 1, %v4058
      %v4060 = vrot.slane %v4051, %v4059
      %v4061 = vlaneseq
      %v4062 = vshrl.u32 %v4061, 7
      %v4063 = vsub.s32 2, %v4062
      %v4064 = vrot.slane %v4051, %v4063
      %v4065 = vlaneseq
      %v4066 = vshrl.u32 %v4065, 7
      %v4067 = vsub.s32 3, %v4066
      %v4068 = vrot.slane %v4051, %v4067
      %v4073 = vmul.f32 %v3123, %v4056
      %v4074 = vmul.f32 %v3121, %v4060
      %v4075 = vmul.f32 %v3119, %v4064
      %v4076 = vmul.f32 %v3125, %v4068
      %v4077 = vmul.f32 %v3124, %v4056
      %v4078 = vmul.f32 %v3122, %v4060
      %v4079 = vmul.f32 %v3120, %v4064
      %v4080 = vmul.f32 %v3126, %v4068
      %v4081 = vpack.c.bf16 %v4077, %v4073
      %v4082 = vpack.c.bf16 %v4078, %v4074
      %v4083 = vpack.c.bf16 %v4079, %v4075
      %v4084 = vpack.c.bf16 %v4080, %v4076
      %4085 = vst [vmem:[#allocation2 + $0x300] sm:$0xff] %v4081
      %4086 = vst [vmem:[#allocation2 + $0x308] sm:$0xff] %v4082
      %4087 = vst [vmem:[#allocation2 + $0x310] sm:$0xff] %v4083
      %4088 = vst [vmem:[#allocation2 + $0x318] sm:$0xff] %v4084
      %v4089 = vld [vmem:[%s2070] ss:$8 sm:$0xf]
      %v4091 = vlaneseq
      %v4092 = vshrl.u32 %v4091, 7
      %v4093 = vsub.s32 0, %v4092
      %v4094 = vrot.slane %v4089, %v4093
      %v4095 = vlaneseq
      %v4096 = vshrl.u32 %v4095, 7
      %v4097 = vsub.s32 1, %v4096
      %v4098 = vrot.slane %v4089, %v4097
      %v4099 = vlaneseq
      %v4100 = vshrl.u32 %v4099, 7
      %v4101 = vsub.s32 2, %v4100
      %v4102 = vrot.slane %v4089, %v4101
      %v4103 = vlaneseq
      %v4104 = vshrl.u32 %v4103, 7
      %v4105 = vsub.s32 3, %v4104
      %v4106 = vrot.slane %v4089, %v4105
      %v4111 = vmul.f32 %v3185, %v4094
      %v4112 = vmul.f32 %v3183, %v4098
      %v4113 = vmul.f32 %v3181, %v4102
      %v4114 = vmul.f32 %v3187, %v4106
      %v4115 = vmul.f32 %v3186, %v4094
      %v4116 = vmul.f32 %v3184, %v4098
      %v4117 = vmul.f32 %v3182, %v4102
      %v4118 = vmul.f32 %v3188, %v4106
      %v4119 = vpack.c.bf16 %v4115, %v4111
      %v4120 = vpack.c.bf16 %v4116, %v4112
      %v4121 = vpack.c.bf16 %v4117, %v4113
      %v4122 = vpack.c.bf16 %v4118, %v4114
      %4123 = vst [vmem:[#allocation2 + $0x320] sm:$0xff] %v4119
      %4124 = vst [vmem:[#allocation2 + $0x328] sm:$0xff] %v4120
      %4125 = vst [vmem:[#allocation2 + $0x330] sm:$0xff] %v4121
      %4126 = vst [vmem:[#allocation2 + $0x338] sm:$0xff] %v4122
      %v4127 = vld [vmem:[%s2109] ss:$8 sm:$0xf]
      %v4129 = vlaneseq
      %v4130 = vshrl.u32 %v4129, 7
      %v4131 = vsub.s32 0, %v4130
      %v4132 = vrot.slane %v4127, %v4131
      %v4133 = vlaneseq
      %v4134 = vshrl.u32 %v4133, 7
      %v4135 = vsub.s32 1, %v4134
      %v4136 = vrot.slane %v4127, %v4135
      %v4137 = vlaneseq
      %v4138 = vshrl.u32 %v4137, 7
      %v4139 = vsub.s32 2, %v4138
      %v4140 = vrot.slane %v4127, %v4139
      %v4141 = vlaneseq
      %v4142 = vshrl.u32 %v4141, 7
      %v4143 = vsub.s32 3, %v4142
      %v4144 = vrot.slane %v4127, %v4143
      %v4149 = vmul.f32 %v3247, %v4132
      %v4150 = vmul.f32 %v3245, %v4136
      %v4151 = vmul.f32 %v3243, %v4140
      %v4152 = vmul.f32 %v3249, %v4144
      %v4153 = vmul.f32 %v3248, %v4132
      %v4154 = vmul.f32 %v3246, %v4136
      %v4155 = vmul.f32 %v3244, %v4140
      %v4156 = vmul.f32 %v3250, %v4144
      %v4157 = vpack.c.bf16 %v4153, %v4149
      %v4158 = vpack.c.bf16 %v4154, %v4150
      %v4159 = vpack.c.bf16 %v4155, %v4151
      %v4160 = vpack.c.bf16 %v4156, %v4152
      %4161 = vst [vmem:[#allocation2 + $0x340] sm:$0xff] %v4157
      %4162 = vst [vmem:[#allocation2 + $0x348] sm:$0xff] %v4158
      %4163 = vst [vmem:[#allocation2 + $0x350] sm:$0xff] %v4159
      %4164 = vst [vmem:[#allocation2 + $0x358] sm:$0xff] %v4160
      %v4165 = vld [vmem:[%s7] sm:$0xff]
      %v4166 = vld [vmem:[%s7 + $0x8] sm:$0xff]
      %v4167 = vld [vmem:[%s7 + $0x10] sm:$0xff]
      %v4168 = vld [vmem:[%s7 + $0x18] sm:$0xff]
      %v4169 = vld [vmem:[#allocation2] sm:$0xff]
      %v4170 = vld [vmem:[#allocation2 + $0x8] sm:$0xff]
      %v4171 = vld [vmem:[#allocation2 + $0x10] sm:$0xff]
      %v4172 = vld [vmem:[#allocation2 + $0x18] sm:$0xff]
      %v4173 = vld [vmem:[#allocation2 + $0x20] sm:$0xff]
      %v4174 = vld [vmem:[#allocation2 + $0x28] sm:$0xff]
      %v4175 = vld [vmem:[#allocation2 + $0x30] sm:$0xff]
      %v4176 = vld [vmem:[#allocation2 + $0x38] sm:$0xff]
      %v4177 = vld [vmem:[#allocation2 + $0x40] sm:$0xff]
      %v4178 = vld [vmem:[#allocation2 + $0x48] sm:$0xff]
      %v4179 = vld [vmem:[#allocation2 + $0x50] sm:$0xff]
      %v4180 = vld [vmem:[#allocation2 + $0x58] sm:$0xff]
      %v4181 = vld [vmem:[#allocation2 + $0x60] sm:$0xff]
      %v4182 = vld [vmem:[#allocation2 + $0x68] sm:$0xff]
      %v4183 = vld [vmem:[#allocation2 + $0x70] sm:$0xff]
      %v4184 = vld [vmem:[#allocation2 + $0x78] sm:$0xff]
      %v4185 = vld [vmem:[#allocation2 + $0x80] sm:$0xff]
      %v4186 = vld [vmem:[#allocation2 + $0x88] sm:$0xff]
      %v4187 = vld [vmem:[#allocation2 + $0x90] sm:$0xff]
      %v4188 = vld [vmem:[#allocation2 + $0x98] sm:$0xff]
      %v4189 = vld [vmem:[#allocation2 + $0xa0] sm:$0xff]
      %v4190 = vld [vmem:[#allocation2 + $0xa8] sm:$0xff]
      %v4191 = vld [vmem:[#allocation2 + $0xb0] sm:$0xff]
      %v4192 = vld [vmem:[#allocation2 + $0xb8] sm:$0xff]
      %v4193 = vld [vmem:[#allocation2 + $0xc0] sm:$0xff]
      %v4194 = vld [vmem:[#allocation2 + $0xc8] sm:$0xff]
      %v4195 = vld [vmem:[#allocation2 + $0xd0] sm:$0xff]
      %v4196 = vld [vmem:[#allocation2 + $0xd8] sm:$0xff]
      %v4197 = vld [vmem:[#allocation2 + $0xe0] sm:$0xff]
      %v4198 = vld [vmem:[#allocation2 + $0xe8] sm:$0xff]
      %v4199 = vld [vmem:[#allocation2 + $0xf0] sm:$0xff]
      %v4200 = vld [vmem:[#allocation2 + $0xf8] sm:$0xff]
      %v4201 = vld [vmem:[#allocation2 + $0x100] sm:$0xff]
      %v4202 = vld [vmem:[#allocation2 + $0x108] sm:$0xff]
      %v4203 = vld [vmem:[#allocation2 + $0x110] sm:$0xff]
      %v4204 = vld [vmem:[#allocation2 + $0x118] sm:$0xff]
      %v4205 = vld [vmem:[#allocation2 + $0x120] sm:$0xff]
      %v4206 = vld [vmem:[#allocation2 + $0x128] sm:$0xff]
      %v4207 = vld [vmem:[#allocation2 + $0x130] sm:$0xff]
      %v4208 = vld [vmem:[#allocation2 + $0x138] sm:$0xff]
      %v4209 = vld [vmem:[#allocation2 + $0x140] sm:$0xff]
      %v4210 = vld [vmem:[#allocation2 + $0x148] sm:$0xff]
      %v4211 = vld [vmem:[#allocation2 + $0x150] sm:$0xff]
      %v4212 = vld [vmem:[#allocation2 + $0x158] sm:$0xff]
      %v4213 = vld [vmem:[#allocation2 + $0x160] sm:$0xff]
      %v4214 = vld [vmem:[#allocation2 + $0x168] sm:$0xff]
      %v4215 = vld [vmem:[#allocation2 + $0x170] sm:$0xff]
      %v4216 = vld [vmem:[#allocation2 + $0x178] sm:$0xff]
      %v4217 = vld [vmem:[#allocation2 + $0x180] sm:$0xff]
      %v4218 = vld [vmem:[#allocation2 + $0x188] sm:$0xff]
      %v4219 = vld [vmem:[#allocation2 + $0x190] sm:$0xff]
      %v4220 = vld [vmem:[#allocation2 + $0x198] sm:$0xff]
      %v4221 = vld [vmem:[#allocation2 + $0x1a0] sm:$0xff]
      %v4222 = vld [vmem:[#allocation2 + $0x1a8] sm:$0xff]
      %v4223 = vld [vmem:[#allocation2 + $0x1b0] sm:$0xff]
      %v4224 = vld [vmem:[#allocation2 + $0x1b8] sm:$0xff]
      %v4225 = vld [vmem:[#allocation2 + $0x1c0] sm:$0xff]
      %v4226 = vld [vmem:[#allocation2 + $0x1c8] sm:$0xff]
      %v4227 = vld [vmem:[#allocation2 + $0x1d0] sm:$0xff]
      %v4228 = vld [vmem:[#allocation2 + $0x1d8] sm:$0xff]
      %v4229 = vld [vmem:[#allocation2 + $0x1e0] sm:$0xff]
      %v4230 = vld [vmem:[#allocation2 + $0x1e8] sm:$0xff]
      %v4231 = vld [vmem:[#allocation2 + $0x1f0] sm:$0xff]
      %v4232 = vld [vmem:[#allocation2 + $0x1f8] sm:$0xff]
      %v4233 = vld [vmem:[#allocation2 + $0x200] sm:$0xff]
      %v4234 = vld [vmem:[#allocation2 + $0x208] sm:$0xff]
      %v4235 = vld [vmem:[#allocation2 + $0x210] sm:$0xff]
      %v4236 = vld [vmem:[#allocation2 + $0x218] sm:$0xff]
      %v4237 = vld [vmem:[#allocation2 + $0x220] sm:$0xff]
      %v4238 = vld [vmem:[#allocation2 + $0x228] sm:$0xff]
      %v4239 = vld [vmem:[#allocation2 + $0x230] sm:$0xff]
      %v4240 = vld [vmem:[#allocation2 + $0x238] sm:$0xff]
      %v4241 = vld [vmem:[#allocation2 + $0x240] sm:$0xff]
      %v4242 = vld [vmem:[#allocation2 + $0x248] sm:$0xff]
      %v4243 = vld [vmem:[#allocation2 + $0x250] sm:$0xff]
      %v4244 = vld [vmem:[#allocation2 + $0x258] sm:$0xff]
      %v4245 = vld [vmem:[#allocation2 + $0x260] sm:$0xff]
      %v4246 = vld [vmem:[#allocation2 + $0x268] sm:$0xff]
      %v4247 = vld [vmem:[#allocation2 + $0x270] sm:$0xff]
      %v4248 = vld [vmem:[#allocation2 + $0x278] sm:$0xff]
      %v4249 = vld [vmem:[#allocation2 + $0x280] sm:$0xff]
      %v4250 = vld [vmem:[#allocation2 + $0x288] sm:$0xff]
      %v4251 = vld [vmem:[#allocation2 + $0x290] sm:$0xff]
      %v4252 = vld [vmem:[#allocation2 + $0x298] sm:$0xff]
      %v4253 = vld [vmem:[#allocation2 + $0x2a0] sm:$0xff]
      %v4254 = vld [vmem:[#allocation2 + $0x2a8] sm:$0xff]
      %v4255 = vld [vmem:[#allocation2 + $0x2b0] sm:$0xff]
      %v4256 = vld [vmem:[#allocation2 + $0x2b8] sm:$0xff]
      %v4257 = vld [vmem:[#allocation2 + $0x2c0] sm:$0xff]
      %v4258 = vld [vmem:[#allocation2 + $0x2c8] sm:$0xff]
      %v4259 = vld [vmem:[#allocation2 + $0x2d0] sm:$0xff]
      %v4260 = vld [vmem:[#allocation2 + $0x2d8] sm:$0xff]
      %v4261 = vld [vmem:[#allocation2 + $0x2e0] sm:$0xff]
      %v4262 = vld [vmem:[#allocation2 + $0x2e8] sm:$0xff]
      %v4263 = vld [vmem:[#allocation2 + $0x2f0] sm:$0xff]
      %v4264 = vld [vmem:[#allocation2 + $0x2f8] sm:$0xff]
      %v4265 = vld [vmem:[#allocation2 + $0x300] sm:$0xff]
      %v4266 = vld [vmem:[#allocation2 + $0x308] sm:$0xff]
      %v4267 = vld [vmem:[#allocation2 + $0x310] sm:$0xff]
      %v4268 = vld [vmem:[#allocation2 + $0x318] sm:$0xff]
      %v4269 = vld [vmem:[#allocation2 + $0x320] sm:$0xff]
      %v4270 = vld [vmem:[#allocation2 + $0x328] sm:$0xff]
      %v4271 = vld [vmem:[#allocation2 + $0x330] sm:$0xff]
      %v4272 = vld [vmem:[#allocation2 + $0x338] sm:$0xff]
      %v4273 = vld [vmem:[#allocation2 + $0x340] sm:$0xff]
      %v4274 = vld [vmem:[#allocation2 + $0x348] sm:$0xff]
      %v4275 = vld [vmem:[#allocation2 + $0x350] sm:$0xff]
      %v4276 = vld [vmem:[#allocation2 + $0x358] sm:$0xff]
      %v4277 = vld [vmem:[%s8] sm:$0xff]
      %v4278 = vld [vmem:[%s8 + $0x8] sm:$0xff]
      %4280 = vset.pattern.permute.xlu0 0
      %4281 = vperm.xlu0 %4280, %v4277
      %v4282 = vpop.permute.xlu0 %4281
      %4285 = vset.pattern.permute.xlu0 0
      %4286 = vperm.xlu0 %4285, %v4278
      %v4287 = vpop.permute.xlu0 %4286
      %v4293 = vunpack.c.l.b16 %v4165
      %v4294 = vunpack.c.h.b16 %v4165
      %v4295 = vunpack.c.l.b16 %v4166
      %v4296 = vunpack.c.h.b16 %v4166
      %v4297 = vunpack.c.l.b16 %v4167
      %v4298 = vunpack.c.h.b16 %v4167
      %v4299 = vunpack.c.l.b16 %v4168
      %v4300 = vunpack.c.h.b16 %v4168
      %v4301 = vpack.c.b16 %v4297, %v4293
      %v4302 = vpack.c.b16 %v4298, %v4294
      %v4303 = vpack.c.b16 %v4299, %v4295
      %v4304 = vpack.c.b16 %v4300, %v4296
      %v4309 = vsel %vm2291, %v4304, 0
      %4311 = vmatprep.subr.bf16.mxu0 %v4170
      %4312 = vmatpush1.bf16.msra.mxu0 %v4169
      %4313 = vmatprep.subr.bf16.mxu0 %v4174
      %4314 = vmatpush1.bf16.msra.mxu0 %v4173
      %4315 = vmatprep.subr.bf16.mxu0 %v4178
      %4316 = vmatpush1.bf16.msra.mxu0 %v4177
      %4317 = vmatprep.subr.bf16.mxu0 %v4182
      %4318 = vmatpush1.bf16.msra.mxu0 %v4181
      %4319 = vmatprep.subr.bf16.mxu0 %v4186
      %4320 = vmatpush1.bf16.msra.mxu0 %v4185
      %4321 = vmatprep.subr.bf16.mxu0 %v4190
      %4322 = vmatpush1.bf16.msra.mxu0 %v4189
      %4323 = vmatprep.subr.bf16.mxu0 %v4194
      %4324 = vmatpush1.bf16.msra.mxu0 %v4193
      %4325 = vmatprep.subr.bf16.mxu0 %v4198
      %4326 = vmatpush1.bf16.msra.mxu0 %v4197
      %4327 = vmatprep.subr.bf16.mxu0 %v4202
      %4328 = vmatpush1.bf16.msra.mxu0 %v4201
      %4329 = vmatprep.subr.bf16.mxu0 %v4206
      %4330 = vmatpush1.bf16.msra.mxu0 %v4205
      %4331 = vmatprep.subr.bf16.mxu0 %v4210
      %4332 = vmatpush1.bf16.msra.mxu0 %v4209
      %4333 = vmatprep.subr.bf16.mxu0 %v4214
      %4334 = vmatpush1.bf16.msra.mxu0 %v4213
      %4335 = vmatprep.subr.bf16.mxu0 %v4218
      %4336 = vmatpush1.bf16.msra.mxu0 %v4217
      %4337 = vmatprep.subr.bf16.mxu0 %v4222
      %4338 = vmatpush1.bf16.msra.mxu0 %v4221
      %4339 = vmatprep.subr.bf16.mxu0 %v4226
      %4340 = vmatpush1.bf16.msra.mxu0 %v4225
      %4341 = vmatprep.subr.bf16.mxu0 %v4230
      %4342 = vmatpush1.bf16.msra.mxu0 %v4229
      %4343 = vmatprep.mubr.bf16.mxu0 %v4302
      %4344 = vmatmul.mubr.bf16.gmra.mrb[0].mxu0 %v4301
      %v4345 = vpop.f32.mrb[0].mxu0
      %v4346 = vadd.f32 %v4282, %v4345
      %v4347 = vpop.f32.mrb[0].mxu0
      %v4348 = vadd.f32 %v4282, %v4347
      %v4349 = vpop.f32.mrb[0].mxu0
      %v4350 = vadd.f32 %v4287, %v4349
      %v4351 = vpop.f32.mrb[0].mxu0
      %v4352 = vadd.f32 %v4287, %v4351
      %4353 = vdwg.mxu0
      %4354 = vmatprep.subr.bf16.mxu0 %v4234
      %4355 = vmatpush1.bf16.msra.mxu0 %v4233
      %4356 = vmatprep.subr.bf16.mxu0 %v4238
      %4357 = vmatpush1.bf16.msra.mxu0 %v4237
      %4358 = vmatprep.subr.bf16.mxu0 %v4242
      %4359 = vmatpush1.bf16.msra.mxu0 %v4241
      %4360 = vmatprep.subr.bf16.mxu0 %v4246
      %4361 = vmatpush1.bf16.msra.mxu0 %v4245
      %4362 = vmatprep.subr.bf16.mxu0 %v4250
      %4363 = vmatpush1.bf16.msra.mxu0 %v4249
      %4364 = vmatprep.subr.bf16.mxu0 %v4254
      %4365 = vmatpush1.bf16.msra.mxu0 %v4253
      %4366 = vmatprep.subr.bf16.mxu0 %v4258
      %4367 = vmatpush1.bf16.msra.mxu0 %v4257
      %4368 = vmatprep.subr.bf16.mxu0 %v4262
      %4369 = vmatpush1.bf16.msra.mxu0 %v4261
      %4370 = vmatprep.subr.bf16.mxu0 %v4266
      %4371 = vmatpush1.bf16.msra.mxu0 %v4265
      %4372 = vmatprep.subr.bf16.mxu0 %v4270
      %4373 = vmatpush1.bf16.msra.mxu0 %v4269
      %4374 = vmatprep.subr.bf16.mxu0 %v4274
      %4375 = vmatpush1.bf16.msra.mxu0 %v4273
      %4376 = vmatprep.subr.bf16.mxu0 0
      %4377 = vmatpush1.bf16.msra.mxu0 0
      %4378 = vmatprep.subr.bf16.mxu0 0
      %4379 = vmatpush1.bf16.msra.mxu0 0
      %4380 = vmatprep.subr.bf16.mxu0 0
      %4381 = vmatpush1.bf16.msra.mxu0 0
      %4382 = vmatprep.subr.bf16.mxu0 0
      %4383 = vmatpush1.bf16.msra.mxu0 0
      %4384 = vmatprep.subr.bf16.mxu0 0
      %4385 = vmatpush1.bf16.msra.mxu0 0
      %4386 = vmatprep.mubr.bf16.mxu0 %v4309
      %4387 = vmatmul.mubr.bf16.gmra.mrb[0].mxu0 %v4303
      %v4388 = vpop.f32.mrb[0].mxu0
      %v4389 = vadd.f32 %v4346, %v4388
      %v4390 = vpop.f32.mrb[0].mxu0
      %v4391 = vadd.f32 %v4348, %v4390
      %v4392 = vpop.f32.mrb[0].mxu0
      %v4393 = vadd.f32 %v4350, %v4392
      %v4394 = vpop.f32.mrb[0].mxu0
      %v4395 = vadd.f32 %v4352, %v4394
      %4396 = vdwg.mxu0
      %4397 = vmatprep.subr.bf16.mxu0 %v4172
      %4398 = vmatpush1.bf16.msra.mxu0 %v4171
      %4399 = vmatprep.subr.bf16.mxu0 %v4176
      %4400 = vmatpush1.bf16.msra.mxu0 %v4175
      %4401 = vmatprep.subr.bf16.mxu0 %v4180
      %4402 = vmatpush1.bf16.msra.mxu0 %v4179
      %4403 = vmatprep.subr.bf16.mxu0 %v4184
      %4404 = vmatpush1.bf16.msra.mxu0 %v4183
      %4405 = vmatprep.subr.bf16.mxu0 %v4188
      %4406 = vmatpush1.bf16.msra.mxu0 %v4187
      %4407 = vmatprep.subr.bf16.mxu0 %v4192
      %4408 = vmatpush1.bf16.msra.mxu0 %v4191
      %4409 = vmatprep.subr.bf16.mxu0 %v4196
      %4410 = vmatpush1.bf16.msra.mxu0 %v4195
      %4411 = vmatprep.subr.bf16.mxu0 %v4200
      %4412 = vmatpush1.bf16.msra.mxu0 %v4199
      %4413 = vmatprep.subr.bf16.mxu0 %v4204
      %4414 = vmatpush1.bf16.msra.mxu0 %v4203
      %4415 = vmatprep.subr.bf16.mxu0 %v4208
      %4416 = vmatpush1.bf16.msra.mxu0 %v4207
      %4417 = vmatprep.subr.bf16.mxu0 %v4212
      %4418 = vmatpush1.bf16.msra.mxu0 %v4211
      %4419 = vmatprep.subr.bf16.mxu0 %v4216
      %4420 = vmatpush1.bf16.msra.mxu0 %v4215
      %4421 = vmatprep.subr.bf16.mxu0 %v4220
      %4422 = vmatpush1.bf16.msra.mxu0 %v4219
      %4423 = vmatprep.subr.bf16.mxu0 %v4224
      %4424 = vmatpush1.bf16.msra.mxu0 %v4223
      %4425 = vmatprep.subr.bf16.mxu0 %v4228
      %4426 = vmatpush1.bf16.msra.mxu0 %v4227
      %4427 = vmatprep.subr.bf16.mxu0 %v4232
      %4428 = vmatpush1.bf16.msra.mxu0 %v4231
      %4429 = vmatprep.mubr.bf16.mxu0 %v4302
      %4430 = vmatmul.mubr.bf16.gmra.mrb[0].mxu0 %v4301
      %v4431 = vpop.f32.mrb[0].mxu0
      %v4432 = vadd.f32 %v4282, %v4431
      %v4433 = vpop.f32.mrb[0].mxu0
      %v4434 = vadd.f32 %v4282, %v4433
      %v4435 = vpop.f32.mrb[0].mxu0
      %v4436 = vadd.f32 %v4287, %v4435
      %v4437 = vpop.f32.mrb[0].mxu0
      %v4438 = vadd.f32 %v4287, %v4437
      %4439 = vdwg.mxu0
      %4440 = vmatprep.subr.bf16.mxu0 %v4236
      %4441 = vmatpush1.bf16.msra.mxu0 %v4235
      %4442 = vmatprep.subr.bf16.mxu0 %v4240
      %4443 = vmatpush1.bf16.msra.mxu0 %v4239
      %4444 = vmatprep.subr.bf16.mxu0 %v4244
      %4445 = vmatpush1.bf16.msra.mxu0 %v4243
      %4446 = vmatprep.subr.bf16.mxu0 %v4248
      %4447 = vmatpush1.bf16.msra.mxu0 %v4247
      %4448 = vmatprep.subr.bf16.mxu0 %v4252
      %4449 = vmatpush1.bf16.msra.mxu0 %v4251
      %4450 = vmatprep.subr.bf16.mxu0 %v4256
      %4451 = vmatpush1.bf16.msra.mxu0 %v4255
      %4452 = vmatprep.subr.bf16.mxu0 %v4260
      %4453 = vmatpush1.bf16.msra.mxu0 %v4259
      %4454 = vmatprep.subr.bf16.mxu0 %v4264
      %4455 = vmatpush1.bf16.msra.mxu0 %v4263
      %4456 = vmatprep.subr.bf16.mxu0 %v4268
      %4457 = vmatpush1.bf16.msra.mxu0 %v4267
      %4458 = vmatprep.subr.bf16.mxu0 %v4272
      %4459 = vmatpush1.bf16.msra.mxu0 %v4271
      %4460 = vmatprep.subr.bf16.mxu0 %v4276
      %4461 = vmatpush1.bf16.msra.mxu0 %v4275
      %4462 = vmatprep.subr.bf16.mxu0 0
      %4463 = vmatpush1.bf16.msra.mxu0 0
      %4464 = vmatprep.subr.bf16.mxu0 0
      %4465 = vmatpush1.bf16.msra.mxu0 0
      %4466 = vmatprep.subr.bf16.mxu0 0
      %4467 = vmatpush1.bf16.msra.mxu0 0
      %4468 = vmatprep.subr.bf16.mxu0 0
      %4469 = vmatpush1.bf16.msra.mxu0 0
      %4470 = vmatprep.subr.bf16.mxu0 0
      %4471 = vmatpush1.bf16.msra.mxu0 0
      %4472 = vmatprep.mubr.bf16.mxu0 %v4309
      %4473 = vmatmul.mubr.bf16.gmra.mrb[0].mxu0 %v4303
      %v4474 = vpop.f32.mrb[0].mxu0
      %v4475 = vadd.f32 %v4432, %v4474
      %v4476 = vpop.f32.mrb[0].mxu0
      %v4477 = vadd.f32 %v4434, %v4476
      %v4478 = vpop.f32.mrb[0].mxu0
      %v4479 = vadd.f32 %v4436, %v4478
      %v4480 = vpop.f32.mrb[0].mxu0
      %v4481 = vadd.f32 %v4438, %v4480
      %4482 = vdwg.mxu0
      %v4483 = vadd.f32 %v4389, %v388
      %v4484 = vadd.f32 %v4391, %v389
      %v4485 = vadd.f32 %v4475, %v390
      %v4486 = vadd.f32 %v4477, %v391
      %v4487 = vadd.f32 %v4393, %v392
      %v4488 = vadd.f32 %v4395, %v393
      %v4489 = vadd.f32 %v4479, %v394
      %v4490 = vadd.f32 %v4481, %v395
      %4491 = vst [vmem:[%s386] sm:$0xff] %v4483
      %4492 = vst [vmem:[%s386 + $0x8] sm:$0xff] %v4484
      %4493 = vst [vmem:[%s386 + $0x10] sm:$0xff] %v4485
      %4494 = vst [vmem:[%s386 + $0x18] sm:$0xff] %v4486
      %4495 = vst [vmem:[%s386 + $0x20] sm:$0xff] %v4487
      %4496 = vst [vmem:[%s386 + $0x28] sm:$0xff] %v4488
      %4497 = vst [vmem:[%s386 + $0x30] sm:$0xff] %v4489
      %4498 = vst [vmem:[%s386 + $0x38] sm:$0xff] %v4490
      %p4499 = scmp.lt.s32.totalorder %s22, 1
      %s4500 = scalar_select %p4499, %s22, 1
      %s4501 = smul.addr %s4500, 8
      %s4502 = smul.addr %s4501, 8
      %s4503 = scalar_lea.vmem %s11, %s4502
      // Predicated region
      $region65: #{decoder_block_forward.1} parent=63 // pred_check
        %p4504 = pneg %p276
      $region66: #{decoder_block_forward.1} parent=63 // pred_check_branch
        %4506 = sbr.rel (%p4504) target = $region68
      $region67: #{decoder_block_forward.1} parent=63 // pred_region
        _
      $region68: #{decoder_block_forward.1} parent=63 // pred_fallthru
        _
    $region64: #{decoder_block_forward.1} parent=5 // pred_fallthru
      _
    %p4507 = scmp.le.s32.totalorder 2, %s17
    // Predicated region
    $region69: #{decoder_block_forward.1} parent=5 // pred_check
      %p4508 = pneg %p4507
    $region70: #{decoder_block_forward.1} parent=5 // pred_check_branch
      %4510 = sbr.rel (%p4508) target = $region72
    $region71: #{decoder_block_forward.1} parent=5 // pred_region
      %s4511 = ssub.s32 %s17, 2
      // Predicated region
      $region73: #{decoder_block_forward.1} parent=71 // pred_check
        %p4512 = pneg %p282
      $region74: #{decoder_block_forward.1} parent=71 // pred_check_branch
        %4514 = sbr.rel (%p4512) target = $region76
      $region75: #{decoder_block_forward.1} parent=71 // pred_region
        %p4515 = scmp.lt.s32.totalorder %s23, 1
        %s4516 = scalar_select %p4515, %s23, 1
        %s4517 = smul.addr %s4516, 8
        %s4518 = smul.addr %s4517, 8
        %s4519 = scalar_lea.vmem %s11, %s4518
      $region76: #{decoder_block_forward.1} parent=71 // pred_fallthru
        _
    $region72: #{decoder_block_forward.1} parent=5 // pred_fallthru
      _
  $region6: #{decoder_block_forward.1} parent=0 // loop_footer
    %s21 = sadd.s32 1, %s17
  $region7: #{decoder_block_forward.1} parent=0 // loop_footer_branch
    %16 = sbr.rel target = $region3
  $region8: #{decoder_block_forward.1} parent=0 // loop_exit
    _

</llo_original>
